<compile_context>
chip_gen: v5e
topology: v5e:2x2
jax: 0.10.0
libtpu: 0.0.40
codegen_flags: <defaults>
</compile_context>

<pallas_src>
import functools

import jax
import jax.numpy as jnp
from jax import lax
from jax.experimental import pallas as pl
from jax.experimental.pallas import tpu as pltpu


# ----------------------------------------------------------------------------
# helpers
# ----------------------------------------------------------------------------
def _round_up(n, m):
    return ((n + m - 1) // m) * m


def _choose_time_chunk(T, max_chunk=16):
    tc = min(T, max_chunk)
    while T % tc != 0:
        tc -= 1
    return tc


def _pad_gate_cols(w, H, H_pad):
    """Pad the last dim of a (..., 3*H) gate-stacked array to (..., 3*H_pad),
    zero-padding each of the r/z/n gate blocks independently."""
    lead = w.shape[:-1]
    w = w.reshape(lead + (3, H))
    pad = [(0, 0)] * (len(lead) + 1) + [(0, H_pad - H)]
    return jnp.pad(w, pad).reshape(lead + (3 * H_pad,))


def _pad_leading(w, target):
    pad = [(0, target - w.shape[0])] + [(0, 0)] * (w.ndim - 1)
    return jnp.pad(w, pad)


# ----------------------------------------------------------------------------
# Fused kernel: layer-0 input projection (per time chunk) + multi-layer GRU
# recurrence + final Linear on the last time step.
#
# PyTorch nn.GRU cell semantics:
#   r = sigmoid(gi_r + gh_r)              (input-side biases pre-folded in gi)
#   z = sigmoid(gi_z + gh_z)
#   n = tanh  (gi_n + r * (gh_n + b_hn))
#   h' = (1 - z) * n + z * h
# ----------------------------------------------------------------------------
def fused_gru_fc_kernel(*refs, num_layers, hidden_pad, batch_pad, time_chunk,
                        matmul_dtype):
    L, H, Bp, Tc = num_layers, hidden_pad, batch_pad, time_chunk

    it = iter(refs)
    x_ref = next(it)                     # (Tc*Bp, F)   chunk of flattened input
    wih0_ref = next(it)                  # (F, 3H)      layer-0 input weights
    bi0_ref = next(it)                   # (1, 3H)      folded layer-0 biases
    if L > 1:
        wih_rest_ref = next(it)          # (L-1, H, 3H) layer>=1 input weights
        bi_rest_ref = next(it)           # (L-1, 1, 3H) folded layer>=1 biases
    whh_ref = next(it)                   # (L, H, 3H)   hidden weights (all layers)
    bhn_ref = next(it)                   # (L, 1, H)    b_hn (all layers)
    fcw_ref = next(it)                   # (H, Op)      final Linear weight^T
    fcb_ref = next(it)                   # (1, Op)      final Linear bias
    out_ref = next(it)                   # (Bp, Op)     output tile
    h_scratch = next(it)                 # VMEM (L, Bp, H) f32 hidden state
    gi_scratch = next(it)                # VMEM (Tc*Bp, 3H) f32 layer-0 gi slab

    c = pl.program_id(0)

    @pl.when(c == 0)
    def _init():
        # h0 = zeros (matches torch.zeros(...) in the module's forward)
        h_scratch[...] = jnp.zeros_like(h_scratch)

    # Layer-0 input projection for the whole time chunk: ONE MXU matmul,
    # independent of the hidden state (off the sequential critical path).
    gi_scratch[...] = (
        jnp.dot(x_ref[...].astype(matmul_dtype), wih0_ref[...],
                preferred_element_type=jnp.float32)
        + bi0_ref[...]
    )

    def gru_cell(gi, gh, bhn, h):
        r = jax.nn.sigmoid(gi[:, 0 * H:1 * H] + gh[:, 0 * H:1 * H])
        z = jax.nn.sigmoid(gi[:, 1 * H:2 * H] + gh[:, 1 * H:2 * H])
        n = jnp.tanh(gi[:, 2 * H:3 * H] + r * (gh[:, 2 * H:3 * H] + bhn))
        return (1.0 - z) * n + z * h

    def step(t, hs):
        row = pl.multiple_of(t * Bp, Bp)
        gi0 = gi_scratch[pl.ds(row, Bp), :]           # (Bp, 3H), precomputed
        new_hs = []
        h_below = None
        for l in range(L):
            h_prev = hs[l]
            if l == 0:
                gi_l = gi0
            else:
                gi_l = (
                    jnp.dot(h_below.astype(matmul_dtype), wih_rest_ref[l - 1],
                            preferred_element_type=jnp.float32)
                    + bi_rest_ref[l - 1]
                )
            gh = jnp.dot(h_prev.astype(matmul_dtype), whh_ref[l],
                         preferred_element_type=jnp.float32)
            h_new = gru_cell(gi_l, gh, bhn_ref[l], h_prev)
            new_hs.append(h_new)
            h_below = h_new
        return tuple(new_hs)

    hs0 = tuple(h_scratch[l] for l in range(L))
    hs = lax.fori_loop(0, Tc, step, hs0, unroll=True)
    for l in range(L):
        h_scratch[l] = hs[l]

    # Fused final Linear on the last time step of the last layer.
    @pl.when(c == pl.num_programs(0) - 1)
    def _finalize():
        out_ref[...] = (
            jnp.dot(hs[L - 1].astype(matmul_dtype), fcw_ref[...],
                    preferred_element_type=jnp.float32)
            + fcb_ref[...]
        )


# ----------------------------------------------------------------------------
# Parameters: PyTorch-layout init + preparation (transpose / fold / pad / stack)
# ----------------------------------------------------------------------------
def init_params(key, input_features, hidden_features, layer_dim, output_dim):
    """PyTorch-layout params: W_ih (3H, in_f), W_hh (3H, H), biases (3H,),
    fc W (O, H), fc b (O,). uniform(-1/sqrt(H), 1/sqrt(H)) like nn.GRU/nn.Linear."""
    k = 1.0 / jnp.sqrt(jnp.float32(hidden_features))
    layers = []
    for layer in range(layer_dim):
        in_f = input_features if layer == 0 else hidden_features
        key, k1, k2, k3, k4 = jax.random.split(key, 5)
        layers.append({
            "w_ih": jax.random.uniform(k1, (3 * hidden_features, in_f),
                                       jnp.float32, -k, k),
            "w_hh": jax.random.uniform(k2, (3 * hidden_features, hidden_features),
                                       jnp.float32, -k, k),
            "b_ih": jax.random.uniform(k3, (3 * hidden_features,), jnp.float32, -k, k),
            "b_hh": jax.random.uniform(k4, (3 * hidden_features,), jnp.float32, -k, k),
        })
    key, k5, k6 = jax.random.split(key, 3)
    fc_w = jax.random.uniform(k5, (output_dim, hidden_features), jnp.float32, -k, k)
    fc_b = jax.random.uniform(k6, (output_dim,), jnp.float32, -k, k)
    return {"gru": layers, "fc_w": fc_w, "fc_b": fc_b}


def prepare_params(raw, *, matmul_dtype=jnp.float32):
    """Transpose to x@W layout, fold input-side biases, pad H->128 / O->128,
    stack per-layer weights into single arrays."""
    H = raw["gru"][0]["w_hh"].shape[1]
    O = raw["fc_w"].shape[0]
    H_pad = _round_up(H, 128)
    O_pad = _round_up(O, 128)
    L = len(raw["gru"])

    wih0_t = None
    bi0 = None
    wih_rest, whh_all, bi_rest, bhn_all = [], [], [], []
    for l, p in enumerate(raw["gru"]):
        w_ih_t = jnp.asarray(p["w_ih"], jnp.float32).T          # (in_f, 3H)
        w_hh_t = jnp.asarray(p["w_hh"], jnp.float32).T          # (H, 3H)
        b_ih = jnp.asarray(p["b_ih"], jnp.float32)
        b_hh = jnp.asarray(p["b_hh"], jnp.float32)

        # fold biases: r,z gates get b_i+b_h; n gate keeps only b_in (b_hn stays
        # separate because of the r * (gh_n + b_hn) term).
        bi = jnp.concatenate([b_ih[:H] + b_hh[:H],
                              b_ih[H:2 * H] + b_hh[H:2 * H],
                              b_ih[2 * H:]])
        bhn = b_hh[2 * H:]

        w_ih_t = _pad_gate_cols(w_ih_t, H, H_pad)
        w_hh_t = _pad_leading(_pad_gate_cols(w_hh_t, H, H_pad), H_pad)
        bi = _pad_gate_cols(bi[None, :], H, H_pad)              # (1, 3*H_pad)
        bhn = jnp.pad(bhn, (0, H_pad - H))[None, :]             # (1, H_pad)

        whh_all.append(w_hh_t.astype(matmul_dtype))
        bhn_all.append(bhn)
        if l == 0:
            wih0_t = w_ih_t.astype(matmul_dtype)                # (F, 3*H_pad)
            bi0 = bi
        else:
            wih_rest.append(_pad_leading(w_ih_t, H_pad).astype(matmul_dtype))
            bi_rest.append(bi)

    fc_w_t = jnp.asarray(raw["fc_w"], jnp.float32).T            # (H, O)
    fc_w_t = jnp.pad(fc_w_t, ((0, H_pad - H), (0, O_pad - O)))
    fc_b = jnp.pad(jnp.asarray(raw["fc_b"], jnp.float32), (0, O_pad - O))[None, :]

    params = {
        "num_layers": L,
        "hidden": H, "hidden_pad": H_pad,
        "output_dim": O, "output_pad": O_pad,
        "matmul_dtype": matmul_dtype,
        "wih0_t": wih0_t, "bi0": bi0,
        "whh_all": jnp.stack(whh_all),                          # (L, Hp, 3Hp)
        "bhn_all": jnp.stack(bhn_all),                          # (L, 1, Hp)
        "fc_w_t": fc_w_t.astype(matmul_dtype), "fc_b": fc_b,
    }
    if L > 1:
        params["wih_rest"] = jnp.stack(wih_rest)                # (L-1, Hp, 3Hp)
        params["bi_rest"] = jnp.stack(bi_rest)                  # (L-1, 1, 3Hp)
    return params


# ----------------------------------------------------------------------------
# Forward pass (mirrors GRUModel.forward; x is (B, T, F), batch_first=True).
# ----------------------------------------------------------------------------
def gru_model_forward(params, x, *, time_chunk=None):
    B, T, F = x.shape
    L = params["num_layers"]
    H_pad = params["hidden_pad"]
    O_pad = params["output_pad"]
    mdt = params["matmul_dtype"]
    B_pad = _round_up(B, 8)

    # (B, T, F) -> (T, B_pad, F) -> flat (T*B_pad, F); all layout prep in XLA.
    x_tbf = jnp.transpose(x, (1, 0, 2)).astype(jnp.float32)
    if B_pad > B:
        x_tbf = jnp.pad(x_tbf, ((0, 0), (0, B_pad - B), (0, 0)))
    x2d = x_tbf.reshape(T * B_pad, F).astype(mdt)

    Tc = time_chunk if time_chunk is not None else _choose_time_chunk(T)
    assert T % Tc == 0

    args = [x2d, params["wih0_t"], params["bi0"]]
    in_specs = [
        pl.BlockSpec((Tc * B_pad, F), lambda c: (c, 0)),
        pl.BlockSpec(params["wih0_t"].shape, lambda c: (0, 0)),
        pl.BlockSpec(params["bi0"].shape, lambda c: (0, 0)),
    ]

    def resident(a):   # resident full block, constant index map (DMA'd once)
        args.append(a)
        in_specs.append(pl.BlockSpec(a.shape, lambda c: (0,) * a.ndim))

    if L > 1:
        resident(params["wih_rest"])
        resident(params["bi_rest"])
    resident(params["whh_all"])
    resident(params["bhn_all"])
    resident(params["fc_w_t"])
    resident(params["fc_b"])

    kernel = functools.partial(
        fused_gru_fc_kernel,
        num_layers=L, hidden_pad=H_pad, batch_pad=B_pad,
        time_chunk=Tc, matmul_dtype=mdt)

    out_pad = pl.pallas_call(
        kernel,
        out_shape=jax.ShapeDtypeStruct((B_pad, O_pad), jnp.float32),
        grid_spec=pltpu.PrefetchScalarGridSpec(
            num_scalar_prefetch=0,
            grid=(T // Tc,),
            in_specs=in_specs,
            out_specs=pl.BlockSpec((B_pad, O_pad), lambda c: (0, 0)),
            scratch_shapes=[
                pltpu.VMEM((L, B_pad, H_pad), jnp.float32),      # hidden state
                pltpu.VMEM((Tc * B_pad, 3 * H_pad), jnp.float32),  # layer-0 gi
            ],
        ),
        compiler_params=pltpu.CompilerParams(
            dimension_semantics=("arbitrary",),   # time recurrence is sequential
        ),
    )(*args)

    return out_pad[:B, :params["output_dim"]]


# ----------------------------------------------------------------------------
# Pure-JAX reference (exact PyTorch GRU semantics) for a correctness check.
# ----------------------------------------------------------------------------
def gru_reference(raw, x):
    P = lax.Precision.HIGHEST
    H = raw["gru"][0]["w_hh"].shape[1]
    B = x.shape[0]
    inp = x.astype(jnp.float32)
    for p in raw["gru"]:
        h = jnp.zeros((B, H), jnp.float32)
        outs = []
        for t in range(inp.shape[1]):
            x_t = inp[:, t, :]
            gi = jnp.dot(x_t, p["w_ih"].T, precision=P) + p["b_ih"]
            gh = jnp.dot(h, p["w_hh"].T, precision=P) + p["b_hh"]
            r = jax.nn.sigmoid(gi[:, :H] + gh[:, :H])
            z = jax.nn.sigmoid(gi[:, H:2 * H] + gh[:, H:2 * H])
            n = jnp.tanh(gi[:, 2 * H:] + r * gh[:, 2 * H:])
            h = (1.0 - z) * n + z * h
            outs.append(h)
        inp = jnp.stack(outs, axis=1)
    h_last = inp[:, -1, :]
    return jnp.dot(h_last, raw["fc_w"].T, precision=P) + raw["fc_b"]


if __name__ == "__main__":
    batch = 2
    seq = 8
    input_features = 4
    hidden_features = 32
    layer_dim = 2
    output_dim = 3

    key = jax.random.PRNGKey(0)
    key, pkey, xkey = jax.random.split(key, 3)

    raw = init_params(pkey, input_features, hidden_features, layer_dim, output_dim)
    # Default f32 matmuls => exact PyTorch semantics. On v6e/v7x pass
    # matmul_dtype=jnp.bfloat16 for full-rate MXU with f32 accumulation.
    params = prepare_params(raw, matmul_dtype=jnp.float32)
    x = jax.random.normal(xkey, (batch, seq, input_features), jnp.float32)

    out = gru_model_forward(params, x)
    out = jax.block_until_ready(out)
    assert out.shape == (batch, output_dim)

    ref = jax.block_until_ready(gru_reference(raw, x))
    assert jnp.allclose(out, ref, atol=5e-3, rtol=5e-3), (
        "mismatch vs reference", out, ref)

    print("KERNEL_OK")
</pallas_src>

<mosaic_0001>
module attributes {stable_mosaic.version = 11 : i64} {
  func.func @fused_gru_fc_kernel(%arg0: i32, %arg1: memref<64x4xf32, #tpu.memory_space<vmem>>, %arg2: memref<4x384xf32, #tpu.memory_space<vmem>>, %arg3: memref<1x384xf32, #tpu.memory_space<vmem>>, %arg4: memref<1x128x384xf32, #tpu.memory_space<vmem>>, %arg5: memref<1x1x384xf32, #tpu.memory_space<vmem>>, %arg6: memref<2x128x384xf32, #tpu.memory_space<vmem>>, %arg7: memref<2x1x128xf32, #tpu.memory_space<vmem>>, %arg8: memref<128x128xf32, #tpu.memory_space<vmem>>, %arg9: memref<1x128xf32, #tpu.memory_space<vmem>>, %arg10: memref<8x128xf32, #tpu.memory_space<vmem>>, %arg11: memref<2x8x128xf32, #tpu.memory_space<vmem>>, %arg12: memref<64x384xf32, #tpu.memory_space<vmem>>) attributes {dimension_semantics = [#tpu.dimension_semantics<arbitrary>], iteration_bounds = array<i64: 1>, scalar_prefetch = 0 : i64, scratch_operands = 2 : i64, tpu.core_type = #tpu.core_type<tc>, window_params = [{transform_indices = @transform_0, window_bounds = array<i64: 64, 4>}, {pipeline_mode = #tpu.pipeline_mode<synchronous>, transform_indices = @transform_1, window_bounds = array<i64: 4, 384>}, {pipeline_mode = #tpu.pipeline_mode<synchronous>, transform_indices = @transform_2, window_bounds = array<i64: 1, 384>}, {pipeline_mode = #tpu.pipeline_mode<synchronous>, transform_indices = @transform_3, window_bounds = array<i64: 1, 128, 384>}, {pipeline_mode = #tpu.pipeline_mode<synchronous>, transform_indices = @transform_4, window_bounds = array<i64: 1, 1, 384>}, {pipeline_mode = #tpu.pipeline_mode<synchronous>, transform_indices = @transform_5, window_bounds = array<i64: 2, 128, 384>}, {pipeline_mode = #tpu.pipeline_mode<synchronous>, transform_indices = @transform_6, window_bounds = array<i64: 2, 1, 128>}, {pipeline_mode = #tpu.pipeline_mode<synchronous>, transform_indices = @transform_7, window_bounds = array<i64: 128, 128>}, {pipeline_mode = #tpu.pipeline_mode<synchronous>, transform_indices = @transform_8, window_bounds = array<i64: 1, 128>}, {pipeline_mode = #tpu.pipeline_mode<synchronous>, transform_indices = @transform_9, window_bounds = array<i64: 8, 128>}]} {
    %c0_i32 = arith.constant 0 : i32
    %0 = arith.cmpi eq, %arg0, %c0_i32 : i32
    %1 = arith.extui %0 : i1 to i32
    %c0_i32_0 = arith.constant 0 : i32
    %2 = arith.cmpi ne, %1, %c0_i32_0 : i32
    scf.if %2 {
      %cst_254 = arith.constant 0.000000e+00 : f32
      %639 = vector.broadcast %cst_254 : f32 to vector<2x8x128xf32>
      %c0_255 = arith.constant 0 : index
      %c0_256 = arith.constant 0 : index
      %c0_257 = arith.constant 0 : index
      %640 = vector.load %arg11[%c0_255, %c0_256, %c0_257] : memref<2x8x128xf32, #tpu.memory_space<vmem>>, vector<2x8x128xf32>
      tpu.vector_store %arg11[%c0_255, %c0_256, %c0_257], %639 {strides = array<i32>} : memref<2x8x128xf32, #tpu.memory_space<vmem>>, vector<2x8x128xf32>,
    } else {
    }
    %c0 = arith.constant 0 : index
    %c0_1 = arith.constant 0 : index
    %3 = vector.load %arg1[%c0, %c0_1] : memref<64x4xf32, #tpu.memory_space<vmem>>, vector<64x4xf32>
    %c0_2 = arith.constant 0 : index
    %c0_3 = arith.constant 0 : index
    %4 = vector.load %arg2[%c0_2, %c0_3] : memref<4x384xf32, #tpu.memory_space<vmem>>, vector<4x384xf32>
    %cst = arith.constant dense<0.000000e+00> : vector<64x384xf32>
    %5 = tpu.matmul %3, %4, %cst {dimension_numbers = #tpu.dot_dimension_numbers<[1], [0], [0], [1], [0, 0, 1, 1], [], []>} : vector<64x4xf32>, vector<4x384xf32>, vector<64x384xf32> -> vector<64x384xf32>
    %c0_4 = arith.constant 0 : index
    %c0_5 = arith.constant 0 : index
    %6 = vector.load %arg3[%c0_4, %c0_5] : memref<1x384xf32, #tpu.memory_space<vmem>>, vector<1x384xf32>
    %7 = vector.broadcast %6 : vector<1x384xf32> to vector<64x384xf32>
    %8 = arith.addf %5, %7 : vector<64x384xf32>
    %c0_6 = arith.constant 0 : index
    %c0_7 = arith.constant 0 : index
    %9 = vector.load %arg12[%c0_6, %c0_7] : memref<64x384xf32, #tpu.memory_space<vmem>>, vector<64x384xf32>
    tpu.vector_store %arg12[%c0_6, %c0_7], %8 {strides = array<i32>} : memref<64x384xf32, #tpu.memory_space<vmem>>, vector<64x384xf32>,
    %c0_8 = arith.constant 0 : index
    %c0_9 = arith.constant 0 : index
    %c0_10 = arith.constant 0 : index
    %10 = vector.load %arg11[%c0_8, %c0_9, %c0_10] : memref<2x8x128xf32, #tpu.memory_space<vmem>>, vector<1x8x128xf32>
    %11 = vector.shape_cast %10 : vector<1x8x128xf32> to vector<8x128xf32>
    %c1 = arith.constant 1 : index
    %c0_11 = arith.constant 0 : index
    %c0_12 = arith.constant 0 : index
    %12 = vector.load %arg11[%c1, %c0_11, %c0_12] : memref<2x8x128xf32, #tpu.memory_space<vmem>>, vector<1x8x128xf32>
    %13 = vector.shape_cast %12 : vector<1x8x128xf32> to vector<8x128xf32>
    %c0_i32_13 = arith.constant 0 : i32
    %c8_i32 = arith.constant 8 : i32
    %14 = arith.muli %c0_i32_13, %c8_i32 : i32
    %15 = tpu.assume_multiple %14, 8 : i32
    %16 = arith.index_cast %15 : i32 to index
    %c0_14 = arith.constant 0 : index
    %17 = vector.load %arg12[%16, %c0_14] : memref<64x384xf32, #tpu.memory_space<vmem>>, vector<8x384xf32>
    %c0_15 = arith.constant 0 : index
    %c0_16 = arith.constant 0 : index
    %c0_17 = arith.constant 0 : index
    %18 = vector.load %arg6[%c0_15, %c0_16, %c0_17] : memref<2x128x384xf32, #tpu.memory_space<vmem>>, vector<1x128x384xf32>
    %19 = vector.shape_cast %18 : vector<1x128x384xf32> to vector<128x384xf32>
    %cst_18 = arith.constant dense<0.000000e+00> : vector<8x384xf32>
    %20 = tpu.matmul %11, %19, %cst_18 {dimension_numbers = #tpu.dot_dimension_numbers<[1], [0], [0], [1], [0, 0, 1, 1], [], []>} : vector<8x128xf32>, vector<128x384xf32>, vector<8x384xf32> -> vector<8x384xf32>
    %c0_19 = arith.constant 0 : index
    %c0_20 = arith.constant 0 : index
    %c0_21 = arith.constant 0 : index
    %21 = vector.load %arg7[%c0_19, %c0_20, %c0_21] : memref<2x1x128xf32, #tpu.memory_space<vmem>>, vector<1x1x128xf32>
    %22 = vector.shape_cast %21 : vector<1x1x128xf32> to vector<1x128xf32>
    %23 = vector.extract_strided_slice %17 {offsets = [0, 0], sizes = [8, 128], strides = [1, 1]} : vector<8x384xf32> to vector<8x128xf32>
    %24 = vector.extract_strided_slice %20 {offsets = [0, 0], sizes = [8, 128], strides = [1, 1]} : vector<8x384xf32> to vector<8x128xf32>
    %25 = arith.addf %23, %24 : vector<8x128xf32>
    %26 = arith.negf %25 : vector<8x128xf32>
    %27 = math.exp %26 : vector<8x128xf32>
    %cst_22 = arith.constant 1.000000e+00 : f32
    %28 = vector.broadcast %cst_22 : f32 to vector<8x128xf32>
    %29 = arith.addf %28, %27 : vector<8x128xf32>
    %30 = arith.divf %28, %29 : vector<8x128xf32>
    %31 = vector.extract_strided_slice %17 {offsets = [0, 128], sizes = [8, 128], strides = [1, 1]} : vector<8x384xf32> to vector<8x128xf32>
    %32 = vector.extract_strided_slice %20 {offsets = [0, 128], sizes = [8, 128], strides = [1, 1]} : vector<8x384xf32> to vector<8x128xf32>
    %33 = arith.addf %31, %32 : vector<8x128xf32>
    %34 = arith.negf %33 : vector<8x128xf32>
    %35 = math.exp %34 : vector<8x128xf32>
    %cst_23 = arith.constant 1.000000e+00 : f32
    %36 = vector.broadcast %cst_23 : f32 to vector<8x128xf32>
    %37 = arith.addf %36, %35 : vector<8x128xf32>
    %38 = arith.divf %36, %37 : vector<8x128xf32>
    %39 = vector.extract_strided_slice %17 {offsets = [0, 256], sizes = [8, 128], strides = [1, 1]} : vector<8x384xf32> to vector<8x128xf32>
    %40 = vector.extract_strided_slice %20 {offsets = [0, 256], sizes = [8, 128], strides = [1, 1]} : vector<8x384xf32> to vector<8x128xf32>
    %41 = vector.broadcast %22 : vector<1x128xf32> to vector<8x128xf32>
    %42 = arith.addf %40, %41 : vector<8x128xf32>
    %43 = arith.mulf %30, %42 : vector<8x128xf32>
    %44 = arith.addf %39, %43 : vector<8x128xf32>
    %45 = math.tanh %44 : vector<8x128xf32>
    %cst_24 = arith.constant 1.000000e+00 : f32
    %46 = vector.broadcast %cst_24 : f32 to vector<8x128xf32>
    %47 = arith.subf %46, %38 : vector<8x128xf32>
    %48 = arith.mulf %47, %45 : vector<8x128xf32>
    %49 = arith.mulf %38, %11 : vector<8x128xf32>
    %50 = arith.addf %48, %49 : vector<8x128xf32>
    %c0_25 = arith.constant 0 : index
    %c0_26 = arith.constant 0 : index
    %c0_27 = arith.constant 0 : index
    %51 = vector.load %arg4[%c0_25, %c0_26, %c0_27] : memref<1x128x384xf32, #tpu.memory_space<vmem>>, vector<1x128x384xf32>
    %52 = vector.shape_cast %51 : vector<1x128x384xf32> to vector<128x384xf32>
    %cst_28 = arith.constant dense<0.000000e+00> : vector<8x384xf32>
    %53 = tpu.matmul %50, %52, %cst_28 {dimension_numbers = #tpu.dot_dimension_numbers<[1], [0], [0], [1], [0, 0, 1, 1], [], []>} : vector<8x128xf32>, vector<128x384xf32>, vector<8x384xf32> -> vector<8x384xf32>
    %c0_29 = arith.constant 0 : index
    %c0_30 = arith.constant 0 : index
    %c0_31 = arith.constant 0 : index
    %54 = vector.load %arg5[%c0_29, %c0_30, %c0_31] : memref<1x1x384xf32, #tpu.memory_space<vmem>>, vector<1x1x384xf32>
    %55 = vector.shape_cast %54 : vector<1x1x384xf32> to vector<1x384xf32>
    %56 = vector.broadcast %55 : vector<1x384xf32> to vector<8x384xf32>
    %57 = arith.addf %53, %56 : vector<8x384xf32>
    %c1_32 = arith.constant 1 : index
    %c0_33 = arith.constant 0 : index
    %c0_34 = arith.constant 0 : index
    %58 = vector.load %arg6[%c1_32, %c0_33, %c0_34] : memref<2x128x384xf32, #tpu.memory_space<vmem>>, vector<1x128x384xf32>
    %59 = vector.shape_cast %58 : vector<1x128x384xf32> to vector<128x384xf32>
    %cst_35 = arith.constant dense<0.000000e+00> : vector<8x384xf32>
    %60 = tpu.matmul %13, %59, %cst_35 {dimension_numbers = #tpu.dot_dimension_numbers<[1], [0], [0], [1], [0, 0, 1, 1], [], []>} : vector<8x128xf32>, vector<128x384xf32>, vector<8x384xf32> -> vector<8x384xf32>
    %c1_36 = arith.constant 1 : index
    %c0_37 = arith.constant 0 : index
    %c0_38 = arith.constant 0 : index
    %61 = vector.load %arg7[%c1_36, %c0_37, %c0_38] : memref<2x1x128xf32, #tpu.memory_space<vmem>>, vector<1x1x128xf32>
    %62 = vector.shape_cast %61 : vector<1x1x128xf32> to vector<1x128xf32>
    %63 = vector.extract_strided_slice %57 {offsets = [0, 0], sizes = [8, 128], strides = [1, 1]} : vector<8x384xf32> to vector<8x128xf32>
    %64 = vector.extract_strided_slice %60 {offsets = [0, 0], sizes = [8, 128], strides = [1, 1]} : vector<8x384xf32> to vector<8x128xf32>
    %65 = arith.addf %63, %64 : vector<8x128xf32>
    %66 = arith.negf %65 : vector<8x128xf32>
    %67 = math.exp %66 : vector<8x128xf32>
    %cst_39 = arith.constant 1.000000e+00 : f32
    %68 = vector.broadcast %cst_39 : f32 to vector<8x128xf32>
    %69 = arith.addf %68, %67 : vector<8x128xf32>
    %70 = arith.divf %68, %69 : vector<8x128xf32>
    %71 = vector.extract_strided_slice %57 {offsets = [0, 128], sizes = [8, 128], strides = [1, 1]} : vector<8x384xf32> to vector<8x128xf32>
    %72 = vector.extract_strided_slice %60 {offsets = [0, 128], sizes = [8, 128], strides = [1, 1]} : vector<8x384xf32> to vector<8x128xf32>
    %73 = arith.addf %71, %72 : vector<8x128xf32>
    %74 = arith.negf %73 : vector<8x128xf32>
    %75 = math.exp %74 : vector<8x128xf32>
    %cst_40 = arith.constant 1.000000e+00 : f32
    %76 = vector.broadcast %cst_40 : f32 to vector<8x128xf32>
    %77 = arith.addf %76, %75 : vector<8x128xf32>
    %78 = arith.divf %76, %77 : vector<8x128xf32>
    %79 = vector.extract_strided_slice %57 {offsets = [0, 256], sizes = [8, 128], strides = [1, 1]} : vector<8x384xf32> to vector<8x128xf32>
    %80 = vector.extract_strided_slice %60 {offsets = [0, 256], sizes = [8, 128], strides = [1, 1]} : vector<8x384xf32> to vector<8x128xf32>
    %81 = vector.broadcast %62 : vector<1x128xf32> to vector<8x128xf32>
    %82 = arith.addf %80, %81 : vector<8x128xf32>
    %83 = arith.mulf %70, %82 : vector<8x128xf32>
    %84 = arith.addf %79, %83 : vector<8x128xf32>
    %85 = math.tanh %84 : vector<8x128xf32>
    %cst_41 = arith.constant 1.000000e+00 : f32
    %86 = vector.broadcast %cst_41 : f32 to vector<8x128xf32>
    %87 = arith.subf %86, %78 : vector<8x128xf32>
    %88 = arith.mulf %87, %85 : vector<8x128xf32>
    %89 = arith.mulf %78, %13 : vector<8x128xf32>
    %90 = arith.addf %88, %89 : vector<8x128xf32>
    %c1_i32 = arith.constant 1 : i32
    %c8_i32_42 = arith.constant 8 : i32
    %91 = arith.muli %c1_i32, %c8_i32_42 : i32
    %92 = tpu.assume_multiple %91, 8 : i32
    %93 = arith.index_cast %92 : i32 to index
    %c0_43 = arith.constant 0 : index
    %94 = vector.load %arg12[%93, %c0_43] : memref<64x384xf32, #tpu.memory_space<vmem>>, vector<8x384xf32>
    %c0_44 = arith.constant 0 : index
    %c0_45 = arith.constant 0 : index
    %c0_46 = arith.constant 0 : index
    %95 = vector.load %arg6[%c0_44, %c0_45, %c0_46] : memref<2x128x384xf32, #tpu.memory_space<vmem>>, vector<1x128x384xf32>
    %96 = vector.shape_cast %95 : vector<1x128x384xf32> to vector<128x384xf32>
    %cst_47 = arith.constant dense<0.000000e+00> : vector<8x384xf32>
    %97 = tpu.matmul %50, %96, %cst_47 {dimension_numbers = #tpu.dot_dimension_numbers<[1], [0], [0], [1], [0, 0, 1, 1], [], []>} : vector<8x128xf32>, vector<128x384xf32>, vector<8x384xf32> -> vector<8x384xf32>
    %c0_48 = arith.constant 0 : index
    %c0_49 = arith.constant 0 : index
    %c0_50 = arith.constant 0 : index
    %98 = vector.load %arg7[%c0_48, %c0_49, %c0_50] : memref<2x1x128xf32, #tpu.memory_space<vmem>>, vector<1x1x128xf32>
    %99 = vector.shape_cast %98 : vector<1x1x128xf32> to vector<1x128xf32>
    %100 = vector.extract_strided_slice %94 {offsets = [0, 0], sizes = [8, 128], strides = [1, 1]} : vector<8x384xf32> to vector<8x128xf32>
    %101 = vector.extract_strided_slice %97 {offsets = [0, 0], sizes = [8, 128], strides = [1, 1]} : vector<8x384xf32> to vector<8x128xf32>
    %102 = arith.addf %100, %101 : vector<8x128xf32>
    %103 = arith.negf %102 : vector<8x128xf32>
    %104 = math.exp %103 : vector<8x128xf32>
    %cst_51 = arith.constant 1.000000e+00 : f32
    %105 = vector.broadcast %cst_51 : f32 to vector<8x128xf32>
    %106 = arith.addf %105, %104 : vector<8x128xf32>
    %107 = arith.divf %105, %106 : vector<8x128xf32>
    %108 = vector.extract_strided_slice %94 {offsets = [0, 128], sizes = [8, 128], strides = [1, 1]} : vector<8x384xf32> to vector<8x128xf32>
    %109 = vector.extract_strided_slice %97 {offsets = [0, 128], sizes = [8, 128], strides = [1, 1]} : vector<8x384xf32> to vector<8x128xf32>
    %110 = arith.addf %108, %109 : vector<8x128xf32>
    %111 = arith.negf %110 : vector<8x128xf32>
    %112 = math.exp %111 : vector<8x128xf32>
    %cst_52 = arith.constant 1.000000e+00 : f32
    %113 = vector.broadcast %cst_52 : f32 to vector<8x128xf32>
    %114 = arith.addf %113, %112 : vector<8x128xf32>
    %115 = arith.divf %113, %114 : vector<8x128xf32>
    %116 = vector.extract_strided_slice %94 {offsets = [0, 256], sizes = [8, 128], strides = [1, 1]} : vector<8x384xf32> to vector<8x128xf32>
    %117 = vector.extract_strided_slice %97 {offsets = [0, 256], sizes = [8, 128], strides = [1, 1]} : vector<8x384xf32> to vector<8x128xf32>
    %118 = vector.broadcast %99 : vector<1x128xf32> to vector<8x128xf32>
    %119 = arith.addf %117, %118 : vector<8x128xf32>
    %120 = arith.mulf %107, %119 : vector<8x128xf32>
    %121 = arith.addf %116, %120 : vector<8x128xf32>
    %122 = math.tanh %121 : vector<8x128xf32>
    %cst_53 = arith.constant 1.000000e+00 : f32
    %123 = vector.broadcast %cst_53 : f32 to vector<8x128xf32>
    %124 = arith.subf %123, %115 : vector<8x128xf32>
    %125 = arith.mulf %124, %122 : vector<8x128xf32>
    %126 = arith.mulf %115, %50 : vector<8x128xf32>
    %127 = arith.addf %125, %126 : vector<8x128xf32>
    %c0_54 = arith.constant 0 : index
    %c0_55 = arith.constant 0 : index
    %c0_56 = arith.constant 0 : index
    %128 = vector.load %arg4[%c0_54, %c0_55, %c0_56] : memref<1x128x384xf32, #tpu.memory_space<vmem>>, vector<1x128x384xf32>
    %129 = vector.shape_cast %128 : vector<1x128x384xf32> to vector<128x384xf32>
    %cst_57 = arith.constant dense<0.000000e+00> : vector<8x384xf32>
    %130 = tpu.matmul %127, %129, %cst_57 {dimension_numbers = #tpu.dot_dimension_numbers<[1], [0], [0], [1], [0, 0, 1, 1], [], []>} : vector<8x128xf32>, vector<128x384xf32>, vector<8x384xf32> -> vector<8x384xf32>
    %c0_58 = arith.constant 0 : index
    %c0_59 = arith.constant 0 : index
    %c0_60 = arith.constant 0 : index
    %131 = vector.load %arg5[%c0_58, %c0_59, %c0_60] : memref<1x1x384xf32, #tpu.memory_space<vmem>>, vector<1x1x384xf32>
    %132 = vector.shape_cast %131 : vector<1x1x384xf32> to vector<1x384xf32>
    %133 = vector.broadcast %132 : vector<1x384xf32> to vector<8x384xf32>
    %134 = arith.addf %130, %133 : vector<8x384xf32>
    %c1_61 = arith.constant 1 : index
    %c0_62 = arith.constant 0 : index
    %c0_63 = arith.constant 0 : index
    %135 = vector.load %arg6[%c1_61, %c0_62, %c0_63] : memref<2x128x384xf32, #tpu.memory_space<vmem>>, vector<1x128x384xf32>
    %136 = vector.shape_cast %135 : vector<1x128x384xf32> to vector<128x384xf32>
    %cst_64 = arith.constant dense<0.000000e+00> : vector<8x384xf32>
    %137 = tpu.matmul %90, %136, %cst_64 {dimension_numbers = #tpu.dot_dimension_numbers<[1], [0], [0], [1], [0, 0, 1, 1], [], []>} : vector<8x128xf32>, vector<128x384xf32>, vector<8x384xf32> -> vector<8x384xf32>
    %c1_65 = arith.constant 1 : index
    %c0_66 = arith.constant 0 : index
    %c0_67 = arith.constant 0 : index
    %138 = vector.load %arg7[%c1_65, %c0_66, %c0_67] : memref<2x1x128xf32, #tpu.memory_space<vmem>>, vector<1x1x128xf32>
    %139 = vector.shape_cast %138 : vector<1x1x128xf32> to vector<1x128xf32>
    %140 = vector.extract_strided_slice %134 {offsets = [0, 0], sizes = [8, 128], strides = [1, 1]} : vector<8x384xf32> to vector<8x128xf32>
    %141 = vector.extract_strided_slice %137 {offsets = [0, 0], sizes = [8, 128], strides = [1, 1]} : vector<8x384xf32> to vector<8x128xf32>
    %142 = arith.addf %140, %141 : vector<8x128xf32>
    %143 = arith.negf %142 : vector<8x128xf32>
    %144 = math.exp %143 : vector<8x128xf32>
    %cst_68 = arith.constant 1.000000e+00 : f32
    %145 = vector.broadcast %cst_68 : f32 to vector<8x128xf32>
    %146 = arith.addf %145, %144 : vector<8x128xf32>
    %147 = arith.divf %145, %146 : vector<8x128xf32>
    %148 = vector.extract_strided_slice %134 {offsets = [0, 128], sizes = [8, 128], strides = [1, 1]} : vector<8x384xf32> to vector<8x128xf32>
    %149 = vector.extract_strided_slice %137 {offsets = [0, 128], sizes = [8, 128], strides = [1, 1]} : vector<8x384xf32> to vector<8x128xf32>
    %150 = arith.addf %148, %149 : vector<8x128xf32>
    %151 = arith.negf %150 : vector<8x128xf32>
    %152 = math.exp %151 : vector<8x128xf32>
    %cst_69 = arith.constant 1.000000e+00 : f32
    %153 = vector.broadcast %cst_69 : f32 to vector<8x128xf32>
    %154 = arith.addf %153, %152 : vector<8x128xf32>
    %155 = arith.divf %153, %154 : vector<8x128xf32>
    %156 = vector.extract_strided_slice %134 {offsets = [0, 256], sizes = [8, 128], strides = [1, 1]} : vector<8x384xf32> to vector<8x128xf32>
    %157 = vector.extract_strided_slice %137 {offsets = [0, 256], sizes = [8, 128], strides = [1, 1]} : vector<8x384xf32> to vector<8x128xf32>
    %158 = vector.broadcast %139 : vector<1x128xf32> to vector<8x128xf32>
    %159 = arith.addf %157, %158 : vector<8x128xf32>
    %160 = arith.mulf %147, %159 : vector<8x128xf32>
    %161 = arith.addf %156, %160 : vector<8x128xf32>
    %162 = math.tanh %161 : vector<8x128xf32>
    %cst_70 = arith.constant 1.000000e+00 : f32
    %163 = vector.broadcast %cst_70 : f32 to vector<8x128xf32>
    %164 = arith.subf %163, %155 : vector<8x128xf32>
    %165 = arith.mulf %164, %162 : vector<8x128xf32>
    %166 = arith.mulf %155, %90 : vector<8x128xf32>
    %167 = arith.addf %165, %166 : vector<8x128xf32>
    %c2_i32 = arith.constant 2 : i32
    %c8_i32_71 = arith.constant 8 : i32
    %168 = arith.muli %c2_i32, %c8_i32_71 : i32
    %169 = tpu.assume_multiple %168, 8 : i32
    %170 = arith.index_cast %169 : i32 to index
    %c0_72 = arith.constant 0 : index
    %171 = vector.load %arg12[%170, %c0_72] : memref<64x384xf32, #tpu.memory_space<vmem>>, vector<8x384xf32>
    %c0_73 = arith.constant 0 : index
    %c0_74 = arith.constant 0 : index
    %c0_75 = arith.constant 0 : index
    %172 = vector.load %arg6[%c0_73, %c0_74, %c0_75] : memref<2x128x384xf32, #tpu.memory_space<vmem>>, vector<1x128x384xf32>
    %173 = vector.shape_cast %172 : vector<1x128x384xf32> to vector<128x384xf32>
    %cst_76 = arith.constant dense<0.000000e+00> : vector<8x384xf32>
    %174 = tpu.matmul %127, %173, %cst_76 {dimension_numbers = #tpu.dot_dimension_numbers<[1], [0], [0], [1], [0, 0, 1, 1], [], []>} : vector<8x128xf32>, vector<128x384xf32>, vector<8x384xf32> -> vector<8x384xf32>
    %c0_77 = arith.constant 0 : index
    %c0_78 = arith.constant 0 : index
    %c0_79 = arith.constant 0 : index
    %175 = vector.load %arg7[%c0_77, %c0_78, %c0_79] : memref<2x1x128xf32, #tpu.memory_space<vmem>>, vector<1x1x128xf32>
    %176 = vector.shape_cast %175 : vector<1x1x128xf32> to vector<1x128xf32>
    %177 = vector.extract_strided_slice %171 {offsets = [0, 0], sizes = [8, 128], strides = [1, 1]} : vector<8x384xf32> to vector<8x128xf32>
    %178 = vector.extract_strided_slice %174 {offsets = [0, 0], sizes = [8, 128], strides = [1, 1]} : vector<8x384xf32> to vector<8x128xf32>
    %179 = arith.addf %177, %178 : vector<8x128xf32>
    %180 = arith.negf %179 : vector<8x128xf32>
    %181 = math.exp %180 : vector<8x128xf32>
    %cst_80 = arith.constant 1.000000e+00 : f32
    %182 = vector.broadcast %cst_80 : f32 to vector<8x128xf32>
    %183 = arith.addf %182, %181 : vector<8x128xf32>
    %184 = arith.divf %182, %183 : vector<8x128xf32>
    %185 = vector.extract_strided_slice %171 {offsets = [0, 128], sizes = [8, 128], strides = [1, 1]} : vector<8x384xf32> to vector<8x128xf32>
    %186 = vector.extract_strided_slice %174 {offsets = [0, 128], sizes = [8, 128], strides = [1, 1]} : vector<8x384xf32> to vector<8x128xf32>
    %187 = arith.addf %185, %186 : vector<8x128xf32>
    %188 = arith.negf %187 : vector<8x128xf32>
    %189 = math.exp %188 : vector<8x128xf32>
    %cst_81 = arith.constant 1.000000e+00 : f32
    %190 = vector.broadcast %cst_81 : f32 to vector<8x128xf32>
    %191 = arith.addf %190, %189 : vector<8x128xf32>
    %192 = arith.divf %190, %191 : vector<8x128xf32>
    %193 = vector.extract_strided_slice %171 {offsets = [0, 256], sizes = [8, 128], strides = [1, 1]} : vector<8x384xf32> to vector<8x128xf32>
    %194 = vector.extract_strided_slice %174 {offsets = [0, 256], sizes = [8, 128], strides = [1, 1]} : vector<8x384xf32> to vector<8x128xf32>
    %195 = vector.broadcast %176 : vector<1x128xf32> to vector<8x128xf32>
    %196 = arith.addf %194, %195 : vector<8x128xf32>
    %197 = arith.mulf %184, %196 : vector<8x128xf32>
    %198 = arith.addf %193, %197 : vector<8x128xf32>
    %199 = math.tanh %198 : vector<8x128xf32>
    %cst_82 = arith.constant 1.000000e+00 : f32
    %200 = vector.broadcast %cst_82 : f32 to vector<8x128xf32>
    %201 = arith.subf %200, %192 : vector<8x128xf32>
    %202 = arith.mulf %201, %199 : vector<8x128xf32>
    %203 = arith.mulf %192, %127 : vector<8x128xf32>
    %204 = arith.addf %202, %203 : vector<8x128xf32>
    %c0_83 = arith.constant 0 : index
    %c0_84 = arith.constant 0 : index
    %c0_85 = arith.constant 0 : index
    %205 = vector.load %arg4[%c0_83, %c0_84, %c0_85] : memref<1x128x384xf32, #tpu.memory_space<vmem>>, vector<1x128x384xf32>
    %206 = vector.shape_cast %205 : vector<1x128x384xf32> to vector<128x384xf32>
    %cst_86 = arith.constant dense<0.000000e+00> : vector<8x384xf32>
    %207 = tpu.matmul %204, %206, %cst_86 {dimension_numbers = #tpu.dot_dimension_numbers<[1], [0], [0], [1], [0, 0, 1, 1], [], []>} : vector<8x128xf32>, vector<128x384xf32>, vector<8x384xf32> -> vector<8x384xf32>
    %c0_87 = arith.constant 0 : index
    %c0_88 = arith.constant 0 : index
    %c0_89 = arith.constant 0 : index
    %208 = vector.load %arg5[%c0_87, %c0_88, %c0_89] : memref<1x1x384xf32, #tpu.memory_space<vmem>>, vector<1x1x384xf32>
    %209 = vector.shape_cast %208 : vector<1x1x384xf32> to vector<1x384xf32>
    %210 = vector.broadcast %209 : vector<1x384xf32> to vector<8x384xf32>
    %211 = arith.addf %207, %210 : vector<8x384xf32>
    %c1_90 = arith.constant 1 : index
    %c0_91 = arith.constant 0 : index
    %c0_92 = arith.constant 0 : index
    %212 = vector.load %arg6[%c1_90, %c0_91, %c0_92] : memref<2x128x384xf32, #tpu.memory_space<vmem>>, vector<1x128x384xf32>
    %213 = vector.shape_cast %212 : vector<1x128x384xf32> to vector<128x384xf32>
    %cst_93 = arith.constant dense<0.000000e+00> : vector<8x384xf32>
    %214 = tpu.matmul %167, %213, %cst_93 {dimension_numbers = #tpu.dot_dimension_numbers<[1], [0], [0], [1], [0, 0, 1, 1], [], []>} : vector<8x128xf32>, vector<128x384xf32>, vector<8x384xf32> -> vector<8x384xf32>
    %c1_94 = arith.constant 1 : index
    %c0_95 = arith.constant 0 : index
    %c0_96 = arith.constant 0 : index
    %215 = vector.load %arg7[%c1_94, %c0_95, %c0_96] : memref<2x1x128xf32, #tpu.memory_space<vmem>>, vector<1x1x128xf32>
    %216 = vector.shape_cast %215 : vector<1x1x128xf32> to vector<1x128xf32>
    %217 = vector.extract_strided_slice %211 {offsets = [0, 0], sizes = [8, 128], strides = [1, 1]} : vector<8x384xf32> to vector<8x128xf32>
    %218 = vector.extract_strided_slice %214 {offsets = [0, 0], sizes = [8, 128], strides = [1, 1]} : vector<8x384xf32> to vector<8x128xf32>
    %219 = arith.addf %217, %218 : vector<8x128xf32>
    %220 = arith.negf %219 : vector<8x128xf32>
    %221 = math.exp %220 : vector<8x128xf32>
    %cst_97 = arith.constant 1.000000e+00 : f32
    %222 = vector.broadcast %cst_97 : f32 to vector<8x128xf32>
    %223 = arith.addf %222, %221 : vector<8x128xf32>
    %224 = arith.divf %222, %223 : vector<8x128xf32>
    %225 = vector.extract_strided_slice %211 {offsets = [0, 128], sizes = [8, 128], strides = [1, 1]} : vector<8x384xf32> to vector<8x128xf32>
    %226 = vector.extract_strided_slice %214 {offsets = [0, 128], sizes = [8, 128], strides = [1, 1]} : vector<8x384xf32> to vector<8x128xf32>
    %227 = arith.addf %225, %226 : vector<8x128xf32>
    %228 = arith.negf %227 : vector<8x128xf32>
    %229 = math.exp %228 : vector<8x128xf32>
    %cst_98 = arith.constant 1.000000e+00 : f32
    %230 = vector.broadcast %cst_98 : f32 to vector<8x128xf32>
    %231 = arith.addf %230, %229 : vector<8x128xf32>
    %232 = arith.divf %230, %231 : vector<8x128xf32>
    %233 = vector.extract_strided_slice %211 {offsets = [0, 256], sizes = [8, 128], strides = [1, 1]} : vector<8x384xf32> to vector<8x128xf32>
    %234 = vector.extract_strided_slice %214 {offsets = [0, 256], sizes = [8, 128], strides = [1, 1]} : vector<8x384xf32> to vector<8x128xf32>
    %235 = vector.broadcast %216 : vector<1x128xf32> to vector<8x128xf32>
    %236 = arith.addf %234, %235 : vector<8x128xf32>
    %237 = arith.mulf %224, %236 : vector<8x128xf32>
    %238 = arith.addf %233, %237 : vector<8x128xf32>
    %239 = math.tanh %238 : vector<8x128xf32>
    %cst_99 = arith.constant 1.000000e+00 : f32
    %240 = vector.broadcast %cst_99 : f32 to vector<8x128xf32>
    %241 = arith.subf %240, %232 : vector<8x128xf32>
    %242 = arith.mulf %241, %239 : vector<8x128xf32>
    %243 = arith.mulf %232, %167 : vector<8x128xf32>
    %244 = arith.addf %242, %243 : vector<8x128xf32>
    %c3_i32 = arith.constant 3 : i32
    %c8_i32_100 = arith.constant 8 : i32
    %245 = arith.muli %c3_i32, %c8_i32_100 : i32
    %246 = tpu.assume_multiple %245, 8 : i32
    %247 = arith.index_cast %246 : i32 to index
    %c0_101 = arith.constant 0 : index
    %248 = vector.load %arg12[%247, %c0_101] : memref<64x384xf32, #tpu.memory_space<vmem>>, vector<8x384xf32>
    %c0_102 = arith.constant 0 : index
    %c0_103 = arith.constant 0 : index
    %c0_104 = arith.constant 0 : index
    %249 = vector.load %arg6[%c0_102, %c0_103, %c0_104] : memref<2x128x384xf32, #tpu.memory_space<vmem>>, vector<1x128x384xf32>
    %250 = vector.shape_cast %249 : vector<1x128x384xf32> to vector<128x384xf32>
    %cst_105 = arith.constant dense<0.000000e+00> : vector<8x384xf32>
    %251 = tpu.matmul %204, %250, %cst_105 {dimension_numbers = #tpu.dot_dimension_numbers<[1], [0], [0], [1], [0, 0, 1, 1], [], []>} : vector<8x128xf32>, vector<128x384xf32>, vector<8x384xf32> -> vector<8x384xf32>
    %c0_106 = arith.constant 0 : index
    %c0_107 = arith.constant 0 : index
    %c0_108 = arith.constant 0 : index
    %252 = vector.load %arg7[%c0_106, %c0_107, %c0_108] : memref<2x1x128xf32, #tpu.memory_space<vmem>>, vector<1x1x128xf32>
    %253 = vector.shape_cast %252 : vector<1x1x128xf32> to vector<1x128xf32>
    %254 = vector.extract_strided_slice %248 {offsets = [0, 0], sizes = [8, 128], strides = [1, 1]} : vector<8x384xf32> to vector<8x128xf32>
    %255 = vector.extract_strided_slice %251 {offsets = [0, 0], sizes = [8, 128], strides = [1, 1]} : vector<8x384xf32> to vector<8x128xf32>
    %256 = arith.addf %254, %255 : vector<8x128xf32>
    %257 = arith.negf %256 : vector<8x128xf32>
    %258 = math.exp %257 : vector<8x128xf32>
    %cst_109 = arith.constant 1.000000e+00 : f32
    %259 = vector.broadcast %cst_109 : f32 to vector<8x128xf32>
    %260 = arith.addf %259, %258 : vector<8x128xf32>
    %261 = arith.divf %259, %260 : vector<8x128xf32>
    %262 = vector.extract_strided_slice %248 {offsets = [0, 128], sizes = [8, 128], strides = [1, 1]} : vector<8x384xf32> to vector<8x128xf32>
    %263 = vector.extract_strided_slice %251 {offsets = [0, 128], sizes = [8, 128], strides = [1, 1]} : vector<8x384xf32> to vector<8x128xf32>
    %264 = arith.addf %262, %263 : vector<8x128xf32>
    %265 = arith.negf %264 : vector<8x128xf32>
    %266 = math.exp %265 : vector<8x128xf32>
    %cst_110 = arith.constant 1.000000e+00 : f32
    %267 = vector.broadcast %cst_110 : f32 to vector<8x128xf32>
    %268 = arith.addf %267, %266 : vector<8x128xf32>
    %269 = arith.divf %267, %268 : vector<8x128xf32>
    %270 = vector.extract_strided_slice %248 {offsets = [0, 256], sizes = [8, 128], strides = [1, 1]} : vector<8x384xf32> to vector<8x128xf32>
    %271 = vector.extract_strided_slice %251 {offsets = [0, 256], sizes = [8, 128], strides = [1, 1]} : vector<8x384xf32> to vector<8x128xf32>
    %272 = vector.broadcast %253 : vector<1x128xf32> to vector<8x128xf32>
    %273 = arith.addf %271, %272 : vector<8x128xf32>
    %274 = arith.mulf %261, %273 : vector<8x128xf32>
    %275 = arith.addf %270, %274 : vector<8x128xf32>
    %276 = math.tanh %275 : vector<8x128xf32>
    %cst_111 = arith.constant 1.000000e+00 : f32
    %277 = vector.broadcast %cst_111 : f32 to vector<8x128xf32>
    %278 = arith.subf %277, %269 : vector<8x128xf32>
    %279 = arith.mulf %278, %276 : vector<8x128xf32>
    %280 = arith.mulf %269, %204 : vector<8x128xf32>
    %281 = arith.addf %279, %280 : vector<8x128xf32>
    %c0_112 = arith.constant 0 : index
    %c0_113 = arith.constant 0 : index
    %c0_114 = arith.constant 0 : index
    %282 = vector.load %arg4[%c0_112, %c0_113, %c0_114] : memref<1x128x384xf32, #tpu.memory_space<vmem>>, vector<1x128x384xf32>
    %283 = vector.shape_cast %282 : vector<1x128x384xf32> to vector<128x384xf32>
    %cst_115 = arith.constant dense<0.000000e+00> : vector<8x384xf32>
    %284 = tpu.matmul %281, %283, %cst_115 {dimension_numbers = #tpu.dot_dimension_numbers<[1], [0], [0], [1], [0, 0, 1, 1], [], []>} : vector<8x128xf32>, vector<128x384xf32>, vector<8x384xf32> -> vector<8x384xf32>
    %c0_116 = arith.constant 0 : index
    %c0_117 = arith.constant 0 : index
    %c0_118 = arith.constant 0 : index
    %285 = vector.load %arg5[%c0_116, %c0_117, %c0_118] : memref<1x1x384xf32, #tpu.memory_space<vmem>>, vector<1x1x384xf32>
    %286 = vector.shape_cast %285 : vector<1x1x384xf32> to vector<1x384xf32>
    %287 = vector.broadcast %286 : vector<1x384xf32> to vector<8x384xf32>
    %288 = arith.addf %284, %287 : vector<8x384xf32>
    %c1_119 = arith.constant 1 : index
    %c0_120 = arith.constant 0 : index
    %c0_121 = arith.constant 0 : index
    %289 = vector.load %arg6[%c1_119, %c0_120, %c0_121] : memref<2x128x384xf32, #tpu.memory_space<vmem>>, vector<1x128x384xf32>
    %290 = vector.shape_cast %289 : vector<1x128x384xf32> to vector<128x384xf32>
    %cst_122 = arith.constant dense<0.000000e+00> : vector<8x384xf32>
    %291 = tpu.matmul %244, %290, %cst_122 {dimension_numbers = #tpu.dot_dimension_numbers<[1], [0], [0], [1], [0, 0, 1, 1], [], []>} : vector<8x128xf32>, vector<128x384xf32>, vector<8x384xf32> -> vector<8x384xf32>
    %c1_123 = arith.constant 1 : index
    %c0_124 = arith.constant 0 : index
    %c0_125 = arith.constant 0 : index
    %292 = vector.load %arg7[%c1_123, %c0_124, %c0_125] : memref<2x1x128xf32, #tpu.memory_space<vmem>>, vector<1x1x128xf32>
    %293 = vector.shape_cast %292 : vector<1x1x128xf32> to vector<1x128xf32>
    %294 = vector.extract_strided_slice %288 {offsets = [0, 0], sizes = [8, 128], strides = [1, 1]} : vector<8x384xf32> to vector<8x128xf32>
    %295 = vector.extract_strided_slice %291 {offsets = [0, 0], sizes = [8, 128], strides = [1, 1]} : vector<8x384xf32> to vector<8x128xf32>
    %296 = arith.addf %294, %295 : vector<8x128xf32>
    %297 = arith.negf %296 : vector<8x128xf32>
    %298 = math.exp %297 : vector<8x128xf32>
    %cst_126 = arith.constant 1.000000e+00 : f32
    %299 = vector.broadcast %cst_126 : f32 to vector<8x128xf32>
    %300 = arith.addf %299, %298 : vector<8x128xf32>
    %301 = arith.divf %299, %300 : vector<8x128xf32>
    %302 = vector.extract_strided_slice %288 {offsets = [0, 128], sizes = [8, 128], strides = [1, 1]} : vector<8x384xf32> to vector<8x128xf32>
    %303 = vector.extract_strided_slice %291 {offsets = [0, 128], sizes = [8, 128], strides = [1, 1]} : vector<8x384xf32> to vector<8x128xf32>
    %304 = arith.addf %302, %303 : vector<8x128xf32>
    %305 = arith.negf %304 : vector<8x128xf32>
    %306 = math.exp %305 : vector<8x128xf32>
    %cst_127 = arith.constant 1.000000e+00 : f32
    %307 = vector.broadcast %cst_127 : f32 to vector<8x128xf32>
    %308 = arith.addf %307, %306 : vector<8x128xf32>
    %309 = arith.divf %307, %308 : vector<8x128xf32>
    %310 = vector.extract_strided_slice %288 {offsets = [0, 256], sizes = [8, 128], strides = [1, 1]} : vector<8x384xf32> to vector<8x128xf32>
    %311 = vector.extract_strided_slice %291 {offsets = [0, 256], sizes = [8, 128], strides = [1, 1]} : vector<8x384xf32> to vector<8x128xf32>
    %312 = vector.broadcast %293 : vector<1x128xf32> to vector<8x128xf32>
    %313 = arith.addf %311, %312 : vector<8x128xf32>
    %314 = arith.mulf %301, %313 : vector<8x128xf32>
    %315 = arith.addf %310, %314 : vector<8x128xf32>
    %316 = math.tanh %315 : vector<8x128xf32>
    %cst_128 = arith.constant 1.000000e+00 : f32
    %317 = vector.broadcast %cst_128 : f32 to vector<8x128xf32>
    %318 = arith.subf %317, %309 : vector<8x128xf32>
    %319 = arith.mulf %318, %316 : vector<8x128xf32>
    %320 = arith.mulf %309, %244 : vector<8x128xf32>
    %321 = arith.addf %319, %320 : vector<8x128xf32>
    %c4_i32 = arith.constant 4 : i32
    %c8_i32_129 = arith.constant 8 : i32
    %322 = arith.muli %c4_i32, %c8_i32_129 : i32
    %323 = tpu.assume_multiple %322, 8 : i32
    %324 = arith.index_cast %323 : i32 to index
    %c0_130 = arith.constant 0 : index
    %325 = vector.load %arg12[%324, %c0_130] : memref<64x384xf32, #tpu.memory_space<vmem>>, vector<8x384xf32>
    %c0_131 = arith.constant 0 : index
    %c0_132 = arith.constant 0 : index
    %c0_133 = arith.constant 0 : index
    %326 = vector.load %arg6[%c0_131, %c0_132, %c0_133] : memref<2x128x384xf32, #tpu.memory_space<vmem>>, vector<1x128x384xf32>
    %327 = vector.shape_cast %326 : vector<1x128x384xf32> to vector<128x384xf32>
    %cst_134 = arith.constant dense<0.000000e+00> : vector<8x384xf32>
    %328 = tpu.matmul %281, %327, %cst_134 {dimension_numbers = #tpu.dot_dimension_numbers<[1], [0], [0], [1], [0, 0, 1, 1], [], []>} : vector<8x128xf32>, vector<128x384xf32>, vector<8x384xf32> -> vector<8x384xf32>
    %c0_135 = arith.constant 0 : index
    %c0_136 = arith.constant 0 : index
    %c0_137 = arith.constant 0 : index
    %329 = vector.load %arg7[%c0_135, %c0_136, %c0_137] : memref<2x1x128xf32, #tpu.memory_space<vmem>>, vector<1x1x128xf32>
    %330 = vector.shape_cast %329 : vector<1x1x128xf32> to vector<1x128xf32>
    %331 = vector.extract_strided_slice %325 {offsets = [0, 0], sizes = [8, 128], strides = [1, 1]} : vector<8x384xf32> to vector<8x128xf32>
    %332 = vector.extract_strided_slice %328 {offsets = [0, 0], sizes = [8, 128], strides = [1, 1]} : vector<8x384xf32> to vector<8x128xf32>
    %333 = arith.addf %331, %332 : vector<8x128xf32>
    %334 = arith.negf %333 : vector<8x128xf32>
    %335 = math.exp %334 : vector<8x128xf32>
    %cst_138 = arith.constant 1.000000e+00 : f32
    %336 = vector.broadcast %cst_138 : f32 to vector<8x128xf32>
    %337 = arith.addf %336, %335 : vector<8x128xf32>
    %338 = arith.divf %336, %337 : vector<8x128xf32>
    %339 = vector.extract_strided_slice %325 {offsets = [0, 128], sizes = [8, 128], strides = [1, 1]} : vector<8x384xf32> to vector<8x128xf32>
    %340 = vector.extract_strided_slice %328 {offsets = [0, 128], sizes = [8, 128], strides = [1, 1]} : vector<8x384xf32> to vector<8x128xf32>
    %341 = arith.addf %339, %340 : vector<8x128xf32>
    %342 = arith.negf %341 : vector<8x128xf32>
    %343 = math.exp %342 : vector<8x128xf32>
    %cst_139 = arith.constant 1.000000e+00 : f32
    %344 = vector.broadcast %cst_139 : f32 to vector<8x128xf32>
    %345 = arith.addf %344, %343 : vector<8x128xf32>
    %346 = arith.divf %344, %345 : vector<8x128xf32>
    %347 = vector.extract_strided_slice %325 {offsets = [0, 256], sizes = [8, 128], strides = [1, 1]} : vector<8x384xf32> to vector<8x128xf32>
    %348 = vector.extract_strided_slice %328 {offsets = [0, 256], sizes = [8, 128], strides = [1, 1]} : vector<8x384xf32> to vector<8x128xf32>
    %349 = vector.broadcast %330 : vector<1x128xf32> to vector<8x128xf32>
    %350 = arith.addf %348, %349 : vector<8x128xf32>
    %351 = arith.mulf %338, %350 : vector<8x128xf32>
    %352 = arith.addf %347, %351 : vector<8x128xf32>
    %353 = math.tanh %352 : vector<8x128xf32>
    %cst_140 = arith.constant 1.000000e+00 : f32
    %354 = vector.broadcast %cst_140 : f32 to vector<8x128xf32>
    %355 = arith.subf %354, %346 : vector<8x128xf32>
    %356 = arith.mulf %355, %353 : vector<8x128xf32>
    %357 = arith.mulf %346, %281 : vector<8x128xf32>
    %358 = arith.addf %356, %357 : vector<8x128xf32>
    %c0_141 = arith.constant 0 : index
    %c0_142 = arith.constant 0 : index
    %c0_143 = arith.constant 0 : index
    %359 = vector.load %arg4[%c0_141, %c0_142, %c0_143] : memref<1x128x384xf32, #tpu.memory_space<vmem>>, vector<1x128x384xf32>
    %360 = vector.shape_cast %359 : vector<1x128x384xf32> to vector<128x384xf32>
    %cst_144 = arith.constant dense<0.000000e+00> : vector<8x384xf32>
    %361 = tpu.matmul %358, %360, %cst_144 {dimension_numbers = #tpu.dot_dimension_numbers<[1], [0], [0], [1], [0, 0, 1, 1], [], []>} : vector<8x128xf32>, vector<128x384xf32>, vector<8x384xf32> -> vector<8x384xf32>
    %c0_145 = arith.constant 0 : index
    %c0_146 = arith.constant 0 : index
    %c0_147 = arith.constant 0 : index
    %362 = vector.load %arg5[%c0_145, %c0_146, %c0_147] : memref<1x1x384xf32, #tpu.memory_space<vmem>>, vector<1x1x384xf32>
    %363 = vector.shape_cast %362 : vector<1x1x384xf32> to vector<1x384xf32>
    %364 = vector.broadcast %363 : vector<1x384xf32> to vector<8x384xf32>
    %365 = arith.addf %361, %364 : vector<8x384xf32>
    %c1_148 = arith.constant 1 : index
    %c0_149 = arith.constant 0 : index
    %c0_150 = arith.constant 0 : index
    %366 = vector.load %arg6[%c1_148, %c0_149, %c0_150] : memref<2x128x384xf32, #tpu.memory_space<vmem>>, vector<1x128x384xf32>
    %367 = vector.shape_cast %366 : vector<1x128x384xf32> to vector<128x384xf32>
    %cst_151 = arith.constant dense<0.000000e+00> : vector<8x384xf32>
    %368 = tpu.matmul %321, %367, %cst_151 {dimension_numbers = #tpu.dot_dimension_numbers<[1], [0], [0], [1], [0, 0, 1, 1], [], []>} : vector<8x128xf32>, vector<128x384xf32>, vector<8x384xf32> -> vector<8x384xf32>
    %c1_152 = arith.constant 1 : index
    %c0_153 = arith.constant 0 : index
    %c0_154 = arith.constant 0 : index
    %369 = vector.load %arg7[%c1_152, %c0_153, %c0_154] : memref<2x1x128xf32, #tpu.memory_space<vmem>>, vector<1x1x128xf32>
    %370 = vector.shape_cast %369 : vector<1x1x128xf32> to vector<1x128xf32>
    %371 = vector.extract_strided_slice %365 {offsets = [0, 0], sizes = [8, 128], strides = [1, 1]} : vector<8x384xf32> to vector<8x128xf32>
    %372 = vector.extract_strided_slice %368 {offsets = [0, 0], sizes = [8, 128], strides = [1, 1]} : vector<8x384xf32> to vector<8x128xf32>
    %373 = arith.addf %371, %372 : vector<8x128xf32>
    %374 = arith.negf %373 : vector<8x128xf32>
    %375 = math.exp %374 : vector<8x128xf32>
    %cst_155 = arith.constant 1.000000e+00 : f32
    %376 = vector.broadcast %cst_155 : f32 to vector<8x128xf32>
    %377 = arith.addf %376, %375 : vector<8x128xf32>
    %378 = arith.divf %376, %377 : vector<8x128xf32>
    %379 = vector.extract_strided_slice %365 {offsets = [0, 128], sizes = [8, 128], strides = [1, 1]} : vector<8x384xf32> to vector<8x128xf32>
    %380 = vector.extract_strided_slice %368 {offsets = [0, 128], sizes = [8, 128], strides = [1, 1]} : vector<8x384xf32> to vector<8x128xf32>
    %381 = arith.addf %379, %380 : vector<8x128xf32>
    %382 = arith.negf %381 : vector<8x128xf32>
    %383 = math.exp %382 : vector<8x128xf32>
    %cst_156 = arith.constant 1.000000e+00 : f32
    %384 = vector.broadcast %cst_156 : f32 to vector<8x128xf32>
    %385 = arith.addf %384, %383 : vector<8x128xf32>
    %386 = arith.divf %384, %385 : vector<8x128xf32>
    %387 = vector.extract_strided_slice %365 {offsets = [0, 256], sizes = [8, 128], strides = [1, 1]} : vector<8x384xf32> to vector<8x128xf32>
    %388 = vector.extract_strided_slice %368 {offsets = [0, 256], sizes = [8, 128], strides = [1, 1]} : vector<8x384xf32> to vector<8x128xf32>
    %389 = vector.broadcast %370 : vector<1x128xf32> to vector<8x128xf32>
    %390 = arith.addf %388, %389 : vector<8x128xf32>
    %391 = arith.mulf %378, %390 : vector<8x128xf32>
    %392 = arith.addf %387, %391 : vector<8x128xf32>
    %393 = math.tanh %392 : vector<8x128xf32>
    %cst_157 = arith.constant 1.000000e+00 : f32
    %394 = vector.broadcast %cst_157 : f32 to vector<8x128xf32>
    %395 = arith.subf %394, %386 : vector<8x128xf32>
    %396 = arith.mulf %395, %393 : vector<8x128xf32>
    %397 = arith.mulf %386, %321 : vector<8x128xf32>
    %398 = arith.addf %396, %397 : vector<8x128xf32>
    %c5_i32 = arith.constant 5 : i32
    %c8_i32_158 = arith.constant 8 : i32
    %399 = arith.muli %c5_i32, %c8_i32_158 : i32
    %400 = tpu.assume_multiple %399, 8 : i32
    %401 = arith.index_cast %400 : i32 to index
    %c0_159 = arith.constant 0 : index
    %402 = vector.load %arg12[%401, %c0_159] : memref<64x384xf32, #tpu.memory_space<vmem>>, vector<8x384xf32>
    %c0_160 = arith.constant 0 : index
    %c0_161 = arith.constant 0 : index
    %c0_162 = arith.constant 0 : index
    %403 = vector.load %arg6[%c0_160, %c0_161, %c0_162] : memref<2x128x384xf32, #tpu.memory_space<vmem>>, vector<1x128x384xf32>
    %404 = vector.shape_cast %403 : vector<1x128x384xf32> to vector<128x384xf32>
    %cst_163 = arith.constant dense<0.000000e+00> : vector<8x384xf32>
    %405 = tpu.matmul %358, %404, %cst_163 {dimension_numbers = #tpu.dot_dimension_numbers<[1], [0], [0], [1], [0, 0, 1, 1], [], []>} : vector<8x128xf32>, vector<128x384xf32>, vector<8x384xf32> -> vector<8x384xf32>
    %c0_164 = arith.constant 0 : index
    %c0_165 = arith.constant 0 : index
    %c0_166 = arith.constant 0 : index
    %406 = vector.load %arg7[%c0_164, %c0_165, %c0_166] : memref<2x1x128xf32, #tpu.memory_space<vmem>>, vector<1x1x128xf32>
    %407 = vector.shape_cast %406 : vector<1x1x128xf32> to vector<1x128xf32>
    %408 = vector.extract_strided_slice %402 {offsets = [0, 0], sizes = [8, 128], strides = [1, 1]} : vector<8x384xf32> to vector<8x128xf32>
    %409 = vector.extract_strided_slice %405 {offsets = [0, 0], sizes = [8, 128], strides = [1, 1]} : vector<8x384xf32> to vector<8x128xf32>
    %410 = arith.addf %408, %409 : vector<8x128xf32>
    %411 = arith.negf %410 : vector<8x128xf32>
    %412 = math.exp %411 : vector<8x128xf32>
    %cst_167 = arith.constant 1.000000e+00 : f32
    %413 = vector.broadcast %cst_167 : f32 to vector<8x128xf32>
    %414 = arith.addf %413, %412 : vector<8x128xf32>
    %415 = arith.divf %413, %414 : vector<8x128xf32>
    %416 = vector.extract_strided_slice %402 {offsets = [0, 128], sizes = [8, 128], strides = [1, 1]} : vector<8x384xf32> to vector<8x128xf32>
    %417 = vector.extract_strided_slice %405 {offsets = [0, 128], sizes = [8, 128], strides = [1, 1]} : vector<8x384xf32> to vector<8x128xf32>
    %418 = arith.addf %416, %417 : vector<8x128xf32>
    %419 = arith.negf %418 : vector<8x128xf32>
    %420 = math.exp %419 : vector<8x128xf32>
    %cst_168 = arith.constant 1.000000e+00 : f32
    %421 = vector.broadcast %cst_168 : f32 to vector<8x128xf32>
    %422 = arith.addf %421, %420 : vector<8x128xf32>
    %423 = arith.divf %421, %422 : vector<8x128xf32>
    %424 = vector.extract_strided_slice %402 {offsets = [0, 256], sizes = [8, 128], strides = [1, 1]} : vector<8x384xf32> to vector<8x128xf32>
    %425 = vector.extract_strided_slice %405 {offsets = [0, 256], sizes = [8, 128], strides = [1, 1]} : vector<8x384xf32> to vector<8x128xf32>
    %426 = vector.broadcast %407 : vector<1x128xf32> to vector<8x128xf32>
    %427 = arith.addf %425, %426 : vector<8x128xf32>
    %428 = arith.mulf %415, %427 : vector<8x128xf32>
    %429 = arith.addf %424, %428 : vector<8x128xf32>
    %430 = math.tanh %429 : vector<8x128xf32>
    %cst_169 = arith.constant 1.000000e+00 : f32
    %431 = vector.broadcast %cst_169 : f32 to vector<8x128xf32>
    %432 = arith.subf %431, %423 : vector<8x128xf32>
    %433 = arith.mulf %432, %430 : vector<8x128xf32>
    %434 = arith.mulf %423, %358 : vector<8x128xf32>
    %435 = arith.addf %433, %434 : vector<8x128xf32>
    %c0_170 = arith.constant 0 : index
    %c0_171 = arith.constant 0 : index
    %c0_172 = arith.constant 0 : index
    %436 = vector.load %arg4[%c0_170, %c0_171, %c0_172] : memref<1x128x384xf32, #tpu.memory_space<vmem>>, vector<1x128x384xf32>
    %437 = vector.shape_cast %436 : vector<1x128x384xf32> to vector<128x384xf32>
    %cst_173 = arith.constant dense<0.000000e+00> : vector<8x384xf32>
    %438 = tpu.matmul %435, %437, %cst_173 {dimension_numbers = #tpu.dot_dimension_numbers<[1], [0], [0], [1], [0, 0, 1, 1], [], []>} : vector<8x128xf32>, vector<128x384xf32>, vector<8x384xf32> -> vector<8x384xf32>
    %c0_174 = arith.constant 0 : index
    %c0_175 = arith.constant 0 : index
    %c0_176 = arith.constant 0 : index
    %439 = vector.load %arg5[%c0_174, %c0_175, %c0_176] : memref<1x1x384xf32, #tpu.memory_space<vmem>>, vector<1x1x384xf32>
    %440 = vector.shape_cast %439 : vector<1x1x384xf32> to vector<1x384xf32>
    %441 = vector.broadcast %440 : vector<1x384xf32> to vector<8x384xf32>
    %442 = arith.addf %438, %441 : vector<8x384xf32>
    %c1_177 = arith.constant 1 : index
    %c0_178 = arith.constant 0 : index
    %c0_179 = arith.constant 0 : index
    %443 = vector.load %arg6[%c1_177, %c0_178, %c0_179] : memref<2x128x384xf32, #tpu.memory_space<vmem>>, vector<1x128x384xf32>
    %444 = vector.shape_cast %443 : vector<1x128x384xf32> to vector<128x384xf32>
    %cst_180 = arith.constant dense<0.000000e+00> : vector<8x384xf32>
    %445 = tpu.matmul %398, %444, %cst_180 {dimension_numbers = #tpu.dot_dimension_numbers<[1], [0], [0], [1], [0, 0, 1, 1], [], []>} : vector<8x128xf32>, vector<128x384xf32>, vector<8x384xf32> -> vector<8x384xf32>
    %c1_181 = arith.constant 1 : index
    %c0_182 = arith.constant 0 : index
    %c0_183 = arith.constant 0 : index
    %446 = vector.load %arg7[%c1_181, %c0_182, %c0_183] : memref<2x1x128xf32, #tpu.memory_space<vmem>>, vector<1x1x128xf32>
    %447 = vector.shape_cast %446 : vector<1x1x128xf32> to vector<1x128xf32>
    %448 = vector.extract_strided_slice %442 {offsets = [0, 0], sizes = [8, 128], strides = [1, 1]} : vector<8x384xf32> to vector<8x128xf32>
    %449 = vector.extract_strided_slice %445 {offsets = [0, 0], sizes = [8, 128], strides = [1, 1]} : vector<8x384xf32> to vector<8x128xf32>
    %450 = arith.addf %448, %449 : vector<8x128xf32>
    %451 = arith.negf %450 : vector<8x128xf32>
    %452 = math.exp %451 : vector<8x128xf32>
    %cst_184 = arith.constant 1.000000e+00 : f32
    %453 = vector.broadcast %cst_184 : f32 to vector<8x128xf32>
    %454 = arith.addf %453, %452 : vector<8x128xf32>
    %455 = arith.divf %453, %454 : vector<8x128xf32>
    %456 = vector.extract_strided_slice %442 {offsets = [0, 128], sizes = [8, 128], strides = [1, 1]} : vector<8x384xf32> to vector<8x128xf32>
    %457 = vector.extract_strided_slice %445 {offsets = [0, 128], sizes = [8, 128], strides = [1, 1]} : vector<8x384xf32> to vector<8x128xf32>
    %458 = arith.addf %456, %457 : vector<8x128xf32>
    %459 = arith.negf %458 : vector<8x128xf32>
    %460 = math.exp %459 : vector<8x128xf32>
    %cst_185 = arith.constant 1.000000e+00 : f32
    %461 = vector.broadcast %cst_185 : f32 to vector<8x128xf32>
    %462 = arith.addf %461, %460 : vector<8x128xf32>
    %463 = arith.divf %461, %462 : vector<8x128xf32>
    %464 = vector.extract_strided_slice %442 {offsets = [0, 256], sizes = [8, 128], strides = [1, 1]} : vector<8x384xf32> to vector<8x128xf32>
    %465 = vector.extract_strided_slice %445 {offsets = [0, 256], sizes = [8, 128], strides = [1, 1]} : vector<8x384xf32> to vector<8x128xf32>
    %466 = vector.broadcast %447 : vector<1x128xf32> to vector<8x128xf32>
    %467 = arith.addf %465, %466 : vector<8x128xf32>
    %468 = arith.mulf %455, %467 : vector<8x128xf32>
    %469 = arith.addf %464, %468 : vector<8x128xf32>
    %470 = math.tanh %469 : vector<8x128xf32>
    %cst_186 = arith.constant 1.000000e+00 : f32
    %471 = vector.broadcast %cst_186 : f32 to vector<8x128xf32>
    %472 = arith.subf %471, %463 : vector<8x128xf32>
    %473 = arith.mulf %472, %470 : vector<8x128xf32>
    %474 = arith.mulf %463, %398 : vector<8x128xf32>
    %475 = arith.addf %473, %474 : vector<8x128xf32>
    %c6_i32 = arith.constant 6 : i32
    %c8_i32_187 = arith.constant 8 : i32
    %476 = arith.muli %c6_i32, %c8_i32_187 : i32
    %477 = tpu.assume_multiple %476, 8 : i32
    %478 = arith.index_cast %477 : i32 to index
    %c0_188 = arith.constant 0 : index
    %479 = vector.load %arg12[%478, %c0_188] : memref<64x384xf32, #tpu.memory_space<vmem>>, vector<8x384xf32>
    %c0_189 = arith.constant 0 : index
    %c0_190 = arith.constant 0 : index
    %c0_191 = arith.constant 0 : index
    %480 = vector.load %arg6[%c0_189, %c0_190, %c0_191] : memref<2x128x384xf32, #tpu.memory_space<vmem>>, vector<1x128x384xf32>
    %481 = vector.shape_cast %480 : vector<1x128x384xf32> to vector<128x384xf32>
    %cst_192 = arith.constant dense<0.000000e+00> : vector<8x384xf32>
    %482 = tpu.matmul %435, %481, %cst_192 {dimension_numbers = #tpu.dot_dimension_numbers<[1], [0], [0], [1], [0, 0, 1, 1], [], []>} : vector<8x128xf32>, vector<128x384xf32>, vector<8x384xf32> -> vector<8x384xf32>
    %c0_193 = arith.constant 0 : index
    %c0_194 = arith.constant 0 : index
    %c0_195 = arith.constant 0 : index
    %483 = vector.load %arg7[%c0_193, %c0_194, %c0_195] : memref<2x1x128xf32, #tpu.memory_space<vmem>>, vector<1x1x128xf32>
    %484 = vector.shape_cast %483 : vector<1x1x128xf32> to vector<1x128xf32>
    %485 = vector.extract_strided_slice %479 {offsets = [0, 0], sizes = [8, 128], strides = [1, 1]} : vector<8x384xf32> to vector<8x128xf32>
    %486 = vector.extract_strided_slice %482 {offsets = [0, 0], sizes = [8, 128], strides = [1, 1]} : vector<8x384xf32> to vector<8x128xf32>
    %487 = arith.addf %485, %486 : vector<8x128xf32>
    %488 = arith.negf %487 : vector<8x128xf32>
    %489 = math.exp %488 : vector<8x128xf32>
    %cst_196 = arith.constant 1.000000e+00 : f32
    %490 = vector.broadcast %cst_196 : f32 to vector<8x128xf32>
    %491 = arith.addf %490, %489 : vector<8x128xf32>
    %492 = arith.divf %490, %491 : vector<8x128xf32>
    %493 = vector.extract_strided_slice %479 {offsets = [0, 128], sizes = [8, 128], strides = [1, 1]} : vector<8x384xf32> to vector<8x128xf32>
    %494 = vector.extract_strided_slice %482 {offsets = [0, 128], sizes = [8, 128], strides = [1, 1]} : vector<8x384xf32> to vector<8x128xf32>
    %495 = arith.addf %493, %494 : vector<8x128xf32>
    %496 = arith.negf %495 : vector<8x128xf32>
    %497 = math.exp %496 : vector<8x128xf32>
    %cst_197 = arith.constant 1.000000e+00 : f32
    %498 = vector.broadcast %cst_197 : f32 to vector<8x128xf32>
    %499 = arith.addf %498, %497 : vector<8x128xf32>
    %500 = arith.divf %498, %499 : vector<8x128xf32>
    %501 = vector.extract_strided_slice %479 {offsets = [0, 256], sizes = [8, 128], strides = [1, 1]} : vector<8x384xf32> to vector<8x128xf32>
    %502 = vector.extract_strided_slice %482 {offsets = [0, 256], sizes = [8, 128], strides = [1, 1]} : vector<8x384xf32> to vector<8x128xf32>
    %503 = vector.broadcast %484 : vector<1x128xf32> to vector<8x128xf32>
    %504 = arith.addf %502, %503 : vector<8x128xf32>
    %505 = arith.mulf %492, %504 : vector<8x128xf32>
    %506 = arith.addf %501, %505 : vector<8x128xf32>
    %507 = math.tanh %506 : vector<8x128xf32>
    %cst_198 = arith.constant 1.000000e+00 : f32
    %508 = vector.broadcast %cst_198 : f32 to vector<8x128xf32>
    %509 = arith.subf %508, %500 : vector<8x128xf32>
    %510 = arith.mulf %509, %507 : vector<8x128xf32>
    %511 = arith.mulf %500, %435 : vector<8x128xf32>
    %512 = arith.addf %510, %511 : vector<8x128xf32>
    %c0_199 = arith.constant 0 : index
    %c0_200 = arith.constant 0 : index
    %c0_201 = arith.constant 0 : index
    %513 = vector.load %arg4[%c0_199, %c0_200, %c0_201] : memref<1x128x384xf32, #tpu.memory_space<vmem>>, vector<1x128x384xf32>
    %514 = vector.shape_cast %513 : vector<1x128x384xf32> to vector<128x384xf32>
    %cst_202 = arith.constant dense<0.000000e+00> : vector<8x384xf32>
    %515 = tpu.matmul %512, %514, %cst_202 {dimension_numbers = #tpu.dot_dimension_numbers<[1], [0], [0], [1], [0, 0, 1, 1], [], []>} : vector<8x128xf32>, vector<128x384xf32>, vector<8x384xf32> -> vector<8x384xf32>
    %c0_203 = arith.constant 0 : index
    %c0_204 = arith.constant 0 : index
    %c0_205 = arith.constant 0 : index
    %516 = vector.load %arg5[%c0_203, %c0_204, %c0_205] : memref<1x1x384xf32, #tpu.memory_space<vmem>>, vector<1x1x384xf32>
    %517 = vector.shape_cast %516 : vector<1x1x384xf32> to vector<1x384xf32>
    %518 = vector.broadcast %517 : vector<1x384xf32> to vector<8x384xf32>
    %519 = arith.addf %515, %518 : vector<8x384xf32>
    %c1_206 = arith.constant 1 : index
    %c0_207 = arith.constant 0 : index
    %c0_208 = arith.constant 0 : index
    %520 = vector.load %arg6[%c1_206, %c0_207, %c0_208] : memref<2x128x384xf32, #tpu.memory_space<vmem>>, vector<1x128x384xf32>
    %521 = vector.shape_cast %520 : vector<1x128x384xf32> to vector<128x384xf32>
    %cst_209 = arith.constant dense<0.000000e+00> : vector<8x384xf32>
    %522 = tpu.matmul %475, %521, %cst_209 {dimension_numbers = #tpu.dot_dimension_numbers<[1], [0], [0], [1], [0, 0, 1, 1], [], []>} : vector<8x128xf32>, vector<128x384xf32>, vector<8x384xf32> -> vector<8x384xf32>
    %c1_210 = arith.constant 1 : index
    %c0_211 = arith.constant 0 : index
    %c0_212 = arith.constant 0 : index
    %523 = vector.load %arg7[%c1_210, %c0_211, %c0_212] : memref<2x1x128xf32, #tpu.memory_space<vmem>>, vector<1x1x128xf32>
    %524 = vector.shape_cast %523 : vector<1x1x128xf32> to vector<1x128xf32>
    %525 = vector.extract_strided_slice %519 {offsets = [0, 0], sizes = [8, 128], strides = [1, 1]} : vector<8x384xf32> to vector<8x128xf32>
    %526 = vector.extract_strided_slice %522 {offsets = [0, 0], sizes = [8, 128], strides = [1, 1]} : vector<8x384xf32> to vector<8x128xf32>
    %527 = arith.addf %525, %526 : vector<8x128xf32>
    %528 = arith.negf %527 : vector<8x128xf32>
    %529 = math.exp %528 : vector<8x128xf32>
    %cst_213 = arith.constant 1.000000e+00 : f32
    %530 = vector.broadcast %cst_213 : f32 to vector<8x128xf32>
    %531 = arith.addf %530, %529 : vector<8x128xf32>
    %532 = arith.divf %530, %531 : vector<8x128xf32>
    %533 = vector.extract_strided_slice %519 {offsets = [0, 128], sizes = [8, 128], strides = [1, 1]} : vector<8x384xf32> to vector<8x128xf32>
    %534 = vector.extract_strided_slice %522 {offsets = [0, 128], sizes = [8, 128], strides = [1, 1]} : vector<8x384xf32> to vector<8x128xf32>
    %535 = arith.addf %533, %534 : vector<8x128xf32>
    %536 = arith.negf %535 : vector<8x128xf32>
    %537 = math.exp %536 : vector<8x128xf32>
    %cst_214 = arith.constant 1.000000e+00 : f32
    %538 = vector.broadcast %cst_214 : f32 to vector<8x128xf32>
    %539 = arith.addf %538, %537 : vector<8x128xf32>
    %540 = arith.divf %538, %539 : vector<8x128xf32>
    %541 = vector.extract_strided_slice %519 {offsets = [0, 256], sizes = [8, 128], strides = [1, 1]} : vector<8x384xf32> to vector<8x128xf32>
    %542 = vector.extract_strided_slice %522 {offsets = [0, 256], sizes = [8, 128], strides = [1, 1]} : vector<8x384xf32> to vector<8x128xf32>
    %543 = vector.broadcast %524 : vector<1x128xf32> to vector<8x128xf32>
    %544 = arith.addf %542, %543 : vector<8x128xf32>
    %545 = arith.mulf %532, %544 : vector<8x128xf32>
    %546 = arith.addf %541, %545 : vector<8x128xf32>
    %547 = math.tanh %546 : vector<8x128xf32>
    %cst_215 = arith.constant 1.000000e+00 : f32
    %548 = vector.broadcast %cst_215 : f32 to vector<8x128xf32>
    %549 = arith.subf %548, %540 : vector<8x128xf32>
    %550 = arith.mulf %549, %547 : vector<8x128xf32>
    %551 = arith.mulf %540, %475 : vector<8x128xf32>
    %552 = arith.addf %550, %551 : vector<8x128xf32>
    %c7_i32 = arith.constant 7 : i32
    %c8_i32_216 = arith.constant 8 : i32
    %553 = arith.muli %c7_i32, %c8_i32_216 : i32
    %554 = tpu.assume_multiple %553, 8 : i32
    %555 = arith.index_cast %554 : i32 to index
    %c0_217 = arith.constant 0 : index
    %556 = vector.load %arg12[%555, %c0_217] : memref<64x384xf32, #tpu.memory_space<vmem>>, vector<8x384xf32>
    %c0_218 = arith.constant 0 : index
    %c0_219 = arith.constant 0 : index
    %c0_220 = arith.constant 0 : index
    %557 = vector.load %arg6[%c0_218, %c0_219, %c0_220] : memref<2x128x384xf32, #tpu.memory_space<vmem>>, vector<1x128x384xf32>
    %558 = vector.shape_cast %557 : vector<1x128x384xf32> to vector<128x384xf32>
    %cst_221 = arith.constant dense<0.000000e+00> : vector<8x384xf32>
    %559 = tpu.matmul %512, %558, %cst_221 {dimension_numbers = #tpu.dot_dimension_numbers<[1], [0], [0], [1], [0, 0, 1, 1], [], []>} : vector<8x128xf32>, vector<128x384xf32>, vector<8x384xf32> -> vector<8x384xf32>
    %c0_222 = arith.constant 0 : index
    %c0_223 = arith.constant 0 : index
    %c0_224 = arith.constant 0 : index
    %560 = vector.load %arg7[%c0_222, %c0_223, %c0_224] : memref<2x1x128xf32, #tpu.memory_space<vmem>>, vector<1x1x128xf32>
    %561 = vector.shape_cast %560 : vector<1x1x128xf32> to vector<1x128xf32>
    %562 = vector.extract_strided_slice %556 {offsets = [0, 0], sizes = [8, 128], strides = [1, 1]} : vector<8x384xf32> to vector<8x128xf32>
    %563 = vector.extract_strided_slice %559 {offsets = [0, 0], sizes = [8, 128], strides = [1, 1]} : vector<8x384xf32> to vector<8x128xf32>
    %564 = arith.addf %562, %563 : vector<8x128xf32>
    %565 = arith.negf %564 : vector<8x128xf32>
    %566 = math.exp %565 : vector<8x128xf32>
    %cst_225 = arith.constant 1.000000e+00 : f32
    %567 = vector.broadcast %cst_225 : f32 to vector<8x128xf32>
    %568 = arith.addf %567, %566 : vector<8x128xf32>
    %569 = arith.divf %567, %568 : vector<8x128xf32>
    %570 = vector.extract_strided_slice %556 {offsets = [0, 128], sizes = [8, 128], strides = [1, 1]} : vector<8x384xf32> to vector<8x128xf32>
    %571 = vector.extract_strided_slice %559 {offsets = [0, 128], sizes = [8, 128], strides = [1, 1]} : vector<8x384xf32> to vector<8x128xf32>
    %572 = arith.addf %570, %571 : vector<8x128xf32>
    %573 = arith.negf %572 : vector<8x128xf32>
    %574 = math.exp %573 : vector<8x128xf32>
    %cst_226 = arith.constant 1.000000e+00 : f32
    %575 = vector.broadcast %cst_226 : f32 to vector<8x128xf32>
    %576 = arith.addf %575, %574 : vector<8x128xf32>
    %577 = arith.divf %575, %576 : vector<8x128xf32>
    %578 = vector.extract_strided_slice %556 {offsets = [0, 256], sizes = [8, 128], strides = [1, 1]} : vector<8x384xf32> to vector<8x128xf32>
    %579 = vector.extract_strided_slice %559 {offsets = [0, 256], sizes = [8, 128], strides = [1, 1]} : vector<8x384xf32> to vector<8x128xf32>
    %580 = vector.broadcast %561 : vector<1x128xf32> to vector<8x128xf32>
    %581 = arith.addf %579, %580 : vector<8x128xf32>
    %582 = arith.mulf %569, %581 : vector<8x128xf32>
    %583 = arith.addf %578, %582 : vector<8x128xf32>
    %584 = math.tanh %583 : vector<8x128xf32>
    %cst_227 = arith.constant 1.000000e+00 : f32
    %585 = vector.broadcast %cst_227 : f32 to vector<8x128xf32>
    %586 = arith.subf %585, %577 : vector<8x128xf32>
    %587 = arith.mulf %586, %584 : vector<8x128xf32>
    %588 = arith.mulf %577, %512 : vector<8x128xf32>
    %589 = arith.addf %587, %588 : vector<8x128xf32>
    %c0_228 = arith.constant 0 : index
    %c0_229 = arith.constant 0 : index
    %c0_230 = arith.constant 0 : index
    %590 = vector.load %arg4[%c0_228, %c0_229, %c0_230] : memref<1x128x384xf32, #tpu.memory_space<vmem>>, vector<1x128x384xf32>
    %591 = vector.shape_cast %590 : vector<1x128x384xf32> to vector<128x384xf32>
    %cst_231 = arith.constant dense<0.000000e+00> : vector<8x384xf32>
    %592 = tpu.matmul %589, %591, %cst_231 {dimension_numbers = #tpu.dot_dimension_numbers<[1], [0], [0], [1], [0, 0, 1, 1], [], []>} : vector<8x128xf32>, vector<128x384xf32>, vector<8x384xf32> -> vector<8x384xf32>
    %c0_232 = arith.constant 0 : index
    %c0_233 = arith.constant 0 : index
    %c0_234 = arith.constant 0 : index
    %593 = vector.load %arg5[%c0_232, %c0_233, %c0_234] : memref<1x1x384xf32, #tpu.memory_space<vmem>>, vector<1x1x384xf32>
    %594 = vector.shape_cast %593 : vector<1x1x384xf32> to vector<1x384xf32>
    %595 = vector.broadcast %594 : vector<1x384xf32> to vector<8x384xf32>
    %596 = arith.addf %592, %595 : vector<8x384xf32>
    %c1_235 = arith.constant 1 : index
    %c0_236 = arith.constant 0 : index
    %c0_237 = arith.constant 0 : index
    %597 = vector.load %arg6[%c1_235, %c0_236, %c0_237] : memref<2x128x384xf32, #tpu.memory_space<vmem>>, vector<1x128x384xf32>
    %598 = vector.shape_cast %597 : vector<1x128x384xf32> to vector<128x384xf32>
    %cst_238 = arith.constant dense<0.000000e+00> : vector<8x384xf32>
    %599 = tpu.matmul %552, %598, %cst_238 {dimension_numbers = #tpu.dot_dimension_numbers<[1], [0], [0], [1], [0, 0, 1, 1], [], []>} : vector<8x128xf32>, vector<128x384xf32>, vector<8x384xf32> -> vector<8x384xf32>
    %c1_239 = arith.constant 1 : index
    %c0_240 = arith.constant 0 : index
    %c0_241 = arith.constant 0 : index
    %600 = vector.load %arg7[%c1_239, %c0_240, %c0_241] : memref<2x1x128xf32, #tpu.memory_space<vmem>>, vector<1x1x128xf32>
    %601 = vector.shape_cast %600 : vector<1x1x128xf32> to vector<1x128xf32>
    %602 = vector.extract_strided_slice %596 {offsets = [0, 0], sizes = [8, 128], strides = [1, 1]} : vector<8x384xf32> to vector<8x128xf32>
    %603 = vector.extract_strided_slice %599 {offsets = [0, 0], sizes = [8, 128], strides = [1, 1]} : vector<8x384xf32> to vector<8x128xf32>
    %604 = arith.addf %602, %603 : vector<8x128xf32>
    %605 = arith.negf %604 : vector<8x128xf32>
    %606 = math.exp %605 : vector<8x128xf32>
    %cst_242 = arith.constant 1.000000e+00 : f32
    %607 = vector.broadcast %cst_242 : f32 to vector<8x128xf32>
    %608 = arith.addf %607, %606 : vector<8x128xf32>
    %609 = arith.divf %607, %608 : vector<8x128xf32>
    %610 = vector.extract_strided_slice %596 {offsets = [0, 128], sizes = [8, 128], strides = [1, 1]} : vector<8x384xf32> to vector<8x128xf32>
    %611 = vector.extract_strided_slice %599 {offsets = [0, 128], sizes = [8, 128], strides = [1, 1]} : vector<8x384xf32> to vector<8x128xf32>
    %612 = arith.addf %610, %611 : vector<8x128xf32>
    %613 = arith.negf %612 : vector<8x128xf32>
    %614 = math.exp %613 : vector<8x128xf32>
    %cst_243 = arith.constant 1.000000e+00 : f32
    %615 = vector.broadcast %cst_243 : f32 to vector<8x128xf32>
    %616 = arith.addf %615, %614 : vector<8x128xf32>
    %617 = arith.divf %615, %616 : vector<8x128xf32>
    %618 = vector.extract_strided_slice %596 {offsets = [0, 256], sizes = [8, 128], strides = [1, 1]} : vector<8x384xf32> to vector<8x128xf32>
    %619 = vector.extract_strided_slice %599 {offsets = [0, 256], sizes = [8, 128], strides = [1, 1]} : vector<8x384xf32> to vector<8x128xf32>
    %620 = vector.broadcast %601 : vector<1x128xf32> to vector<8x128xf32>
    %621 = arith.addf %619, %620 : vector<8x128xf32>
    %622 = arith.mulf %609, %621 : vector<8x128xf32>
    %623 = arith.addf %618, %622 : vector<8x128xf32>
    %624 = math.tanh %623 : vector<8x128xf32>
    %cst_244 = arith.constant 1.000000e+00 : f32
    %625 = vector.broadcast %cst_244 : f32 to vector<8x128xf32>
    %626 = arith.subf %625, %617 : vector<8x128xf32>
    %627 = arith.mulf %626, %624 : vector<8x128xf32>
    %628 = arith.mulf %617, %552 : vector<8x128xf32>
    %629 = arith.addf %627, %628 : vector<8x128xf32>
    %c8_i32_245 = arith.constant 8 : i32
    %c0_246 = arith.constant 0 : index
    %c0_247 = arith.constant 0 : index
    %c0_248 = arith.constant 0 : index
    %630 = vector.load %arg11[%c0_246, %c0_247, %c0_248] : memref<2x8x128xf32, #tpu.memory_space<vmem>>, vector<1x8x128xf32>
    %631 = vector.shape_cast %630 : vector<1x8x128xf32> to vector<8x128xf32>
    %632 = vector.shape_cast %589 : vector<8x128xf32> to vector<1x8x128xf32>
    tpu.vector_store %arg11[%c0_246, %c0_247, %c0_248], %632 {strides = array<i32>} : memref<2x8x128xf32, #tpu.memory_space<vmem>>, vector<1x8x128xf32>,
    %c1_249 = arith.constant 1 : index
    %c0_250 = arith.constant 0 : index
    %c0_251 = arith.constant 0 : index
    %633 = vector.load %arg11[%c1_249, %c0_250, %c0_251] : memref<2x8x128xf32, #tpu.memory_space<vmem>>, vector<1x8x128xf32>
    %634 = vector.shape_cast %633 : vector<1x8x128xf32> to vector<8x128xf32>
    %635 = vector.shape_cast %629 : vector<8x128xf32> to vector<1x8x128xf32>
    tpu.vector_store %arg11[%c1_249, %c0_250, %c0_251], %635 {strides = array<i32>} : memref<2x8x128xf32, #tpu.memory_space<vmem>>, vector<1x8x128xf32>,
    %c0_i32_252 = arith.constant 0 : i32
    %636 = arith.cmpi eq, %arg0, %c0_i32_252 : i32
    %637 = arith.extui %636 : i1 to i32
    %c0_i32_253 = arith.constant 0 : i32
    %638 = arith.cmpi ne, %637, %c0_i32_253 : i32
    scf.if %638 {
      %c0_254 = arith.constant 0 : index
      %c0_255 = arith.constant 0 : index
      %639 = vector.load %arg8[%c0_254, %c0_255] : memref<128x128xf32, #tpu.memory_space<vmem>>, vector<128x128xf32>
      %cst_256 = arith.constant dense<0.000000e+00> : vector<8x128xf32>
      %640 = tpu.matmul %629, %639, %cst_256 {dimension_numbers = #tpu.dot_dimension_numbers<[1], [0], [0], [1], [0, 0, 1, 1], [], []>} : vector<8x128xf32>, vector<128x128xf32>, vector<8x128xf32> -> vector<8x128xf32>
      %c0_257 = arith.constant 0 : index
      %c0_258 = arith.constant 0 : index
      %641 = vector.load %arg9[%c0_257, %c0_258] : memref<1x128xf32, #tpu.memory_space<vmem>>, vector<1x128xf32>
      %642 = vector.broadcast %641 : vector<1x128xf32> to vector<8x128xf32>
      %643 = arith.addf %640, %642 : vector<8x128xf32>
      %c0_259 = arith.constant 0 : index
      %c0_260 = arith.constant 0 : index
      %644 = vector.load %arg10[%c0_259, %c0_260] : memref<8x128xf32, #tpu.memory_space<vmem>>, vector<8x128xf32>
      tpu.vector_store %arg10[%c0_259, %c0_260], %643 {strides = array<i32>} : memref<8x128xf32, #tpu.memory_space<vmem>>, vector<8x128xf32>,
    } else {
    }
    return
  }
  func.func @transform_0(%arg0: i32) -> (i32, i32) {
    %c0_i32 = arith.constant 0 : i32
    %c0_i32_0 = arith.constant 0 : i32
    return %arg0, %c0_i32 : i32, i32
  }
  func.func @transform_1(%arg0: i32) -> (i32, i32) {
    %c0_i32 = arith.constant 0 : i32
    %c0_i32_0 = arith.constant 0 : i32
    %c0_i32_1 = arith.constant 0 : i32
    return %c0_i32, %c0_i32_0 : i32, i32
  }
  func.func @transform_2(%arg0: i32) -> (i32, i32) {
    %c0_i32 = arith.constant 0 : i32
    %c0_i32_0 = arith.constant 0 : i32
    %c0_i32_1 = arith.constant 0 : i32
    return %c0_i32, %c0_i32_0 : i32, i32
  }
  func.func @transform_3(%arg0: i32) -> (i32, i32, i32) {
    %c0_i32 = arith.constant 0 : i32
    %c0_i32_0 = arith.constant 0 : i32
    %c0_i32_1 = arith.constant 0 : i32
    %c0_i32_2 = arith.constant 0 : i32
    return %c0_i32, %c0_i32_0, %c0_i32_1 : i32, i32, i32
  }
  func.func @transform_4(%arg0: i32) -> (i32, i32, i32) {
    %c0_i32 = arith.constant 0 : i32
    %c0_i32_0 = arith.constant 0 : i32
    %c0_i32_1 = arith.constant 0 : i32
    %c0_i32_2 = arith.constant 0 : i32
    return %c0_i32, %c0_i32_0, %c0_i32_1 : i32, i32, i32
  }
  func.func @transform_5(%arg0: i32) -> (i32, i32, i32) {
    %c0_i32 = arith.constant 0 : i32
    %c0_i32_0 = arith.constant 0 : i32
    %c0_i32_1 = arith.constant 0 : i32
    %c0_i32_2 = arith.constant 0 : i32
    return %c0_i32, %c0_i32_0, %c0_i32_1 : i32, i32, i32
  }
  func.func @transform_6(%arg0: i32) -> (i32, i32, i32) {
    %c0_i32 = arith.constant 0 : i32
    %c0_i32_0 = arith.constant 0 : i32
    %c0_i32_1 = arith.constant 0 : i32
    %c0_i32_2 = arith.constant 0 : i32
    return %c0_i32, %c0_i32_0, %c0_i32_1 : i32, i32, i32
  }
  func.func @transform_7(%arg0: i32) -> (i32, i32) {
    %c0_i32 = arith.constant 0 : i32
    %c0_i32_0 = arith.constant 0 : i32
    %c0_i32_1 = arith.constant 0 : i32
    return %c0_i32, %c0_i32_0 : i32, i32
  }
  func.func @transform_8(%arg0: i32) -> (i32, i32) {
    %c0_i32 = arith.constant 0 : i32
    %c0_i32_0 = arith.constant 0 : i32
    %c0_i32_1 = arith.constant 0 : i32
    return %c0_i32, %c0_i32_0 : i32, i32
  }
  func.func @transform_9(%arg0: i32) -> (i32, i32) {
    %c0_i32 = arith.constant 0 : i32
    %c0_i32_0 = arith.constant 0 : i32
    %c0_i32_1 = arith.constant 0 : i32
    return %c0_i32, %c0_i32_0 : i32, i32
  }
}

</mosaic_0001>

<llo_original>
// kernel: tpu_custom_call.1
$region0: #{tpu_custom_call.1}
  #allocation0 [shape = 'u32[]', space=smem, size = 0x4, offset = 0x4, fixed_abs, tag = 'smem constant byte address 0x4 - core index']
  #allocation1 [shape = 'u32[72,128]{1,0:T(1,128)}', space=vmem, size = 0x9000, scoped, tag = 'internal scratch']
  #allocation2 [shape = 'f32[2,8,128]{2,1,0:T(8,128)}', space=vmem, size = 0x2000, scoped, tag = 'scratch operand']
  #allocation3 [shape = 'f32[64,384]{1,0:T(8,128)}', space=vmem, size = 0x18000, scoped, tag = 'scratch operand']
  %s0 = inlined_call_operand.vmem [shape: f32[64,4], index: 0, kind: input, shape index: {}]
  %s1 = inlined_call_operand.vmem [shape: f32[4,384], index: 1, kind: input, shape index: {}]
  %s2 = inlined_call_operand.vmem [shape: f32[1,384], index: 2, kind: input, shape index: {}]
  %s3 = inlined_call_operand.hbm [shape: f32[1,128,384], index: 3, kind: input, shape index: {}]
  %s4 = inlined_call_operand.vmem [shape: f32[1,1,384], index: 4, kind: input, shape index: {}]
  %s5 = inlined_call_operand.hbm [shape: f32[2,128,384], index: 5, kind: input, shape index: {}]
  %s6 = inlined_call_operand.vmem [shape: f32[2,1,128], index: 6, kind: input, shape index: {}]
  %s7 = inlined_call_operand.hbm [shape: f32[128,128], index: 7, kind: input, shape index: {}]
  %s8 = inlined_call_operand.vmem [shape: f32[1,128], index: 8, kind: input, shape index: {}]
  %s9 = inlined_call_operand.hbm [shape: f32[8,128], index: 9, kind: output, shape index: {}]
  %s10 = sld [smem:[#allocation0]]
  $region66: #{tpu_custom_call.1} parent=0
    _
  %s12 = ssub.s32 1, %s10
  %s13 = scalar_select 0, %s12, %s10
  $region1: #{tpu_custom_call.1} parent=0
    #allocation4 [shape = 'u8[196608]{0}', space=vmem, size = 0x30000, scoped, tag = 'input window, operand 3, single buffered']
    #allocation5 [shape = 's32[1]{0}', space=sflag, size = 0x4, scoped, tag = 'scoped memory for tpu_custom_call.1']
    #allocation6 [shape = 's32[1]{0}', space=sflag, size = 0x4, scoped, tag = 'scoped memory for tpu_custom_call.1']
    #allocation7 [shape = 'u8[393216]{0}', space=vmem, size = 0x60000, scoped, tag = 'input window, operand 5, single buffered']
    #allocation8 [shape = 's32[1]{0}', space=sflag, size = 0x4, scoped, tag = 'scoped memory for tpu_custom_call.1']
    #allocation9 [shape = 'u8[65536]{0}', space=vmem, size = 0x10000, scoped, tag = 'input window, operand 7, single buffered']
    #allocation10 [shape = 'u8[4096]{0}', space=vmem, size = 0x1000, scoped, tag = 'output window, operand 0, single buffered']
    %14 = vsyncpa [#allocation5], 0
    %15 = vsyncpa [#allocation8], 0
    %16 = vsyncpa [#allocation6], 0
    // Predicated region
    $region2: #{tpu_custom_call.1} parent=1 // pred_check
      _
    $region3: #{tpu_custom_call.1} parent=1 // pred_check_branch
      %18 = sbr.rel (0) target = $region5
    $region4: #{tpu_custom_call.1} parent=1 // pred_region
      _
    $region5: #{tpu_custom_call.1} parent=1 // pred_fallthru
      _
    // Predicated region
    $region6: #{tpu_custom_call.1} parent=1 // pred_check
      _
    $region7: #{tpu_custom_call.1} parent=1 // pred_check_branch
      %20 = sbr.rel (0) target = $region9
    $region8: #{tpu_custom_call.1} parent=1 // pred_region
      _
    $region9: #{tpu_custom_call.1} parent=1 // pred_fallthru
      _
    // Predicated region
    $region10: #{tpu_custom_call.1} parent=1 // pred_check
      _
    $region11: #{tpu_custom_call.1} parent=1 // pred_check_branch
      %22 = sbr.rel (0) target = $region13
    $region12: #{tpu_custom_call.1} parent=1 // pred_region
      _
    $region13: #{tpu_custom_call.1} parent=1 // pred_fallthru
      _
    // Predicated region
    $region14: #{tpu_custom_call.1} parent=1 // pred_check
      _
    $region15: #{tpu_custom_call.1} parent=1 // pred_check_branch
      %24 = sbr.rel (0) target = $region17
    $region16: #{tpu_custom_call.1} parent=1 // pred_region
      %26 = vsyncadd [#allocation5], 0
      %s27 = sshll.u32 %s3, 4
      %s28 = int_to_ptr.hbm [resolvable:$true] %s27
      %s29 = sshll.u32 [#allocation4], 4
      %s30 = int_to_ptr.vmem [resolvable:$true] %s29
      %35 = dma.hbm_to_vmem [thread:$0]  %s28, 6144, %s30, [#allocation5], 384, 384, 24
    $region17: #{tpu_custom_call.1} parent=1 // pred_fallthru
      _
    // Predicated region
    $region18: #{tpu_custom_call.1} parent=1 // pred_check
      _
    $region19: #{tpu_custom_call.1} parent=1 // pred_check_branch
      %37 = sbr.rel (0) target = $region21
    $region20: #{tpu_custom_call.1} parent=1 // pred_region
      _
    $region21: #{tpu_custom_call.1} parent=1 // pred_fallthru
      _
    // Predicated region
    $region22: #{tpu_custom_call.1} parent=1 // pred_check
      _
    $region23: #{tpu_custom_call.1} parent=1 // pred_check_branch
      %39 = sbr.rel (0) target = $region25
    $region24: #{tpu_custom_call.1} parent=1 // pred_region
      %41 = vsyncadd [#allocation8], 0
      %s42 = sshll.u32 %s5, 4
      %s43 = int_to_ptr.hbm [resolvable:$true] %s42
      %s44 = sshll.u32 [#allocation7], 4
      %s45 = int_to_ptr.vmem [resolvable:$true] %s44
      %50 = dma.hbm_to_vmem [thread:$0]  %s43, 12288, %s45, [#allocation8], 384, 384, 24
    $region25: #{tpu_custom_call.1} parent=1 // pred_fallthru
      _
    // Predicated region
    $region26: #{tpu_custom_call.1} parent=1 // pred_check
      _
    $region27: #{tpu_custom_call.1} parent=1 // pred_check_branch
      %52 = sbr.rel (0) target = $region29
    $region28: #{tpu_custom_call.1} parent=1 // pred_region
      _
    $region29: #{tpu_custom_call.1} parent=1 // pred_fallthru
      _
    // Predicated region
    $region30: #{tpu_custom_call.1} parent=1 // pred_check
      _
    $region31: #{tpu_custom_call.1} parent=1 // pred_check_branch
      %54 = sbr.rel (0) target = $region33
    $region32: #{tpu_custom_call.1} parent=1 // pred_region
      %56 = vsyncadd [#allocation8], 0
      %s57 = sshll.u32 %s7, 4
      %s58 = int_to_ptr.hbm [resolvable:$true] %s57
      %s59 = sshll.u32 [#allocation9], 4
      %s60 = int_to_ptr.vmem [resolvable:$true] %s59
      %65 = dma.hbm_to_vmem [thread:$0]  %s58, 2048, %s60, [#allocation8], 128, 128, 8
    $region33: #{tpu_custom_call.1} parent=1 // pred_fallthru
      _
    // Predicated region
    $region34: #{tpu_custom_call.1} parent=1 // pred_check
      _
    $region35: #{tpu_custom_call.1} parent=1 // pred_check_branch
      %67 = sbr.rel (0) target = $region37
    $region36: #{tpu_custom_call.1} parent=1 // pred_region
      _
    $region37: #{tpu_custom_call.1} parent=1 // pred_fallthru
      _
    // Predicated region
    $region38: #{tpu_custom_call.1} parent=1 // pred_check
      _
    $region39: #{tpu_custom_call.1} parent=1 // pred_check_branch
      %69 = sbr.rel (0) target = $region41
    $region40: #{tpu_custom_call.1} parent=1 // pred_region
      %71 = dma.done [#allocation5], 6144
    $region41: #{tpu_custom_call.1} parent=1 // pred_fallthru
      _
    // Predicated region
    $region42: #{tpu_custom_call.1} parent=1 // pred_check
      _
    $region43: #{tpu_custom_call.1} parent=1 // pred_check_branch
      %73 = sbr.rel (0) target = $region45
    $region44: #{tpu_custom_call.1} parent=1 // pred_region
      %75 = dma.done [#allocation8], 12288
    $region45: #{tpu_custom_call.1} parent=1 // pred_fallthru
      _
    // Predicated region
    $region46: #{tpu_custom_call.1} parent=1 // pred_check
      _
    $region47: #{tpu_custom_call.1} parent=1 // pred_check_branch
      %77 = sbr.rel (0) target = $region49
    $region48: #{tpu_custom_call.1} parent=1 // pred_region
      %79 = dma.done [#allocation8], 2048
    $region49: #{tpu_custom_call.1} parent=1 // pred_fallthru
      _
    %p80 = scmp.eq.s32.totalorder 0, 0
    // Predicated region
    $region50: #{tpu_custom_call.1} parent=1 // pred_check
      %p81 = pneg %p80
    $region51: #{tpu_custom_call.1} parent=1 // pred_check_branch
      %83 = sbr.rel (%p81) target = $region53
    $region52: #{tpu_custom_call.1} parent=1 // pred_region
      %84 = vst [vmem:[#allocation2] sm:$0xff] 0.0
      %85 = vst [vmem:[#allocation2 + $0x8] sm:$0xff] 0.0
    $region53: #{tpu_custom_call.1} parent=1 // pred_fallthru
      _
    %v86 = vld [vmem:[%s0] sm:$0xff]
    %v87 = vld [vmem:[%s0 + $0x8] sm:$0xff]
    %v88 = vld [vmem:[%s0 + $0x10] sm:$0xff]
    %v89 = vld [vmem:[%s0 + $0x18] sm:$0xff]
    %v90 = vld [vmem:[%s0 + $0x20] sm:$0xff]
    %v91 = vld [vmem:[%s0 + $0x28] sm:$0xff]
    %v92 = vld [vmem:[%s0 + $0x30] sm:$0xff]
    %v93 = vld [vmem:[%s0 + $0x38] sm:$0xff]
    %v94 = vld [vmem:[%s1] sm:$0xff]
    %v95 = vld [vmem:[%s1 + $0x8] sm:$0xf]
    %v96 = vld [vmem:[%s2] sm:$0x7]
    %v98 = vperm.slane %v96, 0
    %v99 = vperm.slane %v96, 1
    %v100 = vperm.slane %v96, 2
    %106 = vst [vmem:[#allocation1] ss:$2 sm:$0xff] %v94
    %s107 = scalar_lea.vmem [#allocation1], 16
    %108 = vst [vmem:[%s107] ss:$2 sm:$0xff] %v95
    %v109 = vld.sshfl [vmem:[#allocation1] sm:$0xff pattern:$0x75316420]
    %v110 = vld.sshfl [vmem:[#allocation1 + $0x8] sm:$0xff pattern:$0x75316420]
    %v111 = vld.sshfl [vmem:[#allocation1 + $0x10] sm:$0xff pattern:$0x75316420]
    %vm112 = vcmask 31744
    %v114 = vsel %vm112, %v86, 0
    %v117 = vsel %vm112, %v87, 0
    %v120 = vsel %vm112, %v88, 0
    %v123 = vsel %vm112, %v89, 0
    %v126 = vsel %vm112, %v90, 0
    %v129 = vsel %vm112, %v91, 0
    %v132 = vsel %vm112, %v92, 0
    %v135 = vsel %vm112, %v93, 0
    %vm137 = vcmask 1043456
    %v138 = vsel %vm137, %v109, 0
    %v140 = vsel %vm137, %v110, 0
    %v142 = vsel %vm137, %v111, 0
    %144 = vmatpush.msra.mxu0 0.0
    %145 = vmatpush.msra.mxu0 0.0
    %146 = vmatpush.msra.mxu0 0.0
    %147 = vmatpush.msra.mxu0 0.0
    %148 = vmatpush.msra.mxu0 0.0
    %149 = vmatpush.msra.mxu0 0.0
    %150 = vmatpush.msra.mxu0 0.0
    %151 = vmatpush.msra.mxu0 0.0
    %152 = vmatpush.msra.mxu0 0.0
    %153 = vmatpush.msra.mxu0 0.0
    %154 = vmatpush.msra.mxu0 0.0
    %155 = vmatpush.msra.mxu0 0.0
    %156 = vmatpush.msra.mxu0 0.0
    %157 = vmatpush.msra.mxu0 0.0
    %158 = vmatpush.msra.mxu0 0.0
    %159 = vmatpush.msra.mxu0 %v138
    %160 = vmatmul.f32.gmra.mxu0 %v114
    %v161 = vpop.f32.mrf.mxu0
    %v162 = vadd.f32 %v98, %v161
    %163 = vmatmul.f32.gmra.mxu0 %v117
    %v164 = vpop.f32.mrf.mxu0
    %v165 = vadd.f32 %v98, %v164
    %166 = vmatmul.f32.gmra.mxu0 %v120
    %v167 = vpop.f32.mrf.mxu0
    %v168 = vadd.f32 %v98, %v167
    %169 = vmatmul.f32.gmra.mxu0 %v123
    %v170 = vpop.f32.mrf.mxu0
    %v171 = vadd.f32 %v98, %v170
    %172 = vmatmul.f32.gmra.mxu0 %v126
    %v173 = vpop.f32.mrf.mxu0
    %v174 = vadd.f32 %v98, %v173
    %175 = vmatmul.f32.gmra.mxu0 %v129
    %v176 = vpop.f32.mrf.mxu0
    %v177 = vadd.f32 %v98, %v176
    %178 = vmatmul.f32.gmra.mxu0 %v132
    %v179 = vpop.f32.mrf.mxu0
    %v180 = vadd.f32 %v98, %v179
    %181 = vmatmul.f32.gmra.mxu0 %v135
    %v182 = vpop.f32.mrf.mxu0
    %v183 = vadd.f32 %v98, %v182
    %184 = vdwg.mxu0
    %185 = vmatpush.msra.mxu0 0.0
    %186 = vmatpush.msra.mxu0 0.0
    %187 = vmatpush.msra.mxu0 0.0
    %188 = vmatpush.msra.mxu0 0.0
    %189 = vmatpush.msra.mxu0 0.0
    %190 = vmatpush.msra.mxu0 0.0
    %191 = vmatpush.msra.mxu0 0.0
    %192 = vmatpush.msra.mxu0 0.0
    %193 = vmatpush.msra.mxu0 0.0
    %194 = vmatpush.msra.mxu0 0.0
    %195 = vmatpush.msra.mxu0 0.0
    %196 = vmatpush.msra.mxu0 0.0
    %197 = vmatpush.msra.mxu0 0.0
    %198 = vmatpush.msra.mxu0 0.0
    %199 = vmatpush.msra.mxu0 0.0
    %200 = vmatpush.msra.mxu0 %v140
    %201 = vmatmul.f32.gmra.mxu0 %v114
    %v202 = vpop.f32.mrf.mxu0
    %v203 = vadd.f32 %v99, %v202
    %204 = vmatmul.f32.gmra.mxu0 %v117
    %v205 = vpop.f32.mrf.mxu0
    %v206 = vadd.f32 %v99, %v205
    %207 = vmatmul.f32.gmra.mxu0 %v120
    %v208 = vpop.f32.mrf.mxu0
    %v209 = vadd.f32 %v99, %v208
    %210 = vmatmul.f32.gmra.mxu0 %v123
    %v211 = vpop.f32.mrf.mxu0
    %v212 = vadd.f32 %v99, %v211
    %213 = vmatmul.f32.gmra.mxu0 %v126
    %v214 = vpop.f32.mrf.mxu0
    %v215 = vadd.f32 %v99, %v214
    %216 = vmatmul.f32.gmra.mxu0 %v129
    %v217 = vpop.f32.mrf.mxu0
    %v218 = vadd.f32 %v99, %v217
    %219 = vmatmul.f32.gmra.mxu0 %v132
    %v220 = vpop.f32.mrf.mxu0
    %v221 = vadd.f32 %v99, %v220
    %222 = vmatmul.f32.gmra.mxu0 %v135
    %v223 = vpop.f32.mrf.mxu0
    %v224 = vadd.f32 %v99, %v223
    %225 = vdwg.mxu0
    %226 = vmatpush.msra.mxu0 0.0
    %227 = vmatpush.msra.mxu0 0.0
    %228 = vmatpush.msra.mxu0 0.0
    %229 = vmatpush.msra.mxu0 0.0
    %230 = vmatpush.msra.mxu0 0.0
    %231 = vmatpush.msra.mxu0 0.0
    %232 = vmatpush.msra.mxu0 0.0
    %233 = vmatpush.msra.mxu0 0.0
    %234 = vmatpush.msra.mxu0 0.0
    %235 = vmatpush.msra.mxu0 0.0
    %236 = vmatpush.msra.mxu0 0.0
    %237 = vmatpush.msra.mxu0 0.0
    %238 = vmatpush.msra.mxu0 0.0
    %239 = vmatpush.msra.mxu0 0.0
    %240 = vmatpush.msra.mxu0 0.0
    %241 = vmatpush.msra.mxu0 %v142
    %242 = vmatmul.f32.gmra.mxu0 %v114
    %v243 = vpop.f32.mrf.mxu0
    %v244 = vadd.f32 %v100, %v243
    %245 = vmatmul.f32.gmra.mxu0 %v117
    %v246 = vpop.f32.mrf.mxu0
    %v247 = vadd.f32 %v100, %v246
    %248 = vmatmul.f32.gmra.mxu0 %v120
    %v249 = vpop.f32.mrf.mxu0
    %v250 = vadd.f32 %v100, %v249
    %251 = vmatmul.f32.gmra.mxu0 %v123
    %v252 = vpop.f32.mrf.mxu0
    %v253 = vadd.f32 %v100, %v252
    %254 = vmatmul.f32.gmra.mxu0 %v126
    %v255 = vpop.f32.mrf.mxu0
    %v256 = vadd.f32 %v100, %v255
    %257 = vmatmul.f32.gmra.mxu0 %v129
    %v258 = vpop.f32.mrf.mxu0
    %v259 = vadd.f32 %v100, %v258
    %260 = vmatmul.f32.gmra.mxu0 %v132
    %v261 = vpop.f32.mrf.mxu0
    %v262 = vadd.f32 %v100, %v261
    %263 = vmatmul.f32.gmra.mxu0 %v135
    %v264 = vpop.f32.mrf.mxu0
    %v265 = vadd.f32 %v100, %v264
    %266 = vdwg.mxu0
    %267 = vst [vmem:[#allocation3] sm:$0xff] %v162
    %268 = vst [vmem:[#allocation3 + $0x8] sm:$0xff] %v203
    %269 = vst [vmem:[#allocation3 + $0x10] sm:$0xff] %v244
    %270 = vst [vmem:[#allocation3 + $0x18] sm:$0xff] %v165
    %271 = vst [vmem:[#allocation3 + $0x20] sm:$0xff] %v206
    %272 = vst [vmem:[#allocation3 + $0x28] sm:$0xff] %v247
    %273 = vst [vmem:[#allocation3 + $0x30] sm:$0xff] %v168
    %274 = vst [vmem:[#allocation3 + $0x38] sm:$0xff] %v209
    %275 = vst [vmem:[#allocation3 + $0x40] sm:$0xff] %v250
    %276 = vst [vmem:[#allocation3 + $0x48] sm:$0xff] %v171
    %277 = vst [vmem:[#allocation3 + $0x50] sm:$0xff] %v212
    %278 = vst [vmem:[#allocation3 + $0x58] sm:$0xff] %v253
    %279 = vst [vmem:[#allocation3 + $0x60] sm:$0xff] %v174
    %280 = vst [vmem:[#allocation3 + $0x68] sm:$0xff] %v215
    %281 = vst [vmem:[#allocation3 + $0x70] sm:$0xff] %v256
    %282 = vst [vmem:[#allocation3 + $0x78] sm:$0xff] %v177
    %283 = vst [vmem:[#allocation3 + $0x80] sm:$0xff] %v218
    %284 = vst [vmem:[#allocation3 + $0x88] sm:$0xff] %v259
    %285 = vst [vmem:[#allocation3 + $0x90] sm:$0xff] %v180
    %286 = vst [vmem:[#allocation3 + $0x98] sm:$0xff] %v221
    %287 = vst [vmem:[#allocation3 + $0xa0] sm:$0xff] %v262
    %288 = vst [vmem:[#allocation3 + $0xa8] sm:$0xff] %v183
    %289 = vst [vmem:[#allocation3 + $0xb0] sm:$0xff] %v224
    %290 = vst [vmem:[#allocation3 + $0xb8] sm:$0xff] %v265
    %v291 = vld [vmem:[#allocation2] sm:$0xff]
    %s292 = scalar_lea.vmem [#allocation2], 8
    %v293 = vld [vmem:[%s292] sm:$0xff]
    %s294 = smul.u32 0, 3
    %s295 = smul.addr %s294, 8
    %s296 = scalar_lea.vmem [#allocation3], %s295
    %v297 = vld [vmem:[%s296] sm:$0xff]
    %v298 = vld [vmem:[%s296 + $0x8] sm:$0xff]
    %v299 = vld [vmem:[%s296 + $0x10] sm:$0xff]
    %v300 = vld [vmem:[#allocation7] sm:$0xff]
    %v301 = vld [vmem:[#allocation7 + $0x8] sm:$0xff]
    %v302 = vld [vmem:[#allocation7 + $0x10] sm:$0xff]
    %v303 = vld [vmem:[#allocation7 + $0x18] sm:$0xff]
    %v304 = vld [vmem:[#allocation7 + $0x20] sm:$0xff]
    %v305 = vld [vmem:[#allocation7 + $0x28] sm:$0xff]
    %v306 = vld [vmem:[#allocation7 + $0x30] sm:$0xff]
    %v307 = vld [vmem:[#allocation7 + $0x38] sm:$0xff]
    %v308 = vld [vmem:[#allocation7 + $0x40] sm:$0xff]
    %v309 = vld [vmem:[#allocation7 + $0x48] sm:$0xff]
    %v310 = vld [vmem:[#allocation7 + $0x50] sm:$0xff]
    %v311 = vld [vmem:[#allocation7 + $0x58] sm:$0xff]
    %v312 = vld [vmem:[#allocation7 + $0x60] sm:$0xff]
    %v313 = vld [vmem:[#allocation7 + $0x68] sm:$0xff]
    %v314 = vld [vmem:[#allocation7 + $0x70] sm:$0xff]
    %v315 = vld [vmem:[#allocation7 + $0x78] sm:$0xff]
    %v316 = vld [vmem:[#allocation7 + $0x80] sm:$0xff]
    %v317 = vld [vmem:[#allocation7 + $0x88] sm:$0xff]
    %v318 = vld [vmem:[#allocation7 + $0x90] sm:$0xff]
    %v319 = vld [vmem:[#allocation7 + $0x98] sm:$0xff]
    %v320 = vld [vmem:[#allocation7 + $0xa0] sm:$0xff]
    %v321 = vld [vmem:[#allocation7 + $0xa8] sm:$0xff]
    %v322 = vld [vmem:[#allocation7 + $0xb0] sm:$0xff]
    %v323 = vld [vmem:[#allocation7 + $0xb8] sm:$0xff]
    %v324 = vld [vmem:[#allocation7 + $0xc0] sm:$0xff]
    %v325 = vld [vmem:[#allocation7 + $0xc8] sm:$0xff]
    %v326 = vld [vmem:[#allocation7 + $0xd0] sm:$0xff]
    %v327 = vld [vmem:[#allocation7 + $0xd8] sm:$0xff]
    %v328 = vld [vmem:[#allocation7 + $0xe0] sm:$0xff]
    %v329 = vld [vmem:[#allocation7 + $0xe8] sm:$0xff]
    %v330 = vld [vmem:[#allocation7 + $0xf0] sm:$0xff]
    %v331 = vld [vmem:[#allocation7 + $0xf8] sm:$0xff]
    %v332 = vld [vmem:[#allocation7 + $0x100] sm:$0xff]
    %v333 = vld [vmem:[#allocation7 + $0x108] sm:$0xff]
    %v334 = vld [vmem:[#allocation7 + $0x110] sm:$0xff]
    %v335 = vld [vmem:[#allocation7 + $0x118] sm:$0xff]
    %v336 = vld [vmem:[#allocation7 + $0x120] sm:$0xff]
    %v337 = vld [vmem:[#allocation7 + $0x128] sm:$0xff]
    %v338 = vld [vmem:[#allocation7 + $0x130] sm:$0xff]
    %v339 = vld [vmem:[#allocation7 + $0x138] sm:$0xff]
    %v340 = vld [vmem:[#allocation7 + $0x140] sm:$0xff]
    %v341 = vld [vmem:[#allocation7 + $0x148] sm:$0xff]
    %v342 = vld [vmem:[#allocation7 + $0x150] sm:$0xff]
    %v343 = vld [vmem:[#allocation7 + $0x158] sm:$0xff]
    %v344 = vld [vmem:[#allocation7 + $0x160] sm:$0xff]
    %v345 = vld [vmem:[#allocation7 + $0x168] sm:$0xff]
    %v346 = vld [vmem:[#allocation7 + $0x170] sm:$0xff]
    %v347 = vld [vmem:[#allocation7 + $0x178] sm:$0xff]
    %348 = vmatpush.msra.mxu0 %v345
    %349 = vmatpush.msra.mxu0 %v342
    %350 = vmatpush.msra.mxu0 %v339
    %351 = vmatpush.msra.mxu0 %v336
    %352 = vmatpush.msra.mxu0 %v333
    %353 = vmatpush.msra.mxu0 %v330
    %354 = vmatpush.msra.mxu0 %v327
    %355 = vmatpush.msra.mxu0 %v324
    %356 = vmatpush.msra.mxu0 %v321
    %357 = vmatpush.msra.mxu0 %v318
    %358 = vmatpush.msra.mxu0 %v315
    %359 = vmatpush.msra.mxu0 %v312
    %360 = vmatpush.msra.mxu0 %v309
    %361 = vmatpush.msra.mxu0 %v306
    %362 = vmatpush.msra.mxu0 %v303
    %363 = vmatpush.msra.mxu0 %v300
    %364 = vmatmul.f32.gmra.mxu0 %v291
    %v365 = vpop.f32.mrf.mxu0
    %v366 = vadd.f32 0.0, %v365
    %367 = vdwg.mxu0
    %368 = vmatpush.msra.mxu0 %v346
    %369 = vmatpush.msra.mxu0 %v343
    %370 = vmatpush.msra.mxu0 %v340
    %371 = vmatpush.msra.mxu0 %v337
    %372 = vmatpush.msra.mxu0 %v334
    %373 = vmatpush.msra.mxu0 %v331
    %374 = vmatpush.msra.mxu0 %v328
    %375 = vmatpush.msra.mxu0 %v325
    %376 = vmatpush.msra.mxu0 %v322
    %377 = vmatpush.msra.mxu0 %v319
    %378 = vmatpush.msra.mxu0 %v316
    %379 = vmatpush.msra.mxu0 %v313
    %380 = vmatpush.msra.mxu0 %v310
    %381 = vmatpush.msra.mxu0 %v307
    %382 = vmatpush.msra.mxu0 %v304
    %383 = vmatpush.msra.mxu0 %v301
    %384 = vmatmul.f32.gmra.mxu0 %v291
    %v385 = vpop.f32.mrf.mxu0
    %v386 = vadd.f32 0.0, %v385
    %387 = vdwg.mxu0
    %388 = vmatpush.msra.mxu0 %v347
    %389 = vmatpush.msra.mxu0 %v344
    %390 = vmatpush.msra.mxu0 %v341
    %391 = vmatpush.msra.mxu0 %v338
    %392 = vmatpush.msra.mxu0 %v335
    %393 = vmatpush.msra.mxu0 %v332
    %394 = vmatpush.msra.mxu0 %v329
    %395 = vmatpush.msra.mxu0 %v326
    %396 = vmatpush.msra.mxu0 %v323
    %397 = vmatpush.msra.mxu0 %v320
    %398 = vmatpush.msra.mxu0 %v317
    %399 = vmatpush.msra.mxu0 %v314
    %400 = vmatpush.msra.mxu0 %v311
    %401 = vmatpush.msra.mxu0 %v308
    %402 = vmatpush.msra.mxu0 %v305
    %403 = vmatpush.msra.mxu0 %v302
    %404 = vmatmul.f32.gmra.mxu0 %v291
    %v405 = vpop.f32.mrf.mxu0
    %v406 = vadd.f32 0.0, %v405
    %407 = vdwg.mxu0
    %v408 = vld [vmem:[%s6] sm:$0x1]
    %v409 = vadd.f32 %v297, %v366
    %v410 = vxor.u32 %v409, 2147483648
    %v411 = vmul.f32 %v410, 1.442695
    %v412 = vpow.pop %v411
    %v413 = vadd.f32 %v412, 1.0
    %v414 = vrcp.pop %v413
    %v415 = vmul.f32 %v413, %v414
    %v416 = vsub.f32 1.0, %v415
    %v417 = vmul.f32 %v414, %v416
    %v418 = vadd.f32 %v414, %v417
    %vm419 = vweird.f32 %v413
    %vm420 = vweird.f32 %v414
    %vm421 = vmor %vm419, %vm420
    %v422 = vsel %vm421, %v414, %v418
    %v423 = vand.u32 2147483647, %v413
    %vm424 = vcmp.eq.f32.partialorder %v423, 8.507059e+37
    %v425 = vand.u32 %v413, 2147483648
    %v426 = vor.u32 1.1754944e-38, %v425
    %v427 = vsel %vm424, %v426, %v422
    %v428 = vmul.f32 1.0, %v427
    %v429 = vadd.f32 %v298, %v386
    %v430 = vxor.u32 %v429, 2147483648
    %v431 = vmul.f32 %v430, 1.442695
    %v432 = vpow.pop %v431
    %v433 = vadd.f32 %v432, 1.0
    %v434 = vrcp.pop %v433
    %v435 = vmul.f32 %v433, %v434
    %v436 = vsub.f32 1.0, %v435
    %v437 = vmul.f32 %v434, %v436
    %v438 = vadd.f32 %v434, %v437
    %vm439 = vweird.f32 %v433
    %vm440 = vweird.f32 %v434
    %vm441 = vmor %vm439, %vm440
    %v442 = vsel %vm441, %v434, %v438
    %v443 = vand.u32 2147483647, %v433
    %vm444 = vcmp.eq.f32.partialorder %v443, 8.507059e+37
    %v445 = vand.u32 %v433, 2147483648
    %v446 = vor.u32 1.1754944e-38, %v445
    %v447 = vsel %vm444, %v446, %v442
    %v448 = vmul.f32 1.0, %v447
    %v450 = vperm.slane %v408, 0
    %v452 = vadd.f32 %v406, %v450
    %v453 = vmul.f32 %v428, %v452
    %v454 = vadd.f32 %v299, %v453
    %v455 = vtanh.pop %v454
    %v456 = vsub.f32 1.0, %v448
    %v457 = vmul.f32 %v456, %v455
    %v458 = vmul.f32 %v448, %v291
    %v459 = vadd.f32 %v457, %v458
    %v460 = vld [vmem:[#allocation4] sm:$0xff]
    %v461 = vld [vmem:[#allocation4 + $0x8] sm:$0xff]
    %v462 = vld [vmem:[#allocation4 + $0x10] sm:$0xff]
    %v463 = vld [vmem:[#allocation4 + $0x18] sm:$0xff]
    %v464 = vld [vmem:[#allocation4 + $0x20] sm:$0xff]
    %v465 = vld [vmem:[#allocation4 + $0x28] sm:$0xff]
    %v466 = vld [vmem:[#allocation4 + $0x30] sm:$0xff]
    %v467 = vld [vmem:[#allocation4 + $0x38] sm:$0xff]
    %v468 = vld [vmem:[#allocation4 + $0x40] sm:$0xff]
    %v469 = vld [vmem:[#allocation4 + $0x48] sm:$0xff]
    %v470 = vld [vmem:[#allocation4 + $0x50] sm:$0xff]
    %v471 = vld [vmem:[#allocation4 + $0x58] sm:$0xff]
    %v472 = vld [vmem:[#allocation4 + $0x60] sm:$0xff]
    %v473 = vld [vmem:[#allocation4 + $0x68] sm:$0xff]
    %v474 = vld [vmem:[#allocation4 + $0x70] sm:$0xff]
    %v475 = vld [vmem:[#allocation4 + $0x78] sm:$0xff]
    %v476 = vld [vmem:[#allocation4 + $0x80] sm:$0xff]
    %v477 = vld [vmem:[#allocation4 + $0x88] sm:$0xff]
    %v478 = vld [vmem:[#allocation4 + $0x90] sm:$0xff]
    %v479 = vld [vmem:[#allocation4 + $0x98] sm:$0xff]
    %v480 = vld [vmem:[#allocation4 + $0xa0] sm:$0xff]
    %v481 = vld [vmem:[#allocation4 + $0xa8] sm:$0xff]
    %v482 = vld [vmem:[#allocation4 + $0xb0] sm:$0xff]
    %v483 = vld [vmem:[#allocation4 + $0xb8] sm:$0xff]
    %v484 = vld [vmem:[#allocation4 + $0xc0] sm:$0xff]
    %v485 = vld [vmem:[#allocation4 + $0xc8] sm:$0xff]
    %v486 = vld [vmem:[#allocation4 + $0xd0] sm:$0xff]
    %v487 = vld [vmem:[#allocation4 + $0xd8] sm:$0xff]
    %v488 = vld [vmem:[#allocation4 + $0xe0] sm:$0xff]
    %v489 = vld [vmem:[#allocation4 + $0xe8] sm:$0xff]
    %v490 = vld [vmem:[#allocation4 + $0xf0] sm:$0xff]
    %v491 = vld [vmem:[#allocation4 + $0xf8] sm:$0xff]
    %v492 = vld [vmem:[#allocation4 + $0x100] sm:$0xff]
    %v493 = vld [vmem:[#allocation4 + $0x108] sm:$0xff]
    %v494 = vld [vmem:[#allocation4 + $0x110] sm:$0xff]
    %v495 = vld [vmem:[#allocation4 + $0x118] sm:$0xff]
    %v496 = vld [vmem:[#allocation4 + $0x120] sm:$0xff]
    %v497 = vld [vmem:[#allocation4 + $0x128] sm:$0xff]
    %v498 = vld [vmem:[#allocation4 + $0x130] sm:$0xff]
    %v499 = vld [vmem:[#allocation4 + $0x138] sm:$0xff]
    %v500 = vld [vmem:[#allocation4 + $0x140] sm:$0xff]
    %v501 = vld [vmem:[#allocation4 + $0x148] sm:$0xff]
    %v502 = vld [vmem:[#allocation4 + $0x150] sm:$0xff]
    %v503 = vld [vmem:[#allocation4 + $0x158] sm:$0xff]
    %v504 = vld [vmem:[#allocation4 + $0x160] sm:$0xff]
    %v505 = vld [vmem:[#allocation4 + $0x168] sm:$0xff]
    %v506 = vld [vmem:[#allocation4 + $0x170] sm:$0xff]
    %v507 = vld [vmem:[#allocation4 + $0x178] sm:$0xff]
    %v508 = vld [vmem:[%s4] sm:$0x7]
    %v510 = vperm.slane %v508, 0
    %v511 = vperm.slane %v508, 1
    %v512 = vperm.slane %v508, 2
    %516 = vmatpush.msra.mxu0 %v505
    %517 = vmatpush.msra.mxu0 %v502
    %518 = vmatpush.msra.mxu0 %v499
    %519 = vmatpush.msra.mxu0 %v496
    %520 = vmatpush.msra.mxu0 %v493
    %521 = vmatpush.msra.mxu0 %v490
    %522 = vmatpush.msra.mxu0 %v487
    %523 = vmatpush.msra.mxu0 %v484
    %524 = vmatpush.msra.mxu0 %v481
    %525 = vmatpush.msra.mxu0 %v478
    %526 = vmatpush.msra.mxu0 %v475
    %527 = vmatpush.msra.mxu0 %v472
    %528 = vmatpush.msra.mxu0 %v469
    %529 = vmatpush.msra.mxu0 %v466
    %530 = vmatpush.msra.mxu0 %v463
    %531 = vmatpush.msra.mxu0 %v460
    %532 = vmatmul.f32.gmra.mxu0 %v459
    %v533 = vpop.f32.mrf.mxu0
    %v534 = vadd.f32 %v510, %v533
    %535 = vdwg.mxu0
    %536 = vmatpush.msra.mxu0 %v506
    %537 = vmatpush.msra.mxu0 %v503
    %538 = vmatpush.msra.mxu0 %v500
    %539 = vmatpush.msra.mxu0 %v497
    %540 = vmatpush.msra.mxu0 %v494
    %541 = vmatpush.msra.mxu0 %v491
    %542 = vmatpush.msra.mxu0 %v488
    %543 = vmatpush.msra.mxu0 %v485
    %544 = vmatpush.msra.mxu0 %v482
    %545 = vmatpush.msra.mxu0 %v479
    %546 = vmatpush.msra.mxu0 %v476
    %547 = vmatpush.msra.mxu0 %v473
    %548 = vmatpush.msra.mxu0 %v470
    %549 = vmatpush.msra.mxu0 %v467
    %550 = vmatpush.msra.mxu0 %v464
    %551 = vmatpush.msra.mxu0 %v461
    %552 = vmatmul.f32.gmra.mxu0 %v459
    %v553 = vpop.f32.mrf.mxu0
    %v554 = vadd.f32 %v511, %v553
    %555 = vdwg.mxu0
    %556 = vmatpush.msra.mxu0 %v507
    %557 = vmatpush.msra.mxu0 %v504
    %558 = vmatpush.msra.mxu0 %v501
    %559 = vmatpush.msra.mxu0 %v498
    %560 = vmatpush.msra.mxu0 %v495
    %561 = vmatpush.msra.mxu0 %v492
    %562 = vmatpush.msra.mxu0 %v489
    %563 = vmatpush.msra.mxu0 %v486
    %564 = vmatpush.msra.mxu0 %v483
    %565 = vmatpush.msra.mxu0 %v480
    %566 = vmatpush.msra.mxu0 %v477
    %567 = vmatpush.msra.mxu0 %v474
    %568 = vmatpush.msra.mxu0 %v471
    %569 = vmatpush.msra.mxu0 %v468
    %570 = vmatpush.msra.mxu0 %v465
    %571 = vmatpush.msra.mxu0 %v462
    %572 = vmatmul.f32.gmra.mxu0 %v459
    %v573 = vpop.f32.mrf.mxu0
    %v574 = vadd.f32 %v512, %v573
    %575 = vdwg.mxu0
    %s576 = scalar_lea.vmem [#allocation7], 384
    %v577 = vld [vmem:[%s576] sm:$0xff]
    %v578 = vld [vmem:[%s576 + $0x8] sm:$0xff]
    %v579 = vld [vmem:[%s576 + $0x10] sm:$0xff]
    %v580 = vld [vmem:[%s576 + $0x18] sm:$0xff]
    %v581 = vld [vmem:[%s576 + $0x20] sm:$0xff]
    %v582 = vld [vmem:[%s576 + $0x28] sm:$0xff]
    %v583 = vld [vmem:[%s576 + $0x30] sm:$0xff]
    %v584 = vld [vmem:[%s576 + $0x38] sm:$0xff]
    %v585 = vld [vmem:[%s576 + $0x40] sm:$0xff]
    %v586 = vld [vmem:[%s576 + $0x48] sm:$0xff]
    %v587 = vld [vmem:[%s576 + $0x50] sm:$0xff]
    %v588 = vld [vmem:[%s576 + $0x58] sm:$0xff]
    %v589 = vld [vmem:[%s576 + $0x60] sm:$0xff]
    %v590 = vld [vmem:[%s576 + $0x68] sm:$0xff]
    %v591 = vld [vmem:[%s576 + $0x70] sm:$0xff]
    %v592 = vld [vmem:[%s576 + $0x78] sm:$0xff]
    %v593 = vld [vmem:[%s576 + $0x80] sm:$0xff]
    %v594 = vld [vmem:[%s576 + $0x88] sm:$0xff]
    %v595 = vld [vmem:[%s576 + $0x90] sm:$0xff]
    %v596 = vld [vmem:[%s576 + $0x98] sm:$0xff]
    %v597 = vld [vmem:[%s576 + $0xa0] sm:$0xff]
    %v598 = vld [vmem:[%s576 + $0xa8] sm:$0xff]
    %v599 = vld [vmem:[%s576 + $0xb0] sm:$0xff]
    %v600 = vld [vmem:[%s576 + $0xb8] sm:$0xff]
    %v601 = vld [vmem:[%s576 + $0xc0] sm:$0xff]
    %v602 = vld [vmem:[%s576 + $0xc8] sm:$0xff]
    %v603 = vld [vmem:[%s576 + $0xd0] sm:$0xff]
    %v604 = vld [vmem:[%s576 + $0xd8] sm:$0xff]
    %v605 = vld [vmem:[%s576 + $0xe0] sm:$0xff]
    %v606 = vld [vmem:[%s576 + $0xe8] sm:$0xff]
    %v607 = vld [vmem:[%s576 + $0xf0] sm:$0xff]
    %v608 = vld [vmem:[%s576 + $0xf8] sm:$0xff]
    %v609 = vld [vmem:[%s576 + $0x100] sm:$0xff]
    %v610 = vld [vmem:[%s576 + $0x108] sm:$0xff]
    %v611 = vld [vmem:[%s576 + $0x110] sm:$0xff]
    %v612 = vld [vmem:[%s576 + $0x118] sm:$0xff]
    %v613 = vld [vmem:[%s576 + $0x120] sm:$0xff]
    %v614 = vld [vmem:[%s576 + $0x128] sm:$0xff]
    %v615 = vld [vmem:[%s576 + $0x130] sm:$0xff]
    %v616 = vld [vmem:[%s576 + $0x138] sm:$0xff]
    %v617 = vld [vmem:[%s576 + $0x140] sm:$0xff]
    %v618 = vld [vmem:[%s576 + $0x148] sm:$0xff]
    %v619 = vld [vmem:[%s576 + $0x150] sm:$0xff]
    %v620 = vld [vmem:[%s576 + $0x158] sm:$0xff]
    %v621 = vld [vmem:[%s576 + $0x160] sm:$0xff]
    %v622 = vld [vmem:[%s576 + $0x168] sm:$0xff]
    %v623 = vld [vmem:[%s576 + $0x170] sm:$0xff]
    %v624 = vld [vmem:[%s576 + $0x178] sm:$0xff]
    %625 = vmatpush.msra.mxu0 %v622
    %626 = vmatpush.msra.mxu0 %v619
    %627 = vmatpush.msra.mxu0 %v616
    %628 = vmatpush.msra.mxu0 %v613
    %629 = vmatpush.msra.mxu0 %v610
    %630 = vmatpush.msra.mxu0 %v607
    %631 = vmatpush.msra.mxu0 %v604
    %632 = vmatpush.msra.mxu0 %v601
    %633 = vmatpush.msra.mxu0 %v598
    %634 = vmatpush.msra.mxu0 %v595
    %635 = vmatpush.msra.mxu0 %v592
    %636 = vmatpush.msra.mxu0 %v589
    %637 = vmatpush.msra.mxu0 %v586
    %638 = vmatpush.msra.mxu0 %v583
    %639 = vmatpush.msra.mxu0 %v580
    %640 = vmatpush.msra.mxu0 %v577
    %641 = vmatmul.f32.gmra.mxu0 %v293
    %v642 = vpop.f32.mrf.mxu0
    %v643 = vadd.f32 0.0, %v642
    %644 = vdwg.mxu0
    %645 = vmatpush.msra.mxu0 %v623
    %646 = vmatpush.msra.mxu0 %v620
    %647 = vmatpush.msra.mxu0 %v617
    %648 = vmatpush.msra.mxu0 %v614
    %649 = vmatpush.msra.mxu0 %v611
    %650 = vmatpush.msra.mxu0 %v608
    %651 = vmatpush.msra.mxu0 %v605
    %652 = vmatpush.msra.mxu0 %v602
    %653 = vmatpush.msra.mxu0 %v599
    %654 = vmatpush.msra.mxu0 %v596
    %655 = vmatpush.msra.mxu0 %v593
    %656 = vmatpush.msra.mxu0 %v590
    %657 = vmatpush.msra.mxu0 %v587
    %658 = vmatpush.msra.mxu0 %v584
    %659 = vmatpush.msra.mxu0 %v581
    %660 = vmatpush.msra.mxu0 %v578
    %661 = vmatmul.f32.gmra.mxu0 %v293
    %v662 = vpop.f32.mrf.mxu0
    %v663 = vadd.f32 0.0, %v662
    %664 = vdwg.mxu0
    %665 = vmatpush.msra.mxu0 %v624
    %666 = vmatpush.msra.mxu0 %v621
    %667 = vmatpush.msra.mxu0 %v618
    %668 = vmatpush.msra.mxu0 %v615
    %669 = vmatpush.msra.mxu0 %v612
    %670 = vmatpush.msra.mxu0 %v609
    %671 = vmatpush.msra.mxu0 %v606
    %672 = vmatpush.msra.mxu0 %v603
    %673 = vmatpush.msra.mxu0 %v600
    %674 = vmatpush.msra.mxu0 %v597
    %675 = vmatpush.msra.mxu0 %v594
    %676 = vmatpush.msra.mxu0 %v591
    %677 = vmatpush.msra.mxu0 %v588
    %678 = vmatpush.msra.mxu0 %v585
    %679 = vmatpush.msra.mxu0 %v582
    %680 = vmatpush.msra.mxu0 %v579
    %681 = vmatmul.f32.gmra.mxu0 %v293
    %v682 = vpop.f32.mrf.mxu0
    %v683 = vadd.f32 0.0, %v682
    %684 = vdwg.mxu0
    %s685 = scalar_lea.vmem %s6, 1
    %v686 = vld [vmem:[%s685] sm:$0x1]
    %v687 = vadd.f32 %v534, %v643
    %v688 = vxor.u32 %v687, 2147483648
    %v689 = vmul.f32 %v688, 1.442695
    %v690 = vpow.pop %v689
    %v691 = vadd.f32 %v690, 1.0
    %v692 = vrcp.pop %v691
    %v693 = vmul.f32 %v691, %v692
    %v694 = vsub.f32 1.0, %v693
    %v695 = vmul.f32 %v692, %v694
    %v696 = vadd.f32 %v692, %v695
    %vm697 = vweird.f32 %v691
    %vm698 = vweird.f32 %v692
    %vm699 = vmor %vm697, %vm698
    %v700 = vsel %vm699, %v692, %v696
    %v701 = vand.u32 2147483647, %v691
    %vm702 = vcmp.eq.f32.partialorder %v701, 8.507059e+37
    %v703 = vand.u32 %v691, 2147483648
    %v704 = vor.u32 1.1754944e-38, %v703
    %v705 = vsel %vm702, %v704, %v700
    %v706 = vmul.f32 1.0, %v705
    %v707 = vadd.f32 %v554, %v663
    %v708 = vxor.u32 %v707, 2147483648
    %v709 = vmul.f32 %v708, 1.442695
    %v710 = vpow.pop %v709
    %v711 = vadd.f32 %v710, 1.0
    %v712 = vrcp.pop %v711
    %v713 = vmul.f32 %v711, %v712
    %v714 = vsub.f32 1.0, %v713
    %v715 = vmul.f32 %v712, %v714
    %v716 = vadd.f32 %v712, %v715
    %vm717 = vweird.f32 %v711
    %vm718 = vweird.f32 %v712
    %vm719 = vmor %vm717, %vm718
    %v720 = vsel %vm719, %v712, %v716
    %v721 = vand.u32 2147483647, %v711
    %vm722 = vcmp.eq.f32.partialorder %v721, 8.507059e+37
    %v723 = vand.u32 %v711, 2147483648
    %v724 = vor.u32 1.1754944e-38, %v723
    %v725 = vsel %vm722, %v724, %v720
    %v726 = vmul.f32 1.0, %v725
    %v728 = vperm.slane %v686, 0
    %v730 = vadd.f32 %v683, %v728
    %v731 = vmul.f32 %v706, %v730
    %v732 = vadd.f32 %v574, %v731
    %v733 = vtanh.pop %v732
    %v734 = vsub.f32 1.0, %v726
    %v735 = vmul.f32 %v734, %v733
    %v736 = vmul.f32 %v726, %v293
    %v737 = vadd.f32 %v735, %v736
    %s738 = smul.u32 1, 3
    %s739 = smul.addr %s738, 8
    %s740 = scalar_lea.vmem [#allocation3], %s739
    %v741 = vld [vmem:[%s740] sm:$0xff]
    %v742 = vld [vmem:[%s740 + $0x8] sm:$0xff]
    %v743 = vld [vmem:[%s740 + $0x10] sm:$0xff]
    %744 = vmatpush.msra.mxu0 %v345
    %745 = vmatpush.msra.mxu0 %v342
    %746 = vmatpush.msra.mxu0 %v339
    %747 = vmatpush.msra.mxu0 %v336
    %748 = vmatpush.msra.mxu0 %v333
    %749 = vmatpush.msra.mxu0 %v330
    %750 = vmatpush.msra.mxu0 %v327
    %751 = vmatpush.msra.mxu0 %v324
    %752 = vmatpush.msra.mxu0 %v321
    %753 = vmatpush.msra.mxu0 %v318
    %754 = vmatpush.msra.mxu0 %v315
    %755 = vmatpush.msra.mxu0 %v312
    %756 = vmatpush.msra.mxu0 %v309
    %757 = vmatpush.msra.mxu0 %v306
    %758 = vmatpush.msra.mxu0 %v303
    %759 = vmatpush.msra.mxu0 %v300
    %760 = vmatmul.f32.gmra.mxu0 %v459
    %v761 = vpop.f32.mrf.mxu0
    %v762 = vadd.f32 0.0, %v761
    %763 = vdwg.mxu0
    %764 = vmatpush.msra.mxu0 %v346
    %765 = vmatpush.msra.mxu0 %v343
    %766 = vmatpush.msra.mxu0 %v340
    %767 = vmatpush.msra.mxu0 %v337
    %768 = vmatpush.msra.mxu0 %v334
    %769 = vmatpush.msra.mxu0 %v331
    %770 = vmatpush.msra.mxu0 %v328
    %771 = vmatpush.msra.mxu0 %v325
    %772 = vmatpush.msra.mxu0 %v322
    %773 = vmatpush.msra.mxu0 %v319
    %774 = vmatpush.msra.mxu0 %v316
    %775 = vmatpush.msra.mxu0 %v313
    %776 = vmatpush.msra.mxu0 %v310
    %777 = vmatpush.msra.mxu0 %v307
    %778 = vmatpush.msra.mxu0 %v304
    %779 = vmatpush.msra.mxu0 %v301
    %780 = vmatmul.f32.gmra.mxu0 %v459
    %v781 = vpop.f32.mrf.mxu0
    %v782 = vadd.f32 0.0, %v781
    %783 = vdwg.mxu0
    %784 = vmatpush.msra.mxu0 %v347
    %785 = vmatpush.msra.mxu0 %v344
    %786 = vmatpush.msra.mxu0 %v341
    %787 = vmatpush.msra.mxu0 %v338
    %788 = vmatpush.msra.mxu0 %v335
    %789 = vmatpush.msra.mxu0 %v332
    %790 = vmatpush.msra.mxu0 %v329
    %791 = vmatpush.msra.mxu0 %v326
    %792 = vmatpush.msra.mxu0 %v323
    %793 = vmatpush.msra.mxu0 %v320
    %794 = vmatpush.msra.mxu0 %v317
    %795 = vmatpush.msra.mxu0 %v314
    %796 = vmatpush.msra.mxu0 %v311
    %797 = vmatpush.msra.mxu0 %v308
    %798 = vmatpush.msra.mxu0 %v305
    %799 = vmatpush.msra.mxu0 %v302
    %800 = vmatmul.f32.gmra.mxu0 %v459
    %v801 = vpop.f32.mrf.mxu0
    %v802 = vadd.f32 0.0, %v801
    %803 = vdwg.mxu0
    %v804 = vadd.f32 %v741, %v762
    %v805 = vxor.u32 %v804, 2147483648
    %v806 = vmul.f32 %v805, 1.442695
    %v807 = vpow.pop %v806
    %v808 = vadd.f32 %v807, 1.0
    %v809 = vrcp.pop %v808
    %v810 = vmul.f32 %v808, %v809
    %v811 = vsub.f32 1.0, %v810
    %v812 = vmul.f32 %v809, %v811
    %v813 = vadd.f32 %v809, %v812
    %vm814 = vweird.f32 %v808
    %vm815 = vweird.f32 %v809
    %vm816 = vmor %vm814, %vm815
    %v817 = vsel %vm816, %v809, %v813
    %v818 = vand.u32 2147483647, %v808
    %vm819 = vcmp.eq.f32.partialorder %v818, 8.507059e+37
    %v820 = vand.u32 %v808, 2147483648
    %v821 = vor.u32 1.1754944e-38, %v820
    %v822 = vsel %vm819, %v821, %v817
    %v823 = vmul.f32 1.0, %v822
    %v824 = vadd.f32 %v742, %v782
    %v825 = vxor.u32 %v824, 2147483648
    %v826 = vmul.f32 %v825, 1.442695
    %v827 = vpow.pop %v826
    %v828 = vadd.f32 %v827, 1.0
    %v829 = vrcp.pop %v828
    %v830 = vmul.f32 %v828, %v829
    %v831 = vsub.f32 1.0, %v830
    %v832 = vmul.f32 %v829, %v831
    %v833 = vadd.f32 %v829, %v832
    %vm834 = vweird.f32 %v828
    %vm835 = vweird.f32 %v829
    %vm836 = vmor %vm834, %vm835
    %v837 = vsel %vm836, %v829, %v833
    %v838 = vand.u32 2147483647, %v828
    %vm839 = vcmp.eq.f32.partialorder %v838, 8.507059e+37
    %v840 = vand.u32 %v828, 2147483648
    %v841 = vor.u32 1.1754944e-38, %v840
    %v842 = vsel %vm839, %v841, %v837
    %v843 = vmul.f32 1.0, %v842
    %v844 = vadd.f32 %v802, %v450
    %v845 = vmul.f32 %v823, %v844
    %v846 = vadd.f32 %v743, %v845
    %v847 = vtanh.pop %v846
    %v848 = vsub.f32 1.0, %v843
    %v849 = vmul.f32 %v848, %v847
    %v850 = vmul.f32 %v843, %v459
    %v851 = vadd.f32 %v849, %v850
    %852 = vmatpush.msra.mxu0 %v505
    %853 = vmatpush.msra.mxu0 %v502
    %854 = vmatpush.msra.mxu0 %v499
    %855 = vmatpush.msra.mxu0 %v496
    %856 = vmatpush.msra.mxu0 %v493
    %857 = vmatpush.msra.mxu0 %v490
    %858 = vmatpush.msra.mxu0 %v487
    %859 = vmatpush.msra.mxu0 %v484
    %860 = vmatpush.msra.mxu0 %v481
    %861 = vmatpush.msra.mxu0 %v478
    %862 = vmatpush.msra.mxu0 %v475
    %863 = vmatpush.msra.mxu0 %v472
    %864 = vmatpush.msra.mxu0 %v469
    %865 = vmatpush.msra.mxu0 %v466
    %866 = vmatpush.msra.mxu0 %v463
    %867 = vmatpush.msra.mxu0 %v460
    %868 = vmatmul.f32.gmra.mxu0 %v851
    %v869 = vpop.f32.mrf.mxu0
    %v870 = vadd.f32 %v510, %v869
    %871 = vdwg.mxu0
    %872 = vmatpush.msra.mxu0 %v506
    %873 = vmatpush.msra.mxu0 %v503
    %874 = vmatpush.msra.mxu0 %v500
    %875 = vmatpush.msra.mxu0 %v497
    %876 = vmatpush.msra.mxu0 %v494
    %877 = vmatpush.msra.mxu0 %v491
    %878 = vmatpush.msra.mxu0 %v488
    %879 = vmatpush.msra.mxu0 %v485
    %880 = vmatpush.msra.mxu0 %v482
    %881 = vmatpush.msra.mxu0 %v479
    %882 = vmatpush.msra.mxu0 %v476
    %883 = vmatpush.msra.mxu0 %v473
    %884 = vmatpush.msra.mxu0 %v470
    %885 = vmatpush.msra.mxu0 %v467
    %886 = vmatpush.msra.mxu0 %v464
    %887 = vmatpush.msra.mxu0 %v461
    %888 = vmatmul.f32.gmra.mxu0 %v851
    %v889 = vpop.f32.mrf.mxu0
    %v890 = vadd.f32 %v511, %v889
    %891 = vdwg.mxu0
    %892 = vmatpush.msra.mxu0 %v507
    %893 = vmatpush.msra.mxu0 %v504
    %894 = vmatpush.msra.mxu0 %v501
    %895 = vmatpush.msra.mxu0 %v498
    %896 = vmatpush.msra.mxu0 %v495
    %897 = vmatpush.msra.mxu0 %v492
    %898 = vmatpush.msra.mxu0 %v489
    %899 = vmatpush.msra.mxu0 %v486
    %900 = vmatpush.msra.mxu0 %v483
    %901 = vmatpush.msra.mxu0 %v480
    %902 = vmatpush.msra.mxu0 %v477
    %903 = vmatpush.msra.mxu0 %v474
    %904 = vmatpush.msra.mxu0 %v471
    %905 = vmatpush.msra.mxu0 %v468
    %906 = vmatpush.msra.mxu0 %v465
    %907 = vmatpush.msra.mxu0 %v462
    %908 = vmatmul.f32.gmra.mxu0 %v851
    %v909 = vpop.f32.mrf.mxu0
    %v910 = vadd.f32 %v512, %v909
    %911 = vdwg.mxu0
    %912 = vmatpush.msra.mxu0 %v622
    %913 = vmatpush.msra.mxu0 %v619
    %914 = vmatpush.msra.mxu0 %v616
    %915 = vmatpush.msra.mxu0 %v613
    %916 = vmatpush.msra.mxu0 %v610
    %917 = vmatpush.msra.mxu0 %v607
    %918 = vmatpush.msra.mxu0 %v604
    %919 = vmatpush.msra.mxu0 %v601
    %920 = vmatpush.msra.mxu0 %v598
    %921 = vmatpush.msra.mxu0 %v595
    %922 = vmatpush.msra.mxu0 %v592
    %923 = vmatpush.msra.mxu0 %v589
    %924 = vmatpush.msra.mxu0 %v586
    %925 = vmatpush.msra.mxu0 %v583
    %926 = vmatpush.msra.mxu0 %v580
    %927 = vmatpush.msra.mxu0 %v577
    %928 = vmatmul.f32.gmra.mxu0 %v737
    %v929 = vpop.f32.mrf.mxu0
    %v930 = vadd.f32 0.0, %v929
    %931 = vdwg.mxu0
    %932 = vmatpush.msra.mxu0 %v623
    %933 = vmatpush.msra.mxu0 %v620
    %934 = vmatpush.msra.mxu0 %v617
    %935 = vmatpush.msra.mxu0 %v614
    %936 = vmatpush.msra.mxu0 %v611
    %937 = vmatpush.msra.mxu0 %v608
    %938 = vmatpush.msra.mxu0 %v605
    %939 = vmatpush.msra.mxu0 %v602
    %940 = vmatpush.msra.mxu0 %v599
    %941 = vmatpush.msra.mxu0 %v596
    %942 = vmatpush.msra.mxu0 %v593
    %943 = vmatpush.msra.mxu0 %v590
    %944 = vmatpush.msra.mxu0 %v587
    %945 = vmatpush.msra.mxu0 %v584
    %946 = vmatpush.msra.mxu0 %v581
    %947 = vmatpush.msra.mxu0 %v578
    %948 = vmatmul.f32.gmra.mxu0 %v737
    %v949 = vpop.f32.mrf.mxu0
    %v950 = vadd.f32 0.0, %v949
    %951 = vdwg.mxu0
    %952 = vmatpush.msra.mxu0 %v624
    %953 = vmatpush.msra.mxu0 %v621
    %954 = vmatpush.msra.mxu0 %v618
    %955 = vmatpush.msra.mxu0 %v615
    %956 = vmatpush.msra.mxu0 %v612
    %957 = vmatpush.msra.mxu0 %v609
    %958 = vmatpush.msra.mxu0 %v606
    %959 = vmatpush.msra.mxu0 %v603
    %960 = vmatpush.msra.mxu0 %v600
    %961 = vmatpush.msra.mxu0 %v597
    %962 = vmatpush.msra.mxu0 %v594
    %963 = vmatpush.msra.mxu0 %v591
    %964 = vmatpush.msra.mxu0 %v588
    %965 = vmatpush.msra.mxu0 %v585
    %966 = vmatpush.msra.mxu0 %v582
    %967 = vmatpush.msra.mxu0 %v579
    %968 = vmatmul.f32.gmra.mxu0 %v737
    %v969 = vpop.f32.mrf.mxu0
    %v970 = vadd.f32 0.0, %v969
    %971 = vdwg.mxu0
    %v972 = vadd.f32 %v870, %v930
    %v973 = vxor.u32 %v972, 2147483648
    %v974 = vmul.f32 %v973, 1.442695
    %v975 = vpow.pop %v974
    %v976 = vadd.f32 %v975, 1.0
    %v977 = vrcp.pop %v976
    %v978 = vmul.f32 %v976, %v977
    %v979 = vsub.f32 1.0, %v978
    %v980 = vmul.f32 %v977, %v979
    %v981 = vadd.f32 %v977, %v980
    %vm982 = vweird.f32 %v976
    %vm983 = vweird.f32 %v977
    %vm984 = vmor %vm982, %vm983
    %v985 = vsel %vm984, %v977, %v981
    %v986 = vand.u32 2147483647, %v976
    %vm987 = vcmp.eq.f32.partialorder %v986, 8.507059e+37
    %v988 = vand.u32 %v976, 2147483648
    %v989 = vor.u32 1.1754944e-38, %v988
    %v990 = vsel %vm987, %v989, %v985
    %v991 = vmul.f32 1.0, %v990
    %v992 = vadd.f32 %v890, %v950
    %v993 = vxor.u32 %v992, 2147483648
    %v994 = vmul.f32 %v993, 1.442695
    %v995 = vpow.pop %v994
    %v996 = vadd.f32 %v995, 1.0
    %v997 = vrcp.pop %v996
    %v998 = vmul.f32 %v996, %v997
    %v999 = vsub.f32 1.0, %v998
    %v1000 = vmul.f32 %v997, %v999
    %v1001 = vadd.f32 %v997, %v1000
    %vm1002 = vweird.f32 %v996
    %vm1003 = vweird.f32 %v997
    %vm1004 = vmor %vm1002, %vm1003
    %v1005 = vsel %vm1004, %v997, %v1001
    %v1006 = vand.u32 2147483647, %v996
    %vm1007 = vcmp.eq.f32.partialorder %v1006, 8.507059e+37
    %v1008 = vand.u32 %v996, 2147483648
    %v1009 = vor.u32 1.1754944e-38, %v1008
    %v1010 = vsel %vm1007, %v1009, %v1005
    %v1011 = vmul.f32 1.0, %v1010
    %v1012 = vadd.f32 %v970, %v728
    %v1013 = vmul.f32 %v991, %v1012
    %v1014 = vadd.f32 %v910, %v1013
    %v1015 = vtanh.pop %v1014
    %v1016 = vsub.f32 1.0, %v1011
    %v1017 = vmul.f32 %v1016, %v1015
    %v1018 = vmul.f32 %v1011, %v737
    %v1019 = vadd.f32 %v1017, %v1018
    %s1020 = smul.u32 2, 3
    %s1021 = smul.addr %s1020, 8
    %s1022 = scalar_lea.vmem [#allocation3], %s1021
    %v1023 = vld [vmem:[%s1022] sm:$0xff]
    %v1024 = vld [vmem:[%s1022 + $0x8] sm:$0xff]
    %v1025 = vld [vmem:[%s1022 + $0x10] sm:$0xff]
    %1026 = vmatpush.msra.mxu0 %v345
    %1027 = vmatpush.msra.mxu0 %v342
    %1028 = vmatpush.msra.mxu0 %v339
    %1029 = vmatpush.msra.mxu0 %v336
    %1030 = vmatpush.msra.mxu0 %v333
    %1031 = vmatpush.msra.mxu0 %v330
    %1032 = vmatpush.msra.mxu0 %v327
    %1033 = vmatpush.msra.mxu0 %v324
    %1034 = vmatpush.msra.mxu0 %v321
    %1035 = vmatpush.msra.mxu0 %v318
    %1036 = vmatpush.msra.mxu0 %v315
    %1037 = vmatpush.msra.mxu0 %v312
    %1038 = vmatpush.msra.mxu0 %v309
    %1039 = vmatpush.msra.mxu0 %v306
    %1040 = vmatpush.msra.mxu0 %v303
    %1041 = vmatpush.msra.mxu0 %v300
    %1042 = vmatmul.f32.gmra.mxu0 %v851
    %v1043 = vpop.f32.mrf.mxu0
    %v1044 = vadd.f32 0.0, %v1043
    %1045 = vdwg.mxu0
    %1046 = vmatpush.msra.mxu0 %v346
    %1047 = vmatpush.msra.mxu0 %v343
    %1048 = vmatpush.msra.mxu0 %v340
    %1049 = vmatpush.msra.mxu0 %v337
    %1050 = vmatpush.msra.mxu0 %v334
    %1051 = vmatpush.msra.mxu0 %v331
    %1052 = vmatpush.msra.mxu0 %v328
    %1053 = vmatpush.msra.mxu0 %v325
    %1054 = vmatpush.msra.mxu0 %v322
    %1055 = vmatpush.msra.mxu0 %v319
    %1056 = vmatpush.msra.mxu0 %v316
    %1057 = vmatpush.msra.mxu0 %v313
    %1058 = vmatpush.msra.mxu0 %v310
    %1059 = vmatpush.msra.mxu0 %v307
    %1060 = vmatpush.msra.mxu0 %v304
    %1061 = vmatpush.msra.mxu0 %v301
    %1062 = vmatmul.f32.gmra.mxu0 %v851
    %v1063 = vpop.f32.mrf.mxu0
    %v1064 = vadd.f32 0.0, %v1063
    %1065 = vdwg.mxu0
    %1066 = vmatpush.msra.mxu0 %v347
    %1067 = vmatpush.msra.mxu0 %v344
    %1068 = vmatpush.msra.mxu0 %v341
    %1069 = vmatpush.msra.mxu0 %v338
    %1070 = vmatpush.msra.mxu0 %v335
    %1071 = vmatpush.msra.mxu0 %v332
    %1072 = vmatpush.msra.mxu0 %v329
    %1073 = vmatpush.msra.mxu0 %v326
    %1074 = vmatpush.msra.mxu0 %v323
    %1075 = vmatpush.msra.mxu0 %v320
    %1076 = vmatpush.msra.mxu0 %v317
    %1077 = vmatpush.msra.mxu0 %v314
    %1078 = vmatpush.msra.mxu0 %v311
    %1079 = vmatpush.msra.mxu0 %v308
    %1080 = vmatpush.msra.mxu0 %v305
    %1081 = vmatpush.msra.mxu0 %v302
    %1082 = vmatmul.f32.gmra.mxu0 %v851
    %v1083 = vpop.f32.mrf.mxu0
    %v1084 = vadd.f32 0.0, %v1083
    %1085 = vdwg.mxu0
    %v1086 = vadd.f32 %v1023, %v1044
    %v1087 = vxor.u32 %v1086, 2147483648
    %v1088 = vmul.f32 %v1087, 1.442695
    %v1089 = vpow.pop %v1088
    %v1090 = vadd.f32 %v1089, 1.0
    %v1091 = vrcp.pop %v1090
    %v1092 = vmul.f32 %v1090, %v1091
    %v1093 = vsub.f32 1.0, %v1092
    %v1094 = vmul.f32 %v1091, %v1093
    %v1095 = vadd.f32 %v1091, %v1094
    %vm1096 = vweird.f32 %v1090
    %vm1097 = vweird.f32 %v1091
    %vm1098 = vmor %vm1096, %vm1097
    %v1099 = vsel %vm1098, %v1091, %v1095
    %v1100 = vand.u32 2147483647, %v1090
    %vm1101 = vcmp.eq.f32.partialorder %v1100, 8.507059e+37
    %v1102 = vand.u32 %v1090, 2147483648
    %v1103 = vor.u32 1.1754944e-38, %v1102
    %v1104 = vsel %vm1101, %v1103, %v1099
    %v1105 = vmul.f32 1.0, %v1104
    %v1106 = vadd.f32 %v1024, %v1064
    %v1107 = vxor.u32 %v1106, 2147483648
    %v1108 = vmul.f32 %v1107, 1.442695
    %v1109 = vpow.pop %v1108
    %v1110 = vadd.f32 %v1109, 1.0
    %v1111 = vrcp.pop %v1110
    %v1112 = vmul.f32 %v1110, %v1111
    %v1113 = vsub.f32 1.0, %v1112
    %v1114 = vmul.f32 %v1111, %v1113
    %v1115 = vadd.f32 %v1111, %v1114
    %vm1116 = vweird.f32 %v1110
    %vm1117 = vweird.f32 %v1111
    %vm1118 = vmor %vm1116, %vm1117
    %v1119 = vsel %vm1118, %v1111, %v1115
    %v1120 = vand.u32 2147483647, %v1110
    %vm1121 = vcmp.eq.f32.partialorder %v1120, 8.507059e+37
    %v1122 = vand.u32 %v1110, 2147483648
    %v1123 = vor.u32 1.1754944e-38, %v1122
    %v1124 = vsel %vm1121, %v1123, %v1119
    %v1125 = vmul.f32 1.0, %v1124
    %v1126 = vadd.f32 %v1084, %v450
    %v1127 = vmul.f32 %v1105, %v1126
    %v1128 = vadd.f32 %v1025, %v1127
    %v1129 = vtanh.pop %v1128
    %v1130 = vsub.f32 1.0, %v1125
    %v1131 = vmul.f32 %v1130, %v1129
    %v1132 = vmul.f32 %v1125, %v851
    %v1133 = vadd.f32 %v1131, %v1132
    %1134 = vmatpush.msra.mxu0 %v505
    %1135 = vmatpush.msra.mxu0 %v502
    %1136 = vmatpush.msra.mxu0 %v499
    %1137 = vmatpush.msra.mxu0 %v496
    %1138 = vmatpush.msra.mxu0 %v493
    %1139 = vmatpush.msra.mxu0 %v490
    %1140 = vmatpush.msra.mxu0 %v487
    %1141 = vmatpush.msra.mxu0 %v484
    %1142 = vmatpush.msra.mxu0 %v481
    %1143 = vmatpush.msra.mxu0 %v478
    %1144 = vmatpush.msra.mxu0 %v475
    %1145 = vmatpush.msra.mxu0 %v472
    %1146 = vmatpush.msra.mxu0 %v469
    %1147 = vmatpush.msra.mxu0 %v466
    %1148 = vmatpush.msra.mxu0 %v463
    %1149 = vmatpush.msra.mxu0 %v460
    %1150 = vmatmul.f32.gmra.mxu0 %v1133
    %v1151 = vpop.f32.mrf.mxu0
    %v1152 = vadd.f32 %v510, %v1151
    %1153 = vdwg.mxu0
    %1154 = vmatpush.msra.mxu0 %v506
    %1155 = vmatpush.msra.mxu0 %v503
    %1156 = vmatpush.msra.mxu0 %v500
    %1157 = vmatpush.msra.mxu0 %v497
    %1158 = vmatpush.msra.mxu0 %v494
    %1159 = vmatpush.msra.mxu0 %v491
    %1160 = vmatpush.msra.mxu0 %v488
    %1161 = vmatpush.msra.mxu0 %v485
    %1162 = vmatpush.msra.mxu0 %v482
    %1163 = vmatpush.msra.mxu0 %v479
    %1164 = vmatpush.msra.mxu0 %v476
    %1165 = vmatpush.msra.mxu0 %v473
    %1166 = vmatpush.msra.mxu0 %v470
    %1167 = vmatpush.msra.mxu0 %v467
    %1168 = vmatpush.msra.mxu0 %v464
    %1169 = vmatpush.msra.mxu0 %v461
    %1170 = vmatmul.f32.gmra.mxu0 %v1133
    %v1171 = vpop.f32.mrf.mxu0
    %v1172 = vadd.f32 %v511, %v1171
    %1173 = vdwg.mxu0
    %1174 = vmatpush.msra.mxu0 %v507
    %1175 = vmatpush.msra.mxu0 %v504
    %1176 = vmatpush.msra.mxu0 %v501
    %1177 = vmatpush.msra.mxu0 %v498
    %1178 = vmatpush.msra.mxu0 %v495
    %1179 = vmatpush.msra.mxu0 %v492
    %1180 = vmatpush.msra.mxu0 %v489
    %1181 = vmatpush.msra.mxu0 %v486
    %1182 = vmatpush.msra.mxu0 %v483
    %1183 = vmatpush.msra.mxu0 %v480
    %1184 = vmatpush.msra.mxu0 %v477
    %1185 = vmatpush.msra.mxu0 %v474
    %1186 = vmatpush.msra.mxu0 %v471
    %1187 = vmatpush.msra.mxu0 %v468
    %1188 = vmatpush.msra.mxu0 %v465
    %1189 = vmatpush.msra.mxu0 %v462
    %1190 = vmatmul.f32.gmra.mxu0 %v1133
    %v1191 = vpop.f32.mrf.mxu0
    %v1192 = vadd.f32 %v512, %v1191
    %1193 = vdwg.mxu0
    %1194 = vmatpush.msra.mxu0 %v622
    %1195 = vmatpush.msra.mxu0 %v619
    %1196 = vmatpush.msra.mxu0 %v616
    %1197 = vmatpush.msra.mxu0 %v613
    %1198 = vmatpush.msra.mxu0 %v610
    %1199 = vmatpush.msra.mxu0 %v607
    %1200 = vmatpush.msra.mxu0 %v604
    %1201 = vmatpush.msra.mxu0 %v601
    %1202 = vmatpush.msra.mxu0 %v598
    %1203 = vmatpush.msra.mxu0 %v595
    %1204 = vmatpush.msra.mxu0 %v592
    %1205 = vmatpush.msra.mxu0 %v589
    %1206 = vmatpush.msra.mxu0 %v586
    %1207 = vmatpush.msra.mxu0 %v583
    %1208 = vmatpush.msra.mxu0 %v580
    %1209 = vmatpush.msra.mxu0 %v577
    %1210 = vmatmul.f32.gmra.mxu0 %v1019
    %v1211 = vpop.f32.mrf.mxu0
    %v1212 = vadd.f32 0.0, %v1211
    %1213 = vdwg.mxu0
    %1214 = vmatpush.msra.mxu0 %v623
    %1215 = vmatpush.msra.mxu0 %v620
    %1216 = vmatpush.msra.mxu0 %v617
    %1217 = vmatpush.msra.mxu0 %v614
    %1218 = vmatpush.msra.mxu0 %v611
    %1219 = vmatpush.msra.mxu0 %v608
    %1220 = vmatpush.msra.mxu0 %v605
    %1221 = vmatpush.msra.mxu0 %v602
    %1222 = vmatpush.msra.mxu0 %v599
    %1223 = vmatpush.msra.mxu0 %v596
    %1224 = vmatpush.msra.mxu0 %v593
    %1225 = vmatpush.msra.mxu0 %v590
    %1226 = vmatpush.msra.mxu0 %v587
    %1227 = vmatpush.msra.mxu0 %v584
    %1228 = vmatpush.msra.mxu0 %v581
    %1229 = vmatpush.msra.mxu0 %v578
    %1230 = vmatmul.f32.gmra.mxu0 %v1019
    %v1231 = vpop.f32.mrf.mxu0
    %v1232 = vadd.f32 0.0, %v1231
    %1233 = vdwg.mxu0
    %1234 = vmatpush.msra.mxu0 %v624
    %1235 = vmatpush.msra.mxu0 %v621
    %1236 = vmatpush.msra.mxu0 %v618
    %1237 = vmatpush.msra.mxu0 %v615
    %1238 = vmatpush.msra.mxu0 %v612
    %1239 = vmatpush.msra.mxu0 %v609
    %1240 = vmatpush.msra.mxu0 %v606
    %1241 = vmatpush.msra.mxu0 %v603
    %1242 = vmatpush.msra.mxu0 %v600
    %1243 = vmatpush.msra.mxu0 %v597
    %1244 = vmatpush.msra.mxu0 %v594
    %1245 = vmatpush.msra.mxu0 %v591
    %1246 = vmatpush.msra.mxu0 %v588
    %1247 = vmatpush.msra.mxu0 %v585
    %1248 = vmatpush.msra.mxu0 %v582
    %1249 = vmatpush.msra.mxu0 %v579
    %1250 = vmatmul.f32.gmra.mxu0 %v1019
    %v1251 = vpop.f32.mrf.mxu0
    %v1252 = vadd.f32 0.0, %v1251
    %1253 = vdwg.mxu0
    %v1254 = vadd.f32 %v1152, %v1212
    %v1255 = vxor.u32 %v1254, 2147483648
    %v1256 = vmul.f32 %v1255, 1.442695
    %v1257 = vpow.pop %v1256
    %v1258 = vadd.f32 %v1257, 1.0
    %v1259 = vrcp.pop %v1258
    %v1260 = vmul.f32 %v1258, %v1259
    %v1261 = vsub.f32 1.0, %v1260
    %v1262 = vmul.f32 %v1259, %v1261
    %v1263 = vadd.f32 %v1259, %v1262
    %vm1264 = vweird.f32 %v1258
    %vm1265 = vweird.f32 %v1259
    %vm1266 = vmor %vm1264, %vm1265
    %v1267 = vsel %vm1266, %v1259, %v1263
    %v1268 = vand.u32 2147483647, %v1258
    %vm1269 = vcmp.eq.f32.partialorder %v1268, 8.507059e+37
    %v1270 = vand.u32 %v1258, 2147483648
    %v1271 = vor.u32 1.1754944e-38, %v1270
    %v1272 = vsel %vm1269, %v1271, %v1267
    %v1273 = vmul.f32 1.0, %v1272
    %v1274 = vadd.f32 %v1172, %v1232
    %v1275 = vxor.u32 %v1274, 2147483648
    %v1276 = vmul.f32 %v1275, 1.442695
    %v1277 = vpow.pop %v1276
    %v1278 = vadd.f32 %v1277, 1.0
    %v1279 = vrcp.pop %v1278
    %v1280 = vmul.f32 %v1278, %v1279
    %v1281 = vsub.f32 1.0, %v1280
    %v1282 = vmul.f32 %v1279, %v1281
    %v1283 = vadd.f32 %v1279, %v1282
    %vm1284 = vweird.f32 %v1278
    %vm1285 = vweird.f32 %v1279
    %vm1286 = vmor %vm1284, %vm1285
    %v1287 = vsel %vm1286, %v1279, %v1283
    %v1288 = vand.u32 2147483647, %v1278
    %vm1289 = vcmp.eq.f32.partialorder %v1288, 8.507059e+37
    %v1290 = vand.u32 %v1278, 2147483648
    %v1291 = vor.u32 1.1754944e-38, %v1290
    %v1292 = vsel %vm1289, %v1291, %v1287
    %v1293 = vmul.f32 1.0, %v1292
    %v1294 = vadd.f32 %v1252, %v728
    %v1295 = vmul.f32 %v1273, %v1294
    %v1296 = vadd.f32 %v1192, %v1295
    %v1297 = vtanh.pop %v1296
    %v1298 = vsub.f32 1.0, %v1293
    %v1299 = vmul.f32 %v1298, %v1297
    %v1300 = vmul.f32 %v1293, %v1019
    %v1301 = vadd.f32 %v1299, %v1300
    %s1302 = smul.u32 3, 3
    %s1303 = smul.addr %s1302, 8
    %s1304 = scalar_lea.vmem [#allocation3], %s1303
    %v1305 = vld [vmem:[%s1304] sm:$0xff]
    %v1306 = vld [vmem:[%s1304 + $0x8] sm:$0xff]
    %v1307 = vld [vmem:[%s1304 + $0x10] sm:$0xff]
    %1308 = vmatpush.msra.mxu0 %v345
    %1309 = vmatpush.msra.mxu0 %v342
    %1310 = vmatpush.msra.mxu0 %v339
    %1311 = vmatpush.msra.mxu0 %v336
    %1312 = vmatpush.msra.mxu0 %v333
    %1313 = vmatpush.msra.mxu0 %v330
    %1314 = vmatpush.msra.mxu0 %v327
    %1315 = vmatpush.msra.mxu0 %v324
    %1316 = vmatpush.msra.mxu0 %v321
    %1317 = vmatpush.msra.mxu0 %v318
    %1318 = vmatpush.msra.mxu0 %v315
    %1319 = vmatpush.msra.mxu0 %v312
    %1320 = vmatpush.msra.mxu0 %v309
    %1321 = vmatpush.msra.mxu0 %v306
    %1322 = vmatpush.msra.mxu0 %v303
    %1323 = vmatpush.msra.mxu0 %v300
    %1324 = vmatmul.f32.gmra.mxu0 %v1133
    %v1325 = vpop.f32.mrf.mxu0
    %v1326 = vadd.f32 0.0, %v1325
    %1327 = vdwg.mxu0
    %1328 = vmatpush.msra.mxu0 %v346
    %1329 = vmatpush.msra.mxu0 %v343
    %1330 = vmatpush.msra.mxu0 %v340
    %1331 = vmatpush.msra.mxu0 %v337
    %1332 = vmatpush.msra.mxu0 %v334
    %1333 = vmatpush.msra.mxu0 %v331
    %1334 = vmatpush.msra.mxu0 %v328
    %1335 = vmatpush.msra.mxu0 %v325
    %1336 = vmatpush.msra.mxu0 %v322
    %1337 = vmatpush.msra.mxu0 %v319
    %1338 = vmatpush.msra.mxu0 %v316
    %1339 = vmatpush.msra.mxu0 %v313
    %1340 = vmatpush.msra.mxu0 %v310
    %1341 = vmatpush.msra.mxu0 %v307
    %1342 = vmatpush.msra.mxu0 %v304
    %1343 = vmatpush.msra.mxu0 %v301
    %1344 = vmatmul.f32.gmra.mxu0 %v1133
    %v1345 = vpop.f32.mrf.mxu0
    %v1346 = vadd.f32 0.0, %v1345
    %1347 = vdwg.mxu0
    %1348 = vmatpush.msra.mxu0 %v347
    %1349 = vmatpush.msra.mxu0 %v344
    %1350 = vmatpush.msra.mxu0 %v341
    %1351 = vmatpush.msra.mxu0 %v338
    %1352 = vmatpush.msra.mxu0 %v335
    %1353 = vmatpush.msra.mxu0 %v332
    %1354 = vmatpush.msra.mxu0 %v329
    %1355 = vmatpush.msra.mxu0 %v326
    %1356 = vmatpush.msra.mxu0 %v323
    %1357 = vmatpush.msra.mxu0 %v320
    %1358 = vmatpush.msra.mxu0 %v317
    %1359 = vmatpush.msra.mxu0 %v314
    %1360 = vmatpush.msra.mxu0 %v311
    %1361 = vmatpush.msra.mxu0 %v308
    %1362 = vmatpush.msra.mxu0 %v305
    %1363 = vmatpush.msra.mxu0 %v302
    %1364 = vmatmul.f32.gmra.mxu0 %v1133
    %v1365 = vpop.f32.mrf.mxu0
    %v1366 = vadd.f32 0.0, %v1365
    %1367 = vdwg.mxu0
    %v1368 = vadd.f32 %v1305, %v1326
    %v1369 = vxor.u32 %v1368, 2147483648
    %v1370 = vmul.f32 %v1369, 1.442695
    %v1371 = vpow.pop %v1370
    %v1372 = vadd.f32 %v1371, 1.0
    %v1373 = vrcp.pop %v1372
    %v1374 = vmul.f32 %v1372, %v1373
    %v1375 = vsub.f32 1.0, %v1374
    %v1376 = vmul.f32 %v1373, %v1375
    %v1377 = vadd.f32 %v1373, %v1376
    %vm1378 = vweird.f32 %v1372
    %vm1379 = vweird.f32 %v1373
    %vm1380 = vmor %vm1378, %vm1379
    %v1381 = vsel %vm1380, %v1373, %v1377
    %v1382 = vand.u32 2147483647, %v1372
    %vm1383 = vcmp.eq.f32.partialorder %v1382, 8.507059e+37
    %v1384 = vand.u32 %v1372, 2147483648
    %v1385 = vor.u32 1.1754944e-38, %v1384
    %v1386 = vsel %vm1383, %v1385, %v1381
    %v1387 = vmul.f32 1.0, %v1386
    %v1388 = vadd.f32 %v1306, %v1346
    %v1389 = vxor.u32 %v1388, 2147483648
    %v1390 = vmul.f32 %v1389, 1.442695
    %v1391 = vpow.pop %v1390
    %v1392 = vadd.f32 %v1391, 1.0
    %v1393 = vrcp.pop %v1392
    %v1394 = vmul.f32 %v1392, %v1393
    %v1395 = vsub.f32 1.0, %v1394
    %v1396 = vmul.f32 %v1393, %v1395
    %v1397 = vadd.f32 %v1393, %v1396
    %vm1398 = vweird.f32 %v1392
    %vm1399 = vweird.f32 %v1393
    %vm1400 = vmor %vm1398, %vm1399
    %v1401 = vsel %vm1400, %v1393, %v1397
    %v1402 = vand.u32 2147483647, %v1392
    %vm1403 = vcmp.eq.f32.partialorder %v1402, 8.507059e+37
    %v1404 = vand.u32 %v1392, 2147483648
    %v1405 = vor.u32 1.1754944e-38, %v1404
    %v1406 = vsel %vm1403, %v1405, %v1401
    %v1407 = vmul.f32 1.0, %v1406
    %v1408 = vadd.f32 %v1366, %v450
    %v1409 = vmul.f32 %v1387, %v1408
    %v1410 = vadd.f32 %v1307, %v1409
    %v1411 = vtanh.pop %v1410
    %v1412 = vsub.f32 1.0, %v1407
    %v1413 = vmul.f32 %v1412, %v1411
    %v1414 = vmul.f32 %v1407, %v1133
    %v1415 = vadd.f32 %v1413, %v1414
    %1416 = vmatpush.msra.mxu0 %v505
    %1417 = vmatpush.msra.mxu0 %v502
    %1418 = vmatpush.msra.mxu0 %v499
    %1419 = vmatpush.msra.mxu0 %v496
    %1420 = vmatpush.msra.mxu0 %v493
    %1421 = vmatpush.msra.mxu0 %v490
    %1422 = vmatpush.msra.mxu0 %v487
    %1423 = vmatpush.msra.mxu0 %v484
    %1424 = vmatpush.msra.mxu0 %v481
    %1425 = vmatpush.msra.mxu0 %v478
    %1426 = vmatpush.msra.mxu0 %v475
    %1427 = vmatpush.msra.mxu0 %v472
    %1428 = vmatpush.msra.mxu0 %v469
    %1429 = vmatpush.msra.mxu0 %v466
    %1430 = vmatpush.msra.mxu0 %v463
    %1431 = vmatpush.msra.mxu0 %v460
    %1432 = vmatmul.f32.gmra.mxu0 %v1415
    %v1433 = vpop.f32.mrf.mxu0
    %v1434 = vadd.f32 %v510, %v1433
    %1435 = vdwg.mxu0
    %1436 = vmatpush.msra.mxu0 %v506
    %1437 = vmatpush.msra.mxu0 %v503
    %1438 = vmatpush.msra.mxu0 %v500
    %1439 = vmatpush.msra.mxu0 %v497
    %1440 = vmatpush.msra.mxu0 %v494
    %1441 = vmatpush.msra.mxu0 %v491
    %1442 = vmatpush.msra.mxu0 %v488
    %1443 = vmatpush.msra.mxu0 %v485
    %1444 = vmatpush.msra.mxu0 %v482
    %1445 = vmatpush.msra.mxu0 %v479
    %1446 = vmatpush.msra.mxu0 %v476
    %1447 = vmatpush.msra.mxu0 %v473
    %1448 = vmatpush.msra.mxu0 %v470
    %1449 = vmatpush.msra.mxu0 %v467
    %1450 = vmatpush.msra.mxu0 %v464
    %1451 = vmatpush.msra.mxu0 %v461
    %1452 = vmatmul.f32.gmra.mxu0 %v1415
    %v1453 = vpop.f32.mrf.mxu0
    %v1454 = vadd.f32 %v511, %v1453
    %1455 = vdwg.mxu0
    %1456 = vmatpush.msra.mxu0 %v507
    %1457 = vmatpush.msra.mxu0 %v504
    %1458 = vmatpush.msra.mxu0 %v501
    %1459 = vmatpush.msra.mxu0 %v498
    %1460 = vmatpush.msra.mxu0 %v495
    %1461 = vmatpush.msra.mxu0 %v492
    %1462 = vmatpush.msra.mxu0 %v489
    %1463 = vmatpush.msra.mxu0 %v486
    %1464 = vmatpush.msra.mxu0 %v483
    %1465 = vmatpush.msra.mxu0 %v480
    %1466 = vmatpush.msra.mxu0 %v477
    %1467 = vmatpush.msra.mxu0 %v474
    %1468 = vmatpush.msra.mxu0 %v471
    %1469 = vmatpush.msra.mxu0 %v468
    %1470 = vmatpush.msra.mxu0 %v465
    %1471 = vmatpush.msra.mxu0 %v462
    %1472 = vmatmul.f32.gmra.mxu0 %v1415
    %v1473 = vpop.f32.mrf.mxu0
    %v1474 = vadd.f32 %v512, %v1473
    %1475 = vdwg.mxu0
    %1476 = vmatpush.msra.mxu0 %v622
    %1477 = vmatpush.msra.mxu0 %v619
    %1478 = vmatpush.msra.mxu0 %v616
    %1479 = vmatpush.msra.mxu0 %v613
    %1480 = vmatpush.msra.mxu0 %v610
    %1481 = vmatpush.msra.mxu0 %v607
    %1482 = vmatpush.msra.mxu0 %v604
    %1483 = vmatpush.msra.mxu0 %v601
    %1484 = vmatpush.msra.mxu0 %v598
    %1485 = vmatpush.msra.mxu0 %v595
    %1486 = vmatpush.msra.mxu0 %v592
    %1487 = vmatpush.msra.mxu0 %v589
    %1488 = vmatpush.msra.mxu0 %v586
    %1489 = vmatpush.msra.mxu0 %v583
    %1490 = vmatpush.msra.mxu0 %v580
    %1491 = vmatpush.msra.mxu0 %v577
    %1492 = vmatmul.f32.gmra.mxu0 %v1301
    %v1493 = vpop.f32.mrf.mxu0
    %v1494 = vadd.f32 0.0, %v1493
    %1495 = vdwg.mxu0
    %1496 = vmatpush.msra.mxu0 %v623
    %1497 = vmatpush.msra.mxu0 %v620
    %1498 = vmatpush.msra.mxu0 %v617
    %1499 = vmatpush.msra.mxu0 %v614
    %1500 = vmatpush.msra.mxu0 %v611
    %1501 = vmatpush.msra.mxu0 %v608
    %1502 = vmatpush.msra.mxu0 %v605
    %1503 = vmatpush.msra.mxu0 %v602
    %1504 = vmatpush.msra.mxu0 %v599
    %1505 = vmatpush.msra.mxu0 %v596
    %1506 = vmatpush.msra.mxu0 %v593
    %1507 = vmatpush.msra.mxu0 %v590
    %1508 = vmatpush.msra.mxu0 %v587
    %1509 = vmatpush.msra.mxu0 %v584
    %1510 = vmatpush.msra.mxu0 %v581
    %1511 = vmatpush.msra.mxu0 %v578
    %1512 = vmatmul.f32.gmra.mxu0 %v1301
    %v1513 = vpop.f32.mrf.mxu0
    %v1514 = vadd.f32 0.0, %v1513
    %1515 = vdwg.mxu0
    %1516 = vmatpush.msra.mxu0 %v624
    %1517 = vmatpush.msra.mxu0 %v621
    %1518 = vmatpush.msra.mxu0 %v618
    %1519 = vmatpush.msra.mxu0 %v615
    %1520 = vmatpush.msra.mxu0 %v612
    %1521 = vmatpush.msra.mxu0 %v609
    %1522 = vmatpush.msra.mxu0 %v606
    %1523 = vmatpush.msra.mxu0 %v603
    %1524 = vmatpush.msra.mxu0 %v600
    %1525 = vmatpush.msra.mxu0 %v597
    %1526 = vmatpush.msra.mxu0 %v594
    %1527 = vmatpush.msra.mxu0 %v591
    %1528 = vmatpush.msra.mxu0 %v588
    %1529 = vmatpush.msra.mxu0 %v585
    %1530 = vmatpush.msra.mxu0 %v582
    %1531 = vmatpush.msra.mxu0 %v579
    %1532 = vmatmul.f32.gmra.mxu0 %v1301
    %v1533 = vpop.f32.mrf.mxu0
    %v1534 = vadd.f32 0.0, %v1533
    %1535 = vdwg.mxu0
    %v1536 = vadd.f32 %v1434, %v1494
    %v1537 = vxor.u32 %v1536, 2147483648
    %v1538 = vmul.f32 %v1537, 1.442695
    %v1539 = vpow.pop %v1538
    %v1540 = vadd.f32 %v1539, 1.0
    %v1541 = vrcp.pop %v1540
    %v1542 = vmul.f32 %v1540, %v1541
    %v1543 = vsub.f32 1.0, %v1542
    %v1544 = vmul.f32 %v1541, %v1543
    %v1545 = vadd.f32 %v1541, %v1544
    %vm1546 = vweird.f32 %v1540
    %vm1547 = vweird.f32 %v1541
    %vm1548 = vmor %vm1546, %vm1547
    %v1549 = vsel %vm1548, %v1541, %v1545
    %v1550 = vand.u32 2147483647, %v1540
    %vm1551 = vcmp.eq.f32.partialorder %v1550, 8.507059e+37
    %v1552 = vand.u32 %v1540, 2147483648
    %v1553 = vor.u32 1.1754944e-38, %v1552
    %v1554 = vsel %vm1551, %v1553, %v1549
    %v1555 = vmul.f32 1.0, %v1554
    %v1556 = vadd.f32 %v1454, %v1514
    %v1557 = vxor.u32 %v1556, 2147483648
    %v1558 = vmul.f32 %v1557, 1.442695
    %v1559 = vpow.pop %v1558
    %v1560 = vadd.f32 %v1559, 1.0
    %v1561 = vrcp.pop %v1560
    %v1562 = vmul.f32 %v1560, %v1561
    %v1563 = vsub.f32 1.0, %v1562
    %v1564 = vmul.f32 %v1561, %v1563
    %v1565 = vadd.f32 %v1561, %v1564
    %vm1566 = vweird.f32 %v1560
    %vm1567 = vweird.f32 %v1561
    %vm1568 = vmor %vm1566, %vm1567
    %v1569 = vsel %vm1568, %v1561, %v1565
    %v1570 = vand.u32 2147483647, %v1560
    %vm1571 = vcmp.eq.f32.partialorder %v1570, 8.507059e+37
    %v1572 = vand.u32 %v1560, 2147483648
    %v1573 = vor.u32 1.1754944e-38, %v1572
    %v1574 = vsel %vm1571, %v1573, %v1569
    %v1575 = vmul.f32 1.0, %v1574
    %v1576 = vadd.f32 %v1534, %v728
    %v1577 = vmul.f32 %v1555, %v1576
    %v1578 = vadd.f32 %v1474, %v1577
    %v1579 = vtanh.pop %v1578
    %v1580 = vsub.f32 1.0, %v1575
    %v1581 = vmul.f32 %v1580, %v1579
    %v1582 = vmul.f32 %v1575, %v1301
    %v1583 = vadd.f32 %v1581, %v1582
    %s1584 = smul.u32 4, 3
    %s1585 = smul.addr %s1584, 8
    %s1586 = scalar_lea.vmem [#allocation3], %s1585
    %v1587 = vld [vmem:[%s1586] sm:$0xff]
    %v1588 = vld [vmem:[%s1586 + $0x8] sm:$0xff]
    %v1589 = vld [vmem:[%s1586 + $0x10] sm:$0xff]
    %1590 = vmatpush.msra.mxu0 %v345
    %1591 = vmatpush.msra.mxu0 %v342
    %1592 = vmatpush.msra.mxu0 %v339
    %1593 = vmatpush.msra.mxu0 %v336
    %1594 = vmatpush.msra.mxu0 %v333
    %1595 = vmatpush.msra.mxu0 %v330
    %1596 = vmatpush.msra.mxu0 %v327
    %1597 = vmatpush.msra.mxu0 %v324
    %1598 = vmatpush.msra.mxu0 %v321
    %1599 = vmatpush.msra.mxu0 %v318
    %1600 = vmatpush.msra.mxu0 %v315
    %1601 = vmatpush.msra.mxu0 %v312
    %1602 = vmatpush.msra.mxu0 %v309
    %1603 = vmatpush.msra.mxu0 %v306
    %1604 = vmatpush.msra.mxu0 %v303
    %1605 = vmatpush.msra.mxu0 %v300
    %1606 = vmatmul.f32.gmra.mxu0 %v1415
    %v1607 = vpop.f32.mrf.mxu0
    %v1608 = vadd.f32 0.0, %v1607
    %1609 = vdwg.mxu0
    %1610 = vmatpush.msra.mxu0 %v346
    %1611 = vmatpush.msra.mxu0 %v343
    %1612 = vmatpush.msra.mxu0 %v340
    %1613 = vmatpush.msra.mxu0 %v337
    %1614 = vmatpush.msra.mxu0 %v334
    %1615 = vmatpush.msra.mxu0 %v331
    %1616 = vmatpush.msra.mxu0 %v328
    %1617 = vmatpush.msra.mxu0 %v325
    %1618 = vmatpush.msra.mxu0 %v322
    %1619 = vmatpush.msra.mxu0 %v319
    %1620 = vmatpush.msra.mxu0 %v316
    %1621 = vmatpush.msra.mxu0 %v313
    %1622 = vmatpush.msra.mxu0 %v310
    %1623 = vmatpush.msra.mxu0 %v307
    %1624 = vmatpush.msra.mxu0 %v304
    %1625 = vmatpush.msra.mxu0 %v301
    %1626 = vmatmul.f32.gmra.mxu0 %v1415
    %v1627 = vpop.f32.mrf.mxu0
    %v1628 = vadd.f32 0.0, %v1627
    %1629 = vdwg.mxu0
    %1630 = vmatpush.msra.mxu0 %v347
    %1631 = vmatpush.msra.mxu0 %v344
    %1632 = vmatpush.msra.mxu0 %v341
    %1633 = vmatpush.msra.mxu0 %v338
    %1634 = vmatpush.msra.mxu0 %v335
    %1635 = vmatpush.msra.mxu0 %v332
    %1636 = vmatpush.msra.mxu0 %v329
    %1637 = vmatpush.msra.mxu0 %v326
    %1638 = vmatpush.msra.mxu0 %v323
    %1639 = vmatpush.msra.mxu0 %v320
    %1640 = vmatpush.msra.mxu0 %v317
    %1641 = vmatpush.msra.mxu0 %v314
    %1642 = vmatpush.msra.mxu0 %v311
    %1643 = vmatpush.msra.mxu0 %v308
    %1644 = vmatpush.msra.mxu0 %v305
    %1645 = vmatpush.msra.mxu0 %v302
    %1646 = vmatmul.f32.gmra.mxu0 %v1415
    %v1647 = vpop.f32.mrf.mxu0
    %v1648 = vadd.f32 0.0, %v1647
    %1649 = vdwg.mxu0
    %v1650 = vadd.f32 %v1587, %v1608
    %v1651 = vxor.u32 %v1650, 2147483648
    %v1652 = vmul.f32 %v1651, 1.442695
    %v1653 = vpow.pop %v1652
    %v1654 = vadd.f32 %v1653, 1.0
    %v1655 = vrcp.pop %v1654
    %v1656 = vmul.f32 %v1654, %v1655
    %v1657 = vsub.f32 1.0, %v1656
    %v1658 = vmul.f32 %v1655, %v1657
    %v1659 = vadd.f32 %v1655, %v1658
    %vm1660 = vweird.f32 %v1654
    %vm1661 = vweird.f32 %v1655
    %vm1662 = vmor %vm1660, %vm1661
    %v1663 = vsel %vm1662, %v1655, %v1659
    %v1664 = vand.u32 2147483647, %v1654
    %vm1665 = vcmp.eq.f32.partialorder %v1664, 8.507059e+37
    %v1666 = vand.u32 %v1654, 2147483648
    %v1667 = vor.u32 1.1754944e-38, %v1666
    %v1668 = vsel %vm1665, %v1667, %v1663
    %v1669 = vmul.f32 1.0, %v1668
    %v1670 = vadd.f32 %v1588, %v1628
    %v1671 = vxor.u32 %v1670, 2147483648
    %v1672 = vmul.f32 %v1671, 1.442695
    %v1673 = vpow.pop %v1672
    %v1674 = vadd.f32 %v1673, 1.0
    %v1675 = vrcp.pop %v1674
    %v1676 = vmul.f32 %v1674, %v1675
    %v1677 = vsub.f32 1.0, %v1676
    %v1678 = vmul.f32 %v1675, %v1677
    %v1679 = vadd.f32 %v1675, %v1678
    %vm1680 = vweird.f32 %v1674
    %vm1681 = vweird.f32 %v1675
    %vm1682 = vmor %vm1680, %vm1681
    %v1683 = vsel %vm1682, %v1675, %v1679
    %v1684 = vand.u32 2147483647, %v1674
    %vm1685 = vcmp.eq.f32.partialorder %v1684, 8.507059e+37
    %v1686 = vand.u32 %v1674, 2147483648
    %v1687 = vor.u32 1.1754944e-38, %v1686
    %v1688 = vsel %vm1685, %v1687, %v1683
    %v1689 = vmul.f32 1.0, %v1688
    %v1690 = vadd.f32 %v1648, %v450
    %v1691 = vmul.f32 %v1669, %v1690
    %v1692 = vadd.f32 %v1589, %v1691
    %v1693 = vtanh.pop %v1692
    %v1694 = vsub.f32 1.0, %v1689
    %v1695 = vmul.f32 %v1694, %v1693
    %v1696 = vmul.f32 %v1689, %v1415
    %v1697 = vadd.f32 %v1695, %v1696
    %1698 = vmatpush.msra.mxu0 %v505
    %1699 = vmatpush.msra.mxu0 %v502
    %1700 = vmatpush.msra.mxu0 %v499
    %1701 = vmatpush.msra.mxu0 %v496
    %1702 = vmatpush.msra.mxu0 %v493
    %1703 = vmatpush.msra.mxu0 %v490
    %1704 = vmatpush.msra.mxu0 %v487
    %1705 = vmatpush.msra.mxu0 %v484
    %1706 = vmatpush.msra.mxu0 %v481
    %1707 = vmatpush.msra.mxu0 %v478
    %1708 = vmatpush.msra.mxu0 %v475
    %1709 = vmatpush.msra.mxu0 %v472
    %1710 = vmatpush.msra.mxu0 %v469
    %1711 = vmatpush.msra.mxu0 %v466
    %1712 = vmatpush.msra.mxu0 %v463
    %1713 = vmatpush.msra.mxu0 %v460
    %1714 = vmatmul.f32.gmra.mxu0 %v1697
    %v1715 = vpop.f32.mrf.mxu0
    %v1716 = vadd.f32 %v510, %v1715
    %1717 = vdwg.mxu0
    %1718 = vmatpush.msra.mxu0 %v506
    %1719 = vmatpush.msra.mxu0 %v503
    %1720 = vmatpush.msra.mxu0 %v500
    %1721 = vmatpush.msra.mxu0 %v497
    %1722 = vmatpush.msra.mxu0 %v494
    %1723 = vmatpush.msra.mxu0 %v491
    %1724 = vmatpush.msra.mxu0 %v488
    %1725 = vmatpush.msra.mxu0 %v485
    %1726 = vmatpush.msra.mxu0 %v482
    %1727 = vmatpush.msra.mxu0 %v479
    %1728 = vmatpush.msra.mxu0 %v476
    %1729 = vmatpush.msra.mxu0 %v473
    %1730 = vmatpush.msra.mxu0 %v470
    %1731 = vmatpush.msra.mxu0 %v467
    %1732 = vmatpush.msra.mxu0 %v464
    %1733 = vmatpush.msra.mxu0 %v461
    %1734 = vmatmul.f32.gmra.mxu0 %v1697
    %v1735 = vpop.f32.mrf.mxu0
    %v1736 = vadd.f32 %v511, %v1735
    %1737 = vdwg.mxu0
    %1738 = vmatpush.msra.mxu0 %v507
    %1739 = vmatpush.msra.mxu0 %v504
    %1740 = vmatpush.msra.mxu0 %v501
    %1741 = vmatpush.msra.mxu0 %v498
    %1742 = vmatpush.msra.mxu0 %v495
    %1743 = vmatpush.msra.mxu0 %v492
    %1744 = vmatpush.msra.mxu0 %v489
    %1745 = vmatpush.msra.mxu0 %v486
    %1746 = vmatpush.msra.mxu0 %v483
    %1747 = vmatpush.msra.mxu0 %v480
    %1748 = vmatpush.msra.mxu0 %v477
    %1749 = vmatpush.msra.mxu0 %v474
    %1750 = vmatpush.msra.mxu0 %v471
    %1751 = vmatpush.msra.mxu0 %v468
    %1752 = vmatpush.msra.mxu0 %v465
    %1753 = vmatpush.msra.mxu0 %v462
    %1754 = vmatmul.f32.gmra.mxu0 %v1697
    %v1755 = vpop.f32.mrf.mxu0
    %v1756 = vadd.f32 %v512, %v1755
    %1757 = vdwg.mxu0
    %1758 = vmatpush.msra.mxu0 %v622
    %1759 = vmatpush.msra.mxu0 %v619
    %1760 = vmatpush.msra.mxu0 %v616
    %1761 = vmatpush.msra.mxu0 %v613
    %1762 = vmatpush.msra.mxu0 %v610
    %1763 = vmatpush.msra.mxu0 %v607
    %1764 = vmatpush.msra.mxu0 %v604
    %1765 = vmatpush.msra.mxu0 %v601
    %1766 = vmatpush.msra.mxu0 %v598
    %1767 = vmatpush.msra.mxu0 %v595
    %1768 = vmatpush.msra.mxu0 %v592
    %1769 = vmatpush.msra.mxu0 %v589
    %1770 = vmatpush.msra.mxu0 %v586
    %1771 = vmatpush.msra.mxu0 %v583
    %1772 = vmatpush.msra.mxu0 %v580
    %1773 = vmatpush.msra.mxu0 %v577
    %1774 = vmatmul.f32.gmra.mxu0 %v1583
    %v1775 = vpop.f32.mrf.mxu0
    %v1776 = vadd.f32 0.0, %v1775
    %1777 = vdwg.mxu0
    %1778 = vmatpush.msra.mxu0 %v623
    %1779 = vmatpush.msra.mxu0 %v620
    %1780 = vmatpush.msra.mxu0 %v617
    %1781 = vmatpush.msra.mxu0 %v614
    %1782 = vmatpush.msra.mxu0 %v611
    %1783 = vmatpush.msra.mxu0 %v608
    %1784 = vmatpush.msra.mxu0 %v605
    %1785 = vmatpush.msra.mxu0 %v602
    %1786 = vmatpush.msra.mxu0 %v599
    %1787 = vmatpush.msra.mxu0 %v596
    %1788 = vmatpush.msra.mxu0 %v593
    %1789 = vmatpush.msra.mxu0 %v590
    %1790 = vmatpush.msra.mxu0 %v587
    %1791 = vmatpush.msra.mxu0 %v584
    %1792 = vmatpush.msra.mxu0 %v581
    %1793 = vmatpush.msra.mxu0 %v578
    %1794 = vmatmul.f32.gmra.mxu0 %v1583
    %v1795 = vpop.f32.mrf.mxu0
    %v1796 = vadd.f32 0.0, %v1795
    %1797 = vdwg.mxu0
    %1798 = vmatpush.msra.mxu0 %v624
    %1799 = vmatpush.msra.mxu0 %v621
    %1800 = vmatpush.msra.mxu0 %v618
    %1801 = vmatpush.msra.mxu0 %v615
    %1802 = vmatpush.msra.mxu0 %v612
    %1803 = vmatpush.msra.mxu0 %v609
    %1804 = vmatpush.msra.mxu0 %v606
    %1805 = vmatpush.msra.mxu0 %v603
    %1806 = vmatpush.msra.mxu0 %v600
    %1807 = vmatpush.msra.mxu0 %v597
    %1808 = vmatpush.msra.mxu0 %v594
    %1809 = vmatpush.msra.mxu0 %v591
    %1810 = vmatpush.msra.mxu0 %v588
    %1811 = vmatpush.msra.mxu0 %v585
    %1812 = vmatpush.msra.mxu0 %v582
    %1813 = vmatpush.msra.mxu0 %v579
    %1814 = vmatmul.f32.gmra.mxu0 %v1583
    %v1815 = vpop.f32.mrf.mxu0
    %v1816 = vadd.f32 0.0, %v1815
    %1817 = vdwg.mxu0
    %v1818 = vadd.f32 %v1716, %v1776
    %v1819 = vxor.u32 %v1818, 2147483648
    %v1820 = vmul.f32 %v1819, 1.442695
    %v1821 = vpow.pop %v1820
    %v1822 = vadd.f32 %v1821, 1.0
    %v1823 = vrcp.pop %v1822
    %v1824 = vmul.f32 %v1822, %v1823
    %v1825 = vsub.f32 1.0, %v1824
    %v1826 = vmul.f32 %v1823, %v1825
    %v1827 = vadd.f32 %v1823, %v1826
    %vm1828 = vweird.f32 %v1822
    %vm1829 = vweird.f32 %v1823
    %vm1830 = vmor %vm1828, %vm1829
    %v1831 = vsel %vm1830, %v1823, %v1827
    %v1832 = vand.u32 2147483647, %v1822
    %vm1833 = vcmp.eq.f32.partialorder %v1832, 8.507059e+37
    %v1834 = vand.u32 %v1822, 2147483648
    %v1835 = vor.u32 1.1754944e-38, %v1834
    %v1836 = vsel %vm1833, %v1835, %v1831
    %v1837 = vmul.f32 1.0, %v1836
    %v1838 = vadd.f32 %v1736, %v1796
    %v1839 = vxor.u32 %v1838, 2147483648
    %v1840 = vmul.f32 %v1839, 1.442695
    %v1841 = vpow.pop %v1840
    %v1842 = vadd.f32 %v1841, 1.0
    %v1843 = vrcp.pop %v1842
    %v1844 = vmul.f32 %v1842, %v1843
    %v1845 = vsub.f32 1.0, %v1844
    %v1846 = vmul.f32 %v1843, %v1845
    %v1847 = vadd.f32 %v1843, %v1846
    %vm1848 = vweird.f32 %v1842
    %vm1849 = vweird.f32 %v1843
    %vm1850 = vmor %vm1848, %vm1849
    %v1851 = vsel %vm1850, %v1843, %v1847
    %v1852 = vand.u32 2147483647, %v1842
    %vm1853 = vcmp.eq.f32.partialorder %v1852, 8.507059e+37
    %v1854 = vand.u32 %v1842, 2147483648
    %v1855 = vor.u32 1.1754944e-38, %v1854
    %v1856 = vsel %vm1853, %v1855, %v1851
    %v1857 = vmul.f32 1.0, %v1856
    %v1858 = vadd.f32 %v1816, %v728
    %v1859 = vmul.f32 %v1837, %v1858
    %v1860 = vadd.f32 %v1756, %v1859
    %v1861 = vtanh.pop %v1860
    %v1862 = vsub.f32 1.0, %v1857
    %v1863 = vmul.f32 %v1862, %v1861
    %v1864 = vmul.f32 %v1857, %v1583
    %v1865 = vadd.f32 %v1863, %v1864
    %s1866 = smul.u32 5, 3
    %s1867 = smul.addr %s1866, 8
    %s1868 = scalar_lea.vmem [#allocation3], %s1867
    %v1869 = vld [vmem:[%s1868] sm:$0xff]
    %v1870 = vld [vmem:[%s1868 + $0x8] sm:$0xff]
    %v1871 = vld [vmem:[%s1868 + $0x10] sm:$0xff]
    %1872 = vmatpush.msra.mxu0 %v345
    %1873 = vmatpush.msra.mxu0 %v342
    %1874 = vmatpush.msra.mxu0 %v339
    %1875 = vmatpush.msra.mxu0 %v336
    %1876 = vmatpush.msra.mxu0 %v333
    %1877 = vmatpush.msra.mxu0 %v330
    %1878 = vmatpush.msra.mxu0 %v327
    %1879 = vmatpush.msra.mxu0 %v324
    %1880 = vmatpush.msra.mxu0 %v321
    %1881 = vmatpush.msra.mxu0 %v318
    %1882 = vmatpush.msra.mxu0 %v315
    %1883 = vmatpush.msra.mxu0 %v312
    %1884 = vmatpush.msra.mxu0 %v309
    %1885 = vmatpush.msra.mxu0 %v306
    %1886 = vmatpush.msra.mxu0 %v303
    %1887 = vmatpush.msra.mxu0 %v300
    %1888 = vmatmul.f32.gmra.mxu0 %v1697
    %v1889 = vpop.f32.mrf.mxu0
    %v1890 = vadd.f32 0.0, %v1889
    %1891 = vdwg.mxu0
    %1892 = vmatpush.msra.mxu0 %v346
    %1893 = vmatpush.msra.mxu0 %v343
    %1894 = vmatpush.msra.mxu0 %v340
    %1895 = vmatpush.msra.mxu0 %v337
    %1896 = vmatpush.msra.mxu0 %v334
    %1897 = vmatpush.msra.mxu0 %v331
    %1898 = vmatpush.msra.mxu0 %v328
    %1899 = vmatpush.msra.mxu0 %v325
    %1900 = vmatpush.msra.mxu0 %v322
    %1901 = vmatpush.msra.mxu0 %v319
    %1902 = vmatpush.msra.mxu0 %v316
    %1903 = vmatpush.msra.mxu0 %v313
    %1904 = vmatpush.msra.mxu0 %v310
    %1905 = vmatpush.msra.mxu0 %v307
    %1906 = vmatpush.msra.mxu0 %v304
    %1907 = vmatpush.msra.mxu0 %v301
    %1908 = vmatmul.f32.gmra.mxu0 %v1697
    %v1909 = vpop.f32.mrf.mxu0
    %v1910 = vadd.f32 0.0, %v1909
    %1911 = vdwg.mxu0
    %1912 = vmatpush.msra.mxu0 %v347
    %1913 = vmatpush.msra.mxu0 %v344
    %1914 = vmatpush.msra.mxu0 %v341
    %1915 = vmatpush.msra.mxu0 %v338
    %1916 = vmatpush.msra.mxu0 %v335
    %1917 = vmatpush.msra.mxu0 %v332
    %1918 = vmatpush.msra.mxu0 %v329
    %1919 = vmatpush.msra.mxu0 %v326
    %1920 = vmatpush.msra.mxu0 %v323
    %1921 = vmatpush.msra.mxu0 %v320
    %1922 = vmatpush.msra.mxu0 %v317
    %1923 = vmatpush.msra.mxu0 %v314
    %1924 = vmatpush.msra.mxu0 %v311
    %1925 = vmatpush.msra.mxu0 %v308
    %1926 = vmatpush.msra.mxu0 %v305
    %1927 = vmatpush.msra.mxu0 %v302
    %1928 = vmatmul.f32.gmra.mxu0 %v1697
    %v1929 = vpop.f32.mrf.mxu0
    %v1930 = vadd.f32 0.0, %v1929
    %1931 = vdwg.mxu0
    %v1932 = vadd.f32 %v1869, %v1890
    %v1933 = vxor.u32 %v1932, 2147483648
    %v1934 = vmul.f32 %v1933, 1.442695
    %v1935 = vpow.pop %v1934
    %v1936 = vadd.f32 %v1935, 1.0
    %v1937 = vrcp.pop %v1936
    %v1938 = vmul.f32 %v1936, %v1937
    %v1939 = vsub.f32 1.0, %v1938
    %v1940 = vmul.f32 %v1937, %v1939
    %v1941 = vadd.f32 %v1937, %v1940
    %vm1942 = vweird.f32 %v1936
    %vm1943 = vweird.f32 %v1937
    %vm1944 = vmor %vm1942, %vm1943
    %v1945 = vsel %vm1944, %v1937, %v1941
    %v1946 = vand.u32 2147483647, %v1936
    %vm1947 = vcmp.eq.f32.partialorder %v1946, 8.507059e+37
    %v1948 = vand.u32 %v1936, 2147483648
    %v1949 = vor.u32 1.1754944e-38, %v1948
    %v1950 = vsel %vm1947, %v1949, %v1945
    %v1951 = vmul.f32 1.0, %v1950
    %v1952 = vadd.f32 %v1870, %v1910
    %v1953 = vxor.u32 %v1952, 2147483648
    %v1954 = vmul.f32 %v1953, 1.442695
    %v1955 = vpow.pop %v1954
    %v1956 = vadd.f32 %v1955, 1.0
    %v1957 = vrcp.pop %v1956
    %v1958 = vmul.f32 %v1956, %v1957
    %v1959 = vsub.f32 1.0, %v1958
    %v1960 = vmul.f32 %v1957, %v1959
    %v1961 = vadd.f32 %v1957, %v1960
    %vm1962 = vweird.f32 %v1956
    %vm1963 = vweird.f32 %v1957
    %vm1964 = vmor %vm1962, %vm1963
    %v1965 = vsel %vm1964, %v1957, %v1961
    %v1966 = vand.u32 2147483647, %v1956
    %vm1967 = vcmp.eq.f32.partialorder %v1966, 8.507059e+37
    %v1968 = vand.u32 %v1956, 2147483648
    %v1969 = vor.u32 1.1754944e-38, %v1968
    %v1970 = vsel %vm1967, %v1969, %v1965
    %v1971 = vmul.f32 1.0, %v1970
    %v1972 = vadd.f32 %v1930, %v450
    %v1973 = vmul.f32 %v1951, %v1972
    %v1974 = vadd.f32 %v1871, %v1973
    %v1975 = vtanh.pop %v1974
    %v1976 = vsub.f32 1.0, %v1971
    %v1977 = vmul.f32 %v1976, %v1975
    %v1978 = vmul.f32 %v1971, %v1697
    %v1979 = vadd.f32 %v1977, %v1978
    %1980 = vmatpush.msra.mxu0 %v505
    %1981 = vmatpush.msra.mxu0 %v502
    %1982 = vmatpush.msra.mxu0 %v499
    %1983 = vmatpush.msra.mxu0 %v496
    %1984 = vmatpush.msra.mxu0 %v493
    %1985 = vmatpush.msra.mxu0 %v490
    %1986 = vmatpush.msra.mxu0 %v487
    %1987 = vmatpush.msra.mxu0 %v484
    %1988 = vmatpush.msra.mxu0 %v481
    %1989 = vmatpush.msra.mxu0 %v478
    %1990 = vmatpush.msra.mxu0 %v475
    %1991 = vmatpush.msra.mxu0 %v472
    %1992 = vmatpush.msra.mxu0 %v469
    %1993 = vmatpush.msra.mxu0 %v466
    %1994 = vmatpush.msra.mxu0 %v463
    %1995 = vmatpush.msra.mxu0 %v460
    %1996 = vmatmul.f32.gmra.mxu0 %v1979
    %v1997 = vpop.f32.mrf.mxu0
    %v1998 = vadd.f32 %v510, %v1997
    %1999 = vdwg.mxu0
    %2000 = vmatpush.msra.mxu0 %v506
    %2001 = vmatpush.msra.mxu0 %v503
    %2002 = vmatpush.msra.mxu0 %v500
    %2003 = vmatpush.msra.mxu0 %v497
    %2004 = vmatpush.msra.mxu0 %v494
    %2005 = vmatpush.msra.mxu0 %v491
    %2006 = vmatpush.msra.mxu0 %v488
    %2007 = vmatpush.msra.mxu0 %v485
    %2008 = vmatpush.msra.mxu0 %v482
    %2009 = vmatpush.msra.mxu0 %v479
    %2010 = vmatpush.msra.mxu0 %v476
    %2011 = vmatpush.msra.mxu0 %v473
    %2012 = vmatpush.msra.mxu0 %v470
    %2013 = vmatpush.msra.mxu0 %v467
    %2014 = vmatpush.msra.mxu0 %v464
    %2015 = vmatpush.msra.mxu0 %v461
    %2016 = vmatmul.f32.gmra.mxu0 %v1979
    %v2017 = vpop.f32.mrf.mxu0
    %v2018 = vadd.f32 %v511, %v2017
    %2019 = vdwg.mxu0
    %2020 = vmatpush.msra.mxu0 %v507
    %2021 = vmatpush.msra.mxu0 %v504
    %2022 = vmatpush.msra.mxu0 %v501
    %2023 = vmatpush.msra.mxu0 %v498
    %2024 = vmatpush.msra.mxu0 %v495
    %2025 = vmatpush.msra.mxu0 %v492
    %2026 = vmatpush.msra.mxu0 %v489
    %2027 = vmatpush.msra.mxu0 %v486
    %2028 = vmatpush.msra.mxu0 %v483
    %2029 = vmatpush.msra.mxu0 %v480
    %2030 = vmatpush.msra.mxu0 %v477
    %2031 = vmatpush.msra.mxu0 %v474
    %2032 = vmatpush.msra.mxu0 %v471
    %2033 = vmatpush.msra.mxu0 %v468
    %2034 = vmatpush.msra.mxu0 %v465
    %2035 = vmatpush.msra.mxu0 %v462
    %2036 = vmatmul.f32.gmra.mxu0 %v1979
    %v2037 = vpop.f32.mrf.mxu0
    %v2038 = vadd.f32 %v512, %v2037
    %2039 = vdwg.mxu0
    %2040 = vmatpush.msra.mxu0 %v622
    %2041 = vmatpush.msra.mxu0 %v619
    %2042 = vmatpush.msra.mxu0 %v616
    %2043 = vmatpush.msra.mxu0 %v613
    %2044 = vmatpush.msra.mxu0 %v610
    %2045 = vmatpush.msra.mxu0 %v607
    %2046 = vmatpush.msra.mxu0 %v604
    %2047 = vmatpush.msra.mxu0 %v601
    %2048 = vmatpush.msra.mxu0 %v598
    %2049 = vmatpush.msra.mxu0 %v595
    %2050 = vmatpush.msra.mxu0 %v592
    %2051 = vmatpush.msra.mxu0 %v589
    %2052 = vmatpush.msra.mxu0 %v586
    %2053 = vmatpush.msra.mxu0 %v583
    %2054 = vmatpush.msra.mxu0 %v580
    %2055 = vmatpush.msra.mxu0 %v577
    %2056 = vmatmul.f32.gmra.mxu0 %v1865
    %v2057 = vpop.f32.mrf.mxu0
    %v2058 = vadd.f32 0.0, %v2057
    %2059 = vdwg.mxu0
    %2060 = vmatpush.msra.mxu0 %v623
    %2061 = vmatpush.msra.mxu0 %v620
    %2062 = vmatpush.msra.mxu0 %v617
    %2063 = vmatpush.msra.mxu0 %v614
    %2064 = vmatpush.msra.mxu0 %v611
    %2065 = vmatpush.msra.mxu0 %v608
    %2066 = vmatpush.msra.mxu0 %v605
    %2067 = vmatpush.msra.mxu0 %v602
    %2068 = vmatpush.msra.mxu0 %v599
    %2069 = vmatpush.msra.mxu0 %v596
    %2070 = vmatpush.msra.mxu0 %v593
    %2071 = vmatpush.msra.mxu0 %v590
    %2072 = vmatpush.msra.mxu0 %v587
    %2073 = vmatpush.msra.mxu0 %v584
    %2074 = vmatpush.msra.mxu0 %v581
    %2075 = vmatpush.msra.mxu0 %v578
    %2076 = vmatmul.f32.gmra.mxu0 %v1865
    %v2077 = vpop.f32.mrf.mxu0
    %v2078 = vadd.f32 0.0, %v2077
    %2079 = vdwg.mxu0
    %2080 = vmatpush.msra.mxu0 %v624
    %2081 = vmatpush.msra.mxu0 %v621
    %2082 = vmatpush.msra.mxu0 %v618
    %2083 = vmatpush.msra.mxu0 %v615
    %2084 = vmatpush.msra.mxu0 %v612
    %2085 = vmatpush.msra.mxu0 %v609
    %2086 = vmatpush.msra.mxu0 %v606
    %2087 = vmatpush.msra.mxu0 %v603
    %2088 = vmatpush.msra.mxu0 %v600
    %2089 = vmatpush.msra.mxu0 %v597
    %2090 = vmatpush.msra.mxu0 %v594
    %2091 = vmatpush.msra.mxu0 %v591
    %2092 = vmatpush.msra.mxu0 %v588
    %2093 = vmatpush.msra.mxu0 %v585
    %2094 = vmatpush.msra.mxu0 %v582
    %2095 = vmatpush.msra.mxu0 %v579
    %2096 = vmatmul.f32.gmra.mxu0 %v1865
    %v2097 = vpop.f32.mrf.mxu0
    %v2098 = vadd.f32 0.0, %v2097
    %2099 = vdwg.mxu0
    %v2100 = vadd.f32 %v1998, %v2058
    %v2101 = vxor.u32 %v2100, 2147483648
    %v2102 = vmul.f32 %v2101, 1.442695
    %v2103 = vpow.pop %v2102
    %v2104 = vadd.f32 %v2103, 1.0
    %v2105 = vrcp.pop %v2104
    %v2106 = vmul.f32 %v2104, %v2105
    %v2107 = vsub.f32 1.0, %v2106
    %v2108 = vmul.f32 %v2105, %v2107
    %v2109 = vadd.f32 %v2105, %v2108
    %vm2110 = vweird.f32 %v2104
    %vm2111 = vweird.f32 %v2105
    %vm2112 = vmor %vm2110, %vm2111
    %v2113 = vsel %vm2112, %v2105, %v2109
    %v2114 = vand.u32 2147483647, %v2104
    %vm2115 = vcmp.eq.f32.partialorder %v2114, 8.507059e+37
    %v2116 = vand.u32 %v2104, 2147483648
    %v2117 = vor.u32 1.1754944e-38, %v2116
    %v2118 = vsel %vm2115, %v2117, %v2113
    %v2119 = vmul.f32 1.0, %v2118
    %v2120 = vadd.f32 %v2018, %v2078
    %v2121 = vxor.u32 %v2120, 2147483648
    %v2122 = vmul.f32 %v2121, 1.442695
    %v2123 = vpow.pop %v2122
    %v2124 = vadd.f32 %v2123, 1.0
    %v2125 = vrcp.pop %v2124
    %v2126 = vmul.f32 %v2124, %v2125
    %v2127 = vsub.f32 1.0, %v2126
    %v2128 = vmul.f32 %v2125, %v2127
    %v2129 = vadd.f32 %v2125, %v2128
    %vm2130 = vweird.f32 %v2124
    %vm2131 = vweird.f32 %v2125
    %vm2132 = vmor %vm2130, %vm2131
    %v2133 = vsel %vm2132, %v2125, %v2129
    %v2134 = vand.u32 2147483647, %v2124
    %vm2135 = vcmp.eq.f32.partialorder %v2134, 8.507059e+37
    %v2136 = vand.u32 %v2124, 2147483648
    %v2137 = vor.u32 1.1754944e-38, %v2136
    %v2138 = vsel %vm2135, %v2137, %v2133
    %v2139 = vmul.f32 1.0, %v2138
    %v2140 = vadd.f32 %v2098, %v728
    %v2141 = vmul.f32 %v2119, %v2140
    %v2142 = vadd.f32 %v2038, %v2141
    %v2143 = vtanh.pop %v2142
    %v2144 = vsub.f32 1.0, %v2139
    %v2145 = vmul.f32 %v2144, %v2143
    %v2146 = vmul.f32 %v2139, %v1865
    %v2147 = vadd.f32 %v2145, %v2146
    %s2148 = smul.u32 6, 3
    %s2149 = smul.addr %s2148, 8
    %s2150 = scalar_lea.vmem [#allocation3], %s2149
    %v2151 = vld [vmem:[%s2150] sm:$0xff]
    %v2152 = vld [vmem:[%s2150 + $0x8] sm:$0xff]
    %v2153 = vld [vmem:[%s2150 + $0x10] sm:$0xff]
    %2154 = vmatpush.msra.mxu0 %v345
    %2155 = vmatpush.msra.mxu0 %v342
    %2156 = vmatpush.msra.mxu0 %v339
    %2157 = vmatpush.msra.mxu0 %v336
    %2158 = vmatpush.msra.mxu0 %v333
    %2159 = vmatpush.msra.mxu0 %v330
    %2160 = vmatpush.msra.mxu0 %v327
    %2161 = vmatpush.msra.mxu0 %v324
    %2162 = vmatpush.msra.mxu0 %v321
    %2163 = vmatpush.msra.mxu0 %v318
    %2164 = vmatpush.msra.mxu0 %v315
    %2165 = vmatpush.msra.mxu0 %v312
    %2166 = vmatpush.msra.mxu0 %v309
    %2167 = vmatpush.msra.mxu0 %v306
    %2168 = vmatpush.msra.mxu0 %v303
    %2169 = vmatpush.msra.mxu0 %v300
    %2170 = vmatmul.f32.gmra.mxu0 %v1979
    %v2171 = vpop.f32.mrf.mxu0
    %v2172 = vadd.f32 0.0, %v2171
    %2173 = vdwg.mxu0
    %2174 = vmatpush.msra.mxu0 %v346
    %2175 = vmatpush.msra.mxu0 %v343
    %2176 = vmatpush.msra.mxu0 %v340
    %2177 = vmatpush.msra.mxu0 %v337
    %2178 = vmatpush.msra.mxu0 %v334
    %2179 = vmatpush.msra.mxu0 %v331
    %2180 = vmatpush.msra.mxu0 %v328
    %2181 = vmatpush.msra.mxu0 %v325
    %2182 = vmatpush.msra.mxu0 %v322
    %2183 = vmatpush.msra.mxu0 %v319
    %2184 = vmatpush.msra.mxu0 %v316
    %2185 = vmatpush.msra.mxu0 %v313
    %2186 = vmatpush.msra.mxu0 %v310
    %2187 = vmatpush.msra.mxu0 %v307
    %2188 = vmatpush.msra.mxu0 %v304
    %2189 = vmatpush.msra.mxu0 %v301
    %2190 = vmatmul.f32.gmra.mxu0 %v1979
    %v2191 = vpop.f32.mrf.mxu0
    %v2192 = vadd.f32 0.0, %v2191
    %2193 = vdwg.mxu0
    %2194 = vmatpush.msra.mxu0 %v347
    %2195 = vmatpush.msra.mxu0 %v344
    %2196 = vmatpush.msra.mxu0 %v341
    %2197 = vmatpush.msra.mxu0 %v338
    %2198 = vmatpush.msra.mxu0 %v335
    %2199 = vmatpush.msra.mxu0 %v332
    %2200 = vmatpush.msra.mxu0 %v329
    %2201 = vmatpush.msra.mxu0 %v326
    %2202 = vmatpush.msra.mxu0 %v323
    %2203 = vmatpush.msra.mxu0 %v320
    %2204 = vmatpush.msra.mxu0 %v317
    %2205 = vmatpush.msra.mxu0 %v314
    %2206 = vmatpush.msra.mxu0 %v311
    %2207 = vmatpush.msra.mxu0 %v308
    %2208 = vmatpush.msra.mxu0 %v305
    %2209 = vmatpush.msra.mxu0 %v302
    %2210 = vmatmul.f32.gmra.mxu0 %v1979
    %v2211 = vpop.f32.mrf.mxu0
    %v2212 = vadd.f32 0.0, %v2211
    %2213 = vdwg.mxu0
    %v2214 = vadd.f32 %v2151, %v2172
    %v2215 = vxor.u32 %v2214, 2147483648
    %v2216 = vmul.f32 %v2215, 1.442695
    %v2217 = vpow.pop %v2216
    %v2218 = vadd.f32 %v2217, 1.0
    %v2219 = vrcp.pop %v2218
    %v2220 = vmul.f32 %v2218, %v2219
    %v2221 = vsub.f32 1.0, %v2220
    %v2222 = vmul.f32 %v2219, %v2221
    %v2223 = vadd.f32 %v2219, %v2222
    %vm2224 = vweird.f32 %v2218
    %vm2225 = vweird.f32 %v2219
    %vm2226 = vmor %vm2224, %vm2225
    %v2227 = vsel %vm2226, %v2219, %v2223
    %v2228 = vand.u32 2147483647, %v2218
    %vm2229 = vcmp.eq.f32.partialorder %v2228, 8.507059e+37
    %v2230 = vand.u32 %v2218, 2147483648
    %v2231 = vor.u32 1.1754944e-38, %v2230
    %v2232 = vsel %vm2229, %v2231, %v2227
    %v2233 = vmul.f32 1.0, %v2232
    %v2234 = vadd.f32 %v2152, %v2192
    %v2235 = vxor.u32 %v2234, 2147483648
    %v2236 = vmul.f32 %v2235, 1.442695
    %v2237 = vpow.pop %v2236
    %v2238 = vadd.f32 %v2237, 1.0
    %v2239 = vrcp.pop %v2238
    %v2240 = vmul.f32 %v2238, %v2239
    %v2241 = vsub.f32 1.0, %v2240
    %v2242 = vmul.f32 %v2239, %v2241
    %v2243 = vadd.f32 %v2239, %v2242
    %vm2244 = vweird.f32 %v2238
    %vm2245 = vweird.f32 %v2239
    %vm2246 = vmor %vm2244, %vm2245
    %v2247 = vsel %vm2246, %v2239, %v2243
    %v2248 = vand.u32 2147483647, %v2238
    %vm2249 = vcmp.eq.f32.partialorder %v2248, 8.507059e+37
    %v2250 = vand.u32 %v2238, 2147483648
    %v2251 = vor.u32 1.1754944e-38, %v2250
    %v2252 = vsel %vm2249, %v2251, %v2247
    %v2253 = vmul.f32 1.0, %v2252
    %v2254 = vadd.f32 %v2212, %v450
    %v2255 = vmul.f32 %v2233, %v2254
    %v2256 = vadd.f32 %v2153, %v2255
    %v2257 = vtanh.pop %v2256
    %v2258 = vsub.f32 1.0, %v2253
    %v2259 = vmul.f32 %v2258, %v2257
    %v2260 = vmul.f32 %v2253, %v1979
    %v2261 = vadd.f32 %v2259, %v2260
    %2262 = vmatpush.msra.mxu0 %v505
    %2263 = vmatpush.msra.mxu0 %v502
    %2264 = vmatpush.msra.mxu0 %v499
    %2265 = vmatpush.msra.mxu0 %v496
    %2266 = vmatpush.msra.mxu0 %v493
    %2267 = vmatpush.msra.mxu0 %v490
    %2268 = vmatpush.msra.mxu0 %v487
    %2269 = vmatpush.msra.mxu0 %v484
    %2270 = vmatpush.msra.mxu0 %v481
    %2271 = vmatpush.msra.mxu0 %v478
    %2272 = vmatpush.msra.mxu0 %v475
    %2273 = vmatpush.msra.mxu0 %v472
    %2274 = vmatpush.msra.mxu0 %v469
    %2275 = vmatpush.msra.mxu0 %v466
    %2276 = vmatpush.msra.mxu0 %v463
    %2277 = vmatpush.msra.mxu0 %v460
    %2278 = vmatmul.f32.gmra.mxu0 %v2261
    %v2279 = vpop.f32.mrf.mxu0
    %v2280 = vadd.f32 %v510, %v2279
    %2281 = vdwg.mxu0
    %2282 = vmatpush.msra.mxu0 %v506
    %2283 = vmatpush.msra.mxu0 %v503
    %2284 = vmatpush.msra.mxu0 %v500
    %2285 = vmatpush.msra.mxu0 %v497
    %2286 = vmatpush.msra.mxu0 %v494
    %2287 = vmatpush.msra.mxu0 %v491
    %2288 = vmatpush.msra.mxu0 %v488
    %2289 = vmatpush.msra.mxu0 %v485
    %2290 = vmatpush.msra.mxu0 %v482
    %2291 = vmatpush.msra.mxu0 %v479
    %2292 = vmatpush.msra.mxu0 %v476
    %2293 = vmatpush.msra.mxu0 %v473
    %2294 = vmatpush.msra.mxu0 %v470
    %2295 = vmatpush.msra.mxu0 %v467
    %2296 = vmatpush.msra.mxu0 %v464
    %2297 = vmatpush.msra.mxu0 %v461
    %2298 = vmatmul.f32.gmra.mxu0 %v2261
    %v2299 = vpop.f32.mrf.mxu0
    %v2300 = vadd.f32 %v511, %v2299
    %2301 = vdwg.mxu0
    %2302 = vmatpush.msra.mxu0 %v507
    %2303 = vmatpush.msra.mxu0 %v504
    %2304 = vmatpush.msra.mxu0 %v501
    %2305 = vmatpush.msra.mxu0 %v498
    %2306 = vmatpush.msra.mxu0 %v495
    %2307 = vmatpush.msra.mxu0 %v492
    %2308 = vmatpush.msra.mxu0 %v489
    %2309 = vmatpush.msra.mxu0 %v486
    %2310 = vmatpush.msra.mxu0 %v483
    %2311 = vmatpush.msra.mxu0 %v480
    %2312 = vmatpush.msra.mxu0 %v477
    %2313 = vmatpush.msra.mxu0 %v474
    %2314 = vmatpush.msra.mxu0 %v471
    %2315 = vmatpush.msra.mxu0 %v468
    %2316 = vmatpush.msra.mxu0 %v465
    %2317 = vmatpush.msra.mxu0 %v462
    %2318 = vmatmul.f32.gmra.mxu0 %v2261
    %v2319 = vpop.f32.mrf.mxu0
    %v2320 = vadd.f32 %v512, %v2319
    %2321 = vdwg.mxu0
    %2322 = vmatpush.msra.mxu0 %v622
    %2323 = vmatpush.msra.mxu0 %v619
    %2324 = vmatpush.msra.mxu0 %v616
    %2325 = vmatpush.msra.mxu0 %v613
    %2326 = vmatpush.msra.mxu0 %v610
    %2327 = vmatpush.msra.mxu0 %v607
    %2328 = vmatpush.msra.mxu0 %v604
    %2329 = vmatpush.msra.mxu0 %v601
    %2330 = vmatpush.msra.mxu0 %v598
    %2331 = vmatpush.msra.mxu0 %v595
    %2332 = vmatpush.msra.mxu0 %v592
    %2333 = vmatpush.msra.mxu0 %v589
    %2334 = vmatpush.msra.mxu0 %v586
    %2335 = vmatpush.msra.mxu0 %v583
    %2336 = vmatpush.msra.mxu0 %v580
    %2337 = vmatpush.msra.mxu0 %v577
    %2338 = vmatmul.f32.gmra.mxu0 %v2147
    %v2339 = vpop.f32.mrf.mxu0
    %v2340 = vadd.f32 0.0, %v2339
    %2341 = vdwg.mxu0
    %2342 = vmatpush.msra.mxu0 %v623
    %2343 = vmatpush.msra.mxu0 %v620
    %2344 = vmatpush.msra.mxu0 %v617
    %2345 = vmatpush.msra.mxu0 %v614
    %2346 = vmatpush.msra.mxu0 %v611
    %2347 = vmatpush.msra.mxu0 %v608
    %2348 = vmatpush.msra.mxu0 %v605
    %2349 = vmatpush.msra.mxu0 %v602
    %2350 = vmatpush.msra.mxu0 %v599
    %2351 = vmatpush.msra.mxu0 %v596
    %2352 = vmatpush.msra.mxu0 %v593
    %2353 = vmatpush.msra.mxu0 %v590
    %2354 = vmatpush.msra.mxu0 %v587
    %2355 = vmatpush.msra.mxu0 %v584
    %2356 = vmatpush.msra.mxu0 %v581
    %2357 = vmatpush.msra.mxu0 %v578
    %2358 = vmatmul.f32.gmra.mxu0 %v2147
    %v2359 = vpop.f32.mrf.mxu0
    %v2360 = vadd.f32 0.0, %v2359
    %2361 = vdwg.mxu0
    %2362 = vmatpush.msra.mxu0 %v624
    %2363 = vmatpush.msra.mxu0 %v621
    %2364 = vmatpush.msra.mxu0 %v618
    %2365 = vmatpush.msra.mxu0 %v615
    %2366 = vmatpush.msra.mxu0 %v612
    %2367 = vmatpush.msra.mxu0 %v609
    %2368 = vmatpush.msra.mxu0 %v606
    %2369 = vmatpush.msra.mxu0 %v603
    %2370 = vmatpush.msra.mxu0 %v600
    %2371 = vmatpush.msra.mxu0 %v597
    %2372 = vmatpush.msra.mxu0 %v594
    %2373 = vmatpush.msra.mxu0 %v591
    %2374 = vmatpush.msra.mxu0 %v588
    %2375 = vmatpush.msra.mxu0 %v585
    %2376 = vmatpush.msra.mxu0 %v582
    %2377 = vmatpush.msra.mxu0 %v579
    %2378 = vmatmul.f32.gmra.mxu0 %v2147
    %v2379 = vpop.f32.mrf.mxu0
    %v2380 = vadd.f32 0.0, %v2379
    %2381 = vdwg.mxu0
    %v2382 = vadd.f32 %v2280, %v2340
    %v2383 = vxor.u32 %v2382, 2147483648
    %v2384 = vmul.f32 %v2383, 1.442695
    %v2385 = vpow.pop %v2384
    %v2386 = vadd.f32 %v2385, 1.0
    %v2387 = vrcp.pop %v2386
    %v2388 = vmul.f32 %v2386, %v2387
    %v2389 = vsub.f32 1.0, %v2388
    %v2390 = vmul.f32 %v2387, %v2389
    %v2391 = vadd.f32 %v2387, %v2390
    %vm2392 = vweird.f32 %v2386
    %vm2393 = vweird.f32 %v2387
    %vm2394 = vmor %vm2392, %vm2393
    %v2395 = vsel %vm2394, %v2387, %v2391
    %v2396 = vand.u32 2147483647, %v2386
    %vm2397 = vcmp.eq.f32.partialorder %v2396, 8.507059e+37
    %v2398 = vand.u32 %v2386, 2147483648
    %v2399 = vor.u32 1.1754944e-38, %v2398
    %v2400 = vsel %vm2397, %v2399, %v2395
    %v2401 = vmul.f32 1.0, %v2400
    %v2402 = vadd.f32 %v2300, %v2360
    %v2403 = vxor.u32 %v2402, 2147483648
    %v2404 = vmul.f32 %v2403, 1.442695
    %v2405 = vpow.pop %v2404
    %v2406 = vadd.f32 %v2405, 1.0
    %v2407 = vrcp.pop %v2406
    %v2408 = vmul.f32 %v2406, %v2407
    %v2409 = vsub.f32 1.0, %v2408
    %v2410 = vmul.f32 %v2407, %v2409
    %v2411 = vadd.f32 %v2407, %v2410
    %vm2412 = vweird.f32 %v2406
    %vm2413 = vweird.f32 %v2407
    %vm2414 = vmor %vm2412, %vm2413
    %v2415 = vsel %vm2414, %v2407, %v2411
    %v2416 = vand.u32 2147483647, %v2406
    %vm2417 = vcmp.eq.f32.partialorder %v2416, 8.507059e+37
    %v2418 = vand.u32 %v2406, 2147483648
    %v2419 = vor.u32 1.1754944e-38, %v2418
    %v2420 = vsel %vm2417, %v2419, %v2415
    %v2421 = vmul.f32 1.0, %v2420
    %v2422 = vadd.f32 %v2380, %v728
    %v2423 = vmul.f32 %v2401, %v2422
    %v2424 = vadd.f32 %v2320, %v2423
    %v2425 = vtanh.pop %v2424
    %v2426 = vsub.f32 1.0, %v2421
    %v2427 = vmul.f32 %v2426, %v2425
    %v2428 = vmul.f32 %v2421, %v2147
    %v2429 = vadd.f32 %v2427, %v2428
    %s2430 = smul.u32 7, 3
    %s2431 = smul.addr %s2430, 8
    %s2432 = scalar_lea.vmem [#allocation3], %s2431
    %v2433 = vld [vmem:[%s2432] sm:$0xff]
    %v2434 = vld [vmem:[%s2432 + $0x8] sm:$0xff]
    %v2435 = vld [vmem:[%s2432 + $0x10] sm:$0xff]
    %2436 = vmatpush.msra.mxu0 %v345
    %2437 = vmatpush.msra.mxu0 %v342
    %2438 = vmatpush.msra.mxu0 %v339
    %2439 = vmatpush.msra.mxu0 %v336
    %2440 = vmatpush.msra.mxu0 %v333
    %2441 = vmatpush.msra.mxu0 %v330
    %2442 = vmatpush.msra.mxu0 %v327
    %2443 = vmatpush.msra.mxu0 %v324
    %2444 = vmatpush.msra.mxu0 %v321
    %2445 = vmatpush.msra.mxu0 %v318
    %2446 = vmatpush.msra.mxu0 %v315
    %2447 = vmatpush.msra.mxu0 %v312
    %2448 = vmatpush.msra.mxu0 %v309
    %2449 = vmatpush.msra.mxu0 %v306
    %2450 = vmatpush.msra.mxu0 %v303
    %2451 = vmatpush.msra.mxu0 %v300
    %2452 = vmatmul.f32.gmra.mxu0 %v2261
    %v2453 = vpop.f32.mrf.mxu0
    %v2454 = vadd.f32 0.0, %v2453
    %2455 = vdwg.mxu0
    %2456 = vmatpush.msra.mxu0 %v346
    %2457 = vmatpush.msra.mxu0 %v343
    %2458 = vmatpush.msra.mxu0 %v340
    %2459 = vmatpush.msra.mxu0 %v337
    %2460 = vmatpush.msra.mxu0 %v334
    %2461 = vmatpush.msra.mxu0 %v331
    %2462 = vmatpush.msra.mxu0 %v328
    %2463 = vmatpush.msra.mxu0 %v325
    %2464 = vmatpush.msra.mxu0 %v322
    %2465 = vmatpush.msra.mxu0 %v319
    %2466 = vmatpush.msra.mxu0 %v316
    %2467 = vmatpush.msra.mxu0 %v313
    %2468 = vmatpush.msra.mxu0 %v310
    %2469 = vmatpush.msra.mxu0 %v307
    %2470 = vmatpush.msra.mxu0 %v304
    %2471 = vmatpush.msra.mxu0 %v301
    %2472 = vmatmul.f32.gmra.mxu0 %v2261
    %v2473 = vpop.f32.mrf.mxu0
    %v2474 = vadd.f32 0.0, %v2473
    %2475 = vdwg.mxu0
    %2476 = vmatpush.msra.mxu0 %v347
    %2477 = vmatpush.msra.mxu0 %v344
    %2478 = vmatpush.msra.mxu0 %v341
    %2479 = vmatpush.msra.mxu0 %v338
    %2480 = vmatpush.msra.mxu0 %v335
    %2481 = vmatpush.msra.mxu0 %v332
    %2482 = vmatpush.msra.mxu0 %v329
    %2483 = vmatpush.msra.mxu0 %v326
    %2484 = vmatpush.msra.mxu0 %v323
    %2485 = vmatpush.msra.mxu0 %v320
    %2486 = vmatpush.msra.mxu0 %v317
    %2487 = vmatpush.msra.mxu0 %v314
    %2488 = vmatpush.msra.mxu0 %v311
    %2489 = vmatpush.msra.mxu0 %v308
    %2490 = vmatpush.msra.mxu0 %v305
    %2491 = vmatpush.msra.mxu0 %v302
    %2492 = vmatmul.f32.gmra.mxu0 %v2261
    %v2493 = vpop.f32.mrf.mxu0
    %v2494 = vadd.f32 0.0, %v2493
    %2495 = vdwg.mxu0
    %v2496 = vadd.f32 %v2433, %v2454
    %v2497 = vxor.u32 %v2496, 2147483648
    %v2498 = vmul.f32 %v2497, 1.442695
    %v2499 = vpow.pop %v2498
    %v2500 = vadd.f32 %v2499, 1.0
    %v2501 = vrcp.pop %v2500
    %v2502 = vmul.f32 %v2500, %v2501
    %v2503 = vsub.f32 1.0, %v2502
    %v2504 = vmul.f32 %v2501, %v2503
    %v2505 = vadd.f32 %v2501, %v2504
    %vm2506 = vweird.f32 %v2500
    %vm2507 = vweird.f32 %v2501
    %vm2508 = vmor %vm2506, %vm2507
    %v2509 = vsel %vm2508, %v2501, %v2505
    %v2510 = vand.u32 2147483647, %v2500
    %vm2511 = vcmp.eq.f32.partialorder %v2510, 8.507059e+37
    %v2512 = vand.u32 %v2500, 2147483648
    %v2513 = vor.u32 1.1754944e-38, %v2512
    %v2514 = vsel %vm2511, %v2513, %v2509
    %v2515 = vmul.f32 1.0, %v2514
    %v2516 = vadd.f32 %v2434, %v2474
    %v2517 = vxor.u32 %v2516, 2147483648
    %v2518 = vmul.f32 %v2517, 1.442695
    %v2519 = vpow.pop %v2518
    %v2520 = vadd.f32 %v2519, 1.0
    %v2521 = vrcp.pop %v2520
    %v2522 = vmul.f32 %v2520, %v2521
    %v2523 = vsub.f32 1.0, %v2522
    %v2524 = vmul.f32 %v2521, %v2523
    %v2525 = vadd.f32 %v2521, %v2524
    %vm2526 = vweird.f32 %v2520
    %vm2527 = vweird.f32 %v2521
    %vm2528 = vmor %vm2526, %vm2527
    %v2529 = vsel %vm2528, %v2521, %v2525
    %v2530 = vand.u32 2147483647, %v2520
    %vm2531 = vcmp.eq.f32.partialorder %v2530, 8.507059e+37
    %v2532 = vand.u32 %v2520, 2147483648
    %v2533 = vor.u32 1.1754944e-38, %v2532
    %v2534 = vsel %vm2531, %v2533, %v2529
    %v2535 = vmul.f32 1.0, %v2534
    %v2536 = vadd.f32 %v2494, %v450
    %v2537 = vmul.f32 %v2515, %v2536
    %v2538 = vadd.f32 %v2435, %v2537
    %v2539 = vtanh.pop %v2538
    %v2540 = vsub.f32 1.0, %v2535
    %v2541 = vmul.f32 %v2540, %v2539
    %v2542 = vmul.f32 %v2535, %v2261
    %v2543 = vadd.f32 %v2541, %v2542
    %2544 = vmatpush.msra.mxu0 %v505
    %2545 = vmatpush.msra.mxu0 %v502
    %2546 = vmatpush.msra.mxu0 %v499
    %2547 = vmatpush.msra.mxu0 %v496
    %2548 = vmatpush.msra.mxu0 %v493
    %2549 = vmatpush.msra.mxu0 %v490
    %2550 = vmatpush.msra.mxu0 %v487
    %2551 = vmatpush.msra.mxu0 %v484
    %2552 = vmatpush.msra.mxu0 %v481
    %2553 = vmatpush.msra.mxu0 %v478
    %2554 = vmatpush.msra.mxu0 %v475
    %2555 = vmatpush.msra.mxu0 %v472
    %2556 = vmatpush.msra.mxu0 %v469
    %2557 = vmatpush.msra.mxu0 %v466
    %2558 = vmatpush.msra.mxu0 %v463
    %2559 = vmatpush.msra.mxu0 %v460
    %2560 = vmatmul.f32.gmra.mxu0 %v2543
    %v2561 = vpop.f32.mrf.mxu0
    %v2562 = vadd.f32 %v510, %v2561
    %2563 = vdwg.mxu0
    %2564 = vmatpush.msra.mxu0 %v506
    %2565 = vmatpush.msra.mxu0 %v503
    %2566 = vmatpush.msra.mxu0 %v500
    %2567 = vmatpush.msra.mxu0 %v497
    %2568 = vmatpush.msra.mxu0 %v494
    %2569 = vmatpush.msra.mxu0 %v491
    %2570 = vmatpush.msra.mxu0 %v488
    %2571 = vmatpush.msra.mxu0 %v485
    %2572 = vmatpush.msra.mxu0 %v482
    %2573 = vmatpush.msra.mxu0 %v479
    %2574 = vmatpush.msra.mxu0 %v476
    %2575 = vmatpush.msra.mxu0 %v473
    %2576 = vmatpush.msra.mxu0 %v470
    %2577 = vmatpush.msra.mxu0 %v467
    %2578 = vmatpush.msra.mxu0 %v464
    %2579 = vmatpush.msra.mxu0 %v461
    %2580 = vmatmul.f32.gmra.mxu0 %v2543
    %v2581 = vpop.f32.mrf.mxu0
    %v2582 = vadd.f32 %v511, %v2581
    %2583 = vdwg.mxu0
    %2584 = vmatpush.msra.mxu0 %v507
    %2585 = vmatpush.msra.mxu0 %v504
    %2586 = vmatpush.msra.mxu0 %v501
    %2587 = vmatpush.msra.mxu0 %v498
    %2588 = vmatpush.msra.mxu0 %v495
    %2589 = vmatpush.msra.mxu0 %v492
    %2590 = vmatpush.msra.mxu0 %v489
    %2591 = vmatpush.msra.mxu0 %v486
    %2592 = vmatpush.msra.mxu0 %v483
    %2593 = vmatpush.msra.mxu0 %v480
    %2594 = vmatpush.msra.mxu0 %v477
    %2595 = vmatpush.msra.mxu0 %v474
    %2596 = vmatpush.msra.mxu0 %v471
    %2597 = vmatpush.msra.mxu0 %v468
    %2598 = vmatpush.msra.mxu0 %v465
    %2599 = vmatpush.msra.mxu0 %v462
    %2600 = vmatmul.f32.gmra.mxu0 %v2543
    %v2601 = vpop.f32.mrf.mxu0
    %v2602 = vadd.f32 %v512, %v2601
    %2603 = vdwg.mxu0
    %2604 = vmatpush.msra.mxu0 %v622
    %2605 = vmatpush.msra.mxu0 %v619
    %2606 = vmatpush.msra.mxu0 %v616
    %2607 = vmatpush.msra.mxu0 %v613
    %2608 = vmatpush.msra.mxu0 %v610
    %2609 = vmatpush.msra.mxu0 %v607
    %2610 = vmatpush.msra.mxu0 %v604
    %2611 = vmatpush.msra.mxu0 %v601
    %2612 = vmatpush.msra.mxu0 %v598
    %2613 = vmatpush.msra.mxu0 %v595
    %2614 = vmatpush.msra.mxu0 %v592
    %2615 = vmatpush.msra.mxu0 %v589
    %2616 = vmatpush.msra.mxu0 %v586
    %2617 = vmatpush.msra.mxu0 %v583
    %2618 = vmatpush.msra.mxu0 %v580
    %2619 = vmatpush.msra.mxu0 %v577
    %2620 = vmatmul.f32.gmra.mxu0 %v2429
    %v2621 = vpop.f32.mrf.mxu0
    %v2622 = vadd.f32 0.0, %v2621
    %2623 = vdwg.mxu0
    %2624 = vmatpush.msra.mxu0 %v623
    %2625 = vmatpush.msra.mxu0 %v620
    %2626 = vmatpush.msra.mxu0 %v617
    %2627 = vmatpush.msra.mxu0 %v614
    %2628 = vmatpush.msra.mxu0 %v611
    %2629 = vmatpush.msra.mxu0 %v608
    %2630 = vmatpush.msra.mxu0 %v605
    %2631 = vmatpush.msra.mxu0 %v602
    %2632 = vmatpush.msra.mxu0 %v599
    %2633 = vmatpush.msra.mxu0 %v596
    %2634 = vmatpush.msra.mxu0 %v593
    %2635 = vmatpush.msra.mxu0 %v590
    %2636 = vmatpush.msra.mxu0 %v587
    %2637 = vmatpush.msra.mxu0 %v584
    %2638 = vmatpush.msra.mxu0 %v581
    %2639 = vmatpush.msra.mxu0 %v578
    %2640 = vmatmul.f32.gmra.mxu0 %v2429
    %v2641 = vpop.f32.mrf.mxu0
    %v2642 = vadd.f32 0.0, %v2641
    %2643 = vdwg.mxu0
    %2644 = vmatpush.msra.mxu0 %v624
    %2645 = vmatpush.msra.mxu0 %v621
    %2646 = vmatpush.msra.mxu0 %v618
    %2647 = vmatpush.msra.mxu0 %v615
    %2648 = vmatpush.msra.mxu0 %v612
    %2649 = vmatpush.msra.mxu0 %v609
    %2650 = vmatpush.msra.mxu0 %v606
    %2651 = vmatpush.msra.mxu0 %v603
    %2652 = vmatpush.msra.mxu0 %v600
    %2653 = vmatpush.msra.mxu0 %v597
    %2654 = vmatpush.msra.mxu0 %v594
    %2655 = vmatpush.msra.mxu0 %v591
    %2656 = vmatpush.msra.mxu0 %v588
    %2657 = vmatpush.msra.mxu0 %v585
    %2658 = vmatpush.msra.mxu0 %v582
    %2659 = vmatpush.msra.mxu0 %v579
    %2660 = vmatmul.f32.gmra.mxu0 %v2429
    %v2661 = vpop.f32.mrf.mxu0
    %v2662 = vadd.f32 0.0, %v2661
    %2663 = vdwg.mxu0
    %v2664 = vadd.f32 %v2562, %v2622
    %v2665 = vxor.u32 %v2664, 2147483648
    %v2666 = vmul.f32 %v2665, 1.442695
    %v2667 = vpow.pop %v2666
    %v2668 = vadd.f32 %v2667, 1.0
    %v2669 = vrcp.pop %v2668
    %v2670 = vmul.f32 %v2668, %v2669
    %v2671 = vsub.f32 1.0, %v2670
    %v2672 = vmul.f32 %v2669, %v2671
    %v2673 = vadd.f32 %v2669, %v2672
    %vm2674 = vweird.f32 %v2668
    %vm2675 = vweird.f32 %v2669
    %vm2676 = vmor %vm2674, %vm2675
    %v2677 = vsel %vm2676, %v2669, %v2673
    %v2678 = vand.u32 2147483647, %v2668
    %vm2679 = vcmp.eq.f32.partialorder %v2678, 8.507059e+37
    %v2680 = vand.u32 %v2668, 2147483648
    %v2681 = vor.u32 1.1754944e-38, %v2680
    %v2682 = vsel %vm2679, %v2681, %v2677
    %v2683 = vmul.f32 1.0, %v2682
    %v2684 = vadd.f32 %v2582, %v2642
    %v2685 = vxor.u32 %v2684, 2147483648
    %v2686 = vmul.f32 %v2685, 1.442695
    %v2687 = vpow.pop %v2686
    %v2688 = vadd.f32 %v2687, 1.0
    %v2689 = vrcp.pop %v2688
    %v2690 = vmul.f32 %v2688, %v2689
    %v2691 = vsub.f32 1.0, %v2690
    %v2692 = vmul.f32 %v2689, %v2691
    %v2693 = vadd.f32 %v2689, %v2692
    %vm2694 = vweird.f32 %v2688
    %vm2695 = vweird.f32 %v2689
    %vm2696 = vmor %vm2694, %vm2695
    %v2697 = vsel %vm2696, %v2689, %v2693
    %v2698 = vand.u32 2147483647, %v2688
    %vm2699 = vcmp.eq.f32.partialorder %v2698, 8.507059e+37
    %v2700 = vand.u32 %v2688, 2147483648
    %v2701 = vor.u32 1.1754944e-38, %v2700
    %v2702 = vsel %vm2699, %v2701, %v2697
    %v2703 = vmul.f32 1.0, %v2702
    %v2704 = vadd.f32 %v2662, %v728
    %v2705 = vmul.f32 %v2683, %v2704
    %v2706 = vadd.f32 %v2602, %v2705
    %v2707 = vtanh.pop %v2706
    %v2708 = vsub.f32 1.0, %v2703
    %v2709 = vmul.f32 %v2708, %v2707
    %v2710 = vmul.f32 %v2703, %v2429
    %v2711 = vadd.f32 %v2709, %v2710
    %2712 = vst [vmem:[#allocation2] sm:$0xff] %v2543
    %2713 = vst [vmem:[%s292] sm:$0xff] %v2711
    // Predicated region
    $region54: #{tpu_custom_call.1} parent=1 // pred_check
      %p2714 = pneg %p80
    $region55: #{tpu_custom_call.1} parent=1 // pred_check_branch
      %2716 = sbr.rel (%p2714) target = $region57
    $region56: #{tpu_custom_call.1} parent=1 // pred_region
      %v2717 = vld [vmem:[#allocation9] sm:$0xff]
      %v2718 = vld [vmem:[#allocation9 + $0x8] sm:$0xff]
      %v2719 = vld [vmem:[#allocation9 + $0x10] sm:$0xff]
      %v2720 = vld [vmem:[#allocation9 + $0x18] sm:$0xff]
      %v2721 = vld [vmem:[#allocation9 + $0x20] sm:$0xff]
      %v2722 = vld [vmem:[#allocation9 + $0x28] sm:$0xff]
      %v2723 = vld [vmem:[#allocation9 + $0x30] sm:$0xff]
      %v2724 = vld [vmem:[#allocation9 + $0x38] sm:$0xff]
      %v2725 = vld [vmem:[#allocation9 + $0x40] sm:$0xff]
      %v2726 = vld [vmem:[#allocation9 + $0x48] sm:$0xff]
      %v2727 = vld [vmem:[#allocation9 + $0x50] sm:$0xff]
      %v2728 = vld [vmem:[#allocation9 + $0x58] sm:$0xff]
      %v2729 = vld [vmem:[#allocation9 + $0x60] sm:$0xff]
      %v2730 = vld [vmem:[#allocation9 + $0x68] sm:$0xff]
      %v2731 = vld [vmem:[#allocation9 + $0x70] sm:$0xff]
      %v2732 = vld [vmem:[#allocation9 + $0x78] sm:$0xff]
      %v2733 = vld [vmem:[%s8] sm:$0x1]
      %v2735 = vperm.slane %v2733, 0
      %2737 = vmatpush.msra.mxu0 %v2732
      %2738 = vmatpush.msra.mxu0 %v2731
      %2739 = vmatpush.msra.mxu0 %v2730
      %2740 = vmatpush.msra.mxu0 %v2729
      %2741 = vmatpush.msra.mxu0 %v2728
      %2742 = vmatpush.msra.mxu0 %v2727
      %2743 = vmatpush.msra.mxu0 %v2726
      %2744 = vmatpush.msra.mxu0 %v2725
      %2745 = vmatpush.msra.mxu0 %v2724
      %2746 = vmatpush.msra.mxu0 %v2723
      %2747 = vmatpush.msra.mxu0 %v2722
      %2748 = vmatpush.msra.mxu0 %v2721
      %2749 = vmatpush.msra.mxu0 %v2720
      %2750 = vmatpush.msra.mxu0 %v2719
      %2751 = vmatpush.msra.mxu0 %v2718
      %2752 = vmatpush.msra.mxu0 %v2717
      %2753 = vmatmul.f32.gmra.mxu0 %v2711
      %v2754 = vpop.f32.mrf.mxu0
      %v2755 = vadd.f32 %v2735, %v2754
      %2756 = vdwg.mxu0
      %2757 = vst [vmem:[#allocation10] sm:$0xff] %v2755
    $region57: #{tpu_custom_call.1} parent=1 // pred_fallthru
      _
    // Predicated region
    $region58: #{tpu_custom_call.1} parent=1 // pred_check
      _
    $region59: #{tpu_custom_call.1} parent=1 // pred_check_branch
      %2759 = sbr.rel (0) target = $region61
    $region60: #{tpu_custom_call.1} parent=1 // pred_region
      %2761 = vsyncadd [#allocation6], 0
      %s2763 = sshll.u32 [#allocation10], 4
      %s2764 = int_to_ptr.vmem [resolvable:$true] %s2763
      %s2765 = sshll.u32 %s9, 4
      %s2766 = int_to_ptr.hbm [resolvable:$true] %s2765
      %2768 = dma.vmem_to_hbm [thread:$0]  %s2764, 128, %s2766, [#allocation6]
    $region61: #{tpu_custom_call.1} parent=1 // pred_fallthru
      _
    // Predicated region
    $region62: #{tpu_custom_call.1} parent=1 // pred_check
      _
    $region63: #{tpu_custom_call.1} parent=1 // pred_check_branch
      %2770 = sbr.rel (0) target = $region65
    $region64: #{tpu_custom_call.1} parent=1 // pred_region
      %2772 = dma.done [#allocation6], 128
    $region65: #{tpu_custom_call.1} parent=1 // pred_fallthru
      _
    %2773 = vsyncpa [#allocation5], 1
    %2774 = vsyncpa [#allocation8], 1
    %2775 = vsyncpa [#allocation6], 1

</llo_original>
